<compile_context>
chip_gen: v5e
topology: v5e:2x2
jax: 0.10.0
libtpu: 0.0.40
codegen_flags: <defaults>
</compile_context>

<pallas_src>
import functools

import jax
import jax.numpy as jnp
import numpy as np
from jax.experimental import pallas as pl
from jax.experimental.pallas import tpu as pltpu

_LANE = 128
_SUBLANE = 8
_IN_BLOCK_BUDGET = 2 * 1024 * 1024      # target VMEM bytes for one input block
_TM_MAX = 1024                          # row-tile cap (tiles 512-1024 ~ 85% of roofline)
_TN_TILED = 512                         # lane tile when the score axis is tiled
_MIN_PALLAS_BYTES = 256 * 1024          # below this, pure-XLA argmax is faster


def _round_up(a, b):
    return (a + b - 1) // b * b


def _reference(x, threshold):
    """Pure-JAX mirror of the PyTorch module (fallback path + test oracle)."""
    argmax = jnp.argmax(x, axis=-1, keepdims=True).astype(jnp.int32)
    gathered = jnp.take_along_axis(x, argmax, axis=-1)
    match = jnp.where(gathered >= threshold, argmax, jnp.int32(-1))
    return jnp.squeeze(match)


def _matcher_kernel(thr_ref, x_ref, out_ref, mmax_ref, midx_ref, *, n_total, tn):
    """Online row max / first-argmax over the tiled score (lane) axis."""
    k = pl.program_id(1)
    nk = pl.num_programs(1)

    x = x_ref[...].astype(jnp.float32)                        # (tm, tn)
    lane = jax.lax.broadcasted_iota(jnp.int32, x.shape, 1)    # (tm, tn)
    col = lane + k * tn                                       # global column ids

    if n_total % tn != 0:
        # Last score-axis block sticks past the real array: those lanes hold
        # undefined data -- mask them so they can never win the argmax.
        x = jnp.where(col < n_total, x, -jnp.inf)

    blk_max = jnp.max(x, axis=-1, keepdims=True)              # (tm, 1)
    # First-occurrence argmax inside this block (torch.argmax tie-break).
    blk_arg = jnp.min(
        jnp.where(x == blk_max, col, jnp.int32(n_total)),
        axis=-1, keepdims=True)                               # (tm, 1) int32

    @pl.when(k == 0)
    def _():
        mmax_ref[...] = blk_max
        midx_ref[...] = blk_arg

    @pl.when(k > 0)
    def _():
        prev_max = mmax_ref[...]
        prev_idx = midx_ref[...]
        take_new = blk_max > prev_max   # strict > keeps the earlier index on ties
        mmax_ref[...] = jnp.where(take_new, blk_max, prev_max)
        midx_ref[...] = jnp.where(take_new, blk_arg, prev_idx)

    @pl.when(k == nk - 1)
    def _():
        thr = thr_ref[0]
        out_ref[...] = jnp.where(mmax_ref[...] >= thr, midx_ref[...],
                                 jnp.int32(-1))


def maximum_matcher(x, threshold, *, tm=None, tn=None):
    """Pallas implementation of MaximumMatcher.forward."""
    orig_shape = x.shape
    n = int(orig_shape[-1])
    m = int(np.prod(orig_shape[:-1])) if len(orig_shape) > 1 else 1

    if not jnp.issubdtype(x.dtype, jnp.floating):
        x = x.astype(jnp.float32)
    itemsize = x.dtype.itemsize

    forced = (tm is not None) or (tn is not None)
    if not forced and m * n * itemsize < _MIN_PALLAS_BYTES:
        # Tiny score matrices: pallas_call launch / DMA setup costs more than
        # the whole computation; let XLA's fused argmax handle it.
        return _reference(x, threshold)

    x2 = x.reshape(m, n)

    # ---- score-axis (lane) tile -------------------------------------------
    if tn is None:
        # Keep the whole row in one block while a decent row tile (>=128 rows)
        # still fits the VMEM budget; otherwise tile the score axis.
        if _round_up(n, _LANE) * itemsize * _LANE <= _IN_BLOCK_BUDGET:
            tn = n
        else:
            tn = _TN_TILED
    else:
        tn = int(tn)
        if tn < n and tn % _LANE != 0:
            tn = _round_up(tn, _LANE)           # lane-dim constraint
    if tn >= n:
        tn = n
    kt = pl.cdiv(n, tn)

    # ---- row (sublane) tile -------------------------------------------------
    lane_pad = _round_up(tn, _LANE)             # VMEM lane padding of a block row
    if tm is None:
        tm = max(_SUBLANE,
                 min(_TM_MAX,
                     (_IN_BLOCK_BUDGET // (lane_pad * itemsize))
                     // _SUBLANE * _SUBLANE))
    else:
        tm = max(_SUBLANE, _round_up(int(tm), _SUBLANE))
    if tm >= m:
        tm = _round_up(m, _SUBLANE)
    grid_m = pl.cdiv(m, tm)

    kernel = functools.partial(_matcher_kernel, n_total=n, tn=tn)
    thr = jnp.asarray(threshold, dtype=jnp.float32).reshape((1,))

    out = pl.pallas_call(
        kernel,
        out_shape=jax.ShapeDtypeStruct((m, 1), jnp.int32),
        grid=(grid_m, kt),
        in_specs=[
            pl.BlockSpec(memory_space=pltpu.MemorySpace.SMEM),   # threshold (1,)
            pl.BlockSpec((tm, tn), lambda i, k: (i, k)),
        ],
        out_specs=pl.BlockSpec((tm, 1), lambda i, k: (i, 0)),
        scratch_shapes=[
            pltpu.VMEM((tm, 1), jnp.float32),   # running max
            pltpu.VMEM((tm, 1), jnp.int32),     # running first-argmax
        ],
        compiler_params=pltpu.CompilerParams(
            dimension_semantics=("parallel", "arbitrary"),
            vmem_limit_bytes=32 * 1024 * 1024,
        ),
    )(thr, x2)

    match = out.reshape(orig_shape[:-1] + (1,))
    # torch .squeeze(): drop every size-1 dimension.
    return jnp.squeeze(match)


if __name__ == "__main__":
    key = jax.random.PRNGKey(0)
    k1, k2, k3 = jax.random.split(key, 3)
    threshold = 0.5

    # 1) Tiny problem -> pure-JAX fallback path.
    x_small = jax.random.uniform(k1, (2, 8, 16), dtype=jnp.float32)
    out_small = jax.block_until_ready(maximum_matcher(x_small, threshold))
    np.testing.assert_array_equal(np.asarray(out_small),
                                  np.asarray(_reference(x_small, threshold)))

    # 2) Pallas path, f32, auto tiling (big row tile, untiled score axis).
    x_f32 = jax.random.uniform(k2, (2, 1024, 64), dtype=jnp.float32)
    out_f32 = jax.block_until_ready(maximum_matcher(x_f32, threshold))
    np.testing.assert_array_equal(np.asarray(out_f32),
                                  np.asarray(_reference(x_f32, threshold)))

    # 3) Pallas path, bf16 input read directly (half the HBM bytes).
    x_bf16 = x_f32.astype(jnp.bfloat16)
    out_bf16 = jax.block_until_ready(maximum_matcher(x_bf16, threshold))
    np.testing.assert_array_equal(np.asarray(out_bf16),
                                  np.asarray(_reference(x_bf16, threshold)))

    # 4) Forced small tiles: exercises the online score-axis reduction (kt>1),
    #    the -inf tail mask (300 % 128 != 0) and partial row blocks (250 % 16).
    x_rag = jax.random.uniform(k3, (250, 300), dtype=jnp.float32)
    out_rag = jax.block_until_ready(
        maximum_matcher(x_rag, threshold, tm=16, tn=128))
    np.testing.assert_array_equal(np.asarray(out_rag),
                                  np.asarray(_reference(x_rag, threshold)))

    print("KERNEL_OK")
</pallas_src>

<mosaic_0001>
module attributes {stable_mosaic.version = 11 : i64} {
  func.func @_matcher_kernel(%arg0: i32, %arg1: i32, %arg2: memref<1xf32, #tpu.memory_space<smem>>, %arg3: memref<1024x64xf32, #tpu.memory_space<vmem>>, %arg4: memref<1024x1xi32, #tpu.memory_space<vmem>>, %arg5: memref<1024x1xf32, #tpu.memory_space<vmem>>, %arg6: memref<1024x1xi32, #tpu.memory_space<vmem>>) attributes {dimension_semantics = [#tpu.dimension_semantics<parallel>, #tpu.dimension_semantics<arbitrary>], iteration_bounds = array<i64: 2, 1>, scalar_prefetch = 0 : i64, scratch_operands = 2 : i64, tpu.core_type = #tpu.core_type<tc>, window_params = [{transform_indices = @transform_0, window_bounds = array<i64: 1>}, {transform_indices = @transform_1, window_bounds = array<i64: 1024, 64>}, {transform_indices = @transform_2, window_bounds = array<i64: 1024, 1>}]} {
    %c0 = arith.constant 0 : index
    %c0_0 = arith.constant 0 : index
    %0 = vector.load %arg3[%c0, %c0_0] : memref<1024x64xf32, #tpu.memory_space<vmem>>, vector<1024x64xf32>
    %1 = tpu.iota {dimensions = array<i32: 1>} : vector<1024x64xi32>
    %c64_i32 = arith.constant 64 : i32
    %2 = arith.muli %arg1, %c64_i32 : i32
    %3 = vector.broadcast %2 : i32 to vector<1024x64xi32>
    %4 = arith.addi %1, %3 : vector<1024x64xi32>
    %cst = arith.constant dense<0xFF800000> : vector<1024xf32>
    %5 = vector.multi_reduction <maximumf>, %0, %cst [1] : vector<1024x64xf32> to vector<1024xf32>
    %6 = vector.shape_cast %5 : vector<1024xf32> to vector<1024x1xf32>
    %7 = vector.broadcast %6 : vector<1024x1xf32> to vector<1024x64xf32>
    %8 = arith.cmpf oeq, %0, %7 : vector<1024x64xf32>
    %c64_i32_1 = arith.constant 64 : i32
    %9 = vector.broadcast %c64_i32_1 : i32 to vector<1024x64xi32>
    %10 = arith.select %8, %4, %9 : vector<1024x64xi1>, vector<1024x64xi32>
    %cst_2 = arith.constant dense<2147483647> : vector<1024xi32>
    %11 = vector.multi_reduction <minsi>, %10, %cst_2 [1] : vector<1024x64xi32> to vector<1024xi32>
    %12 = vector.shape_cast %11 : vector<1024xi32> to vector<1024x1xi32>
    %c0_i32 = arith.constant 0 : i32
    %13 = arith.cmpi eq, %arg1, %c0_i32 : i32
    %14 = arith.extui %13 : i1 to i32
    %c0_i32_3 = arith.constant 0 : i32
    %15 = arith.cmpi ne, %14, %c0_i32_3 : i32
    scf.if %15 {
      %c0_8 = arith.constant 0 : index
      %c0_9 = arith.constant 0 : index
      %22 = vector.load %arg5[%c0_8, %c0_9] : memref<1024x1xf32, #tpu.memory_space<vmem>>, vector<1024x1xf32>
      tpu.vector_store %arg5[%c0_8, %c0_9], %6 {strides = array<i32>} : memref<1024x1xf32, #tpu.memory_space<vmem>>, vector<1024x1xf32>,
      %c0_10 = arith.constant 0 : index
      %c0_11 = arith.constant 0 : index
      %23 = vector.load %arg6[%c0_10, %c0_11] : memref<1024x1xi32, #tpu.memory_space<vmem>>, vector<1024x1xi32>
      tpu.vector_store %arg6[%c0_10, %c0_11], %12 {strides = array<i32>} : memref<1024x1xi32, #tpu.memory_space<vmem>>, vector<1024x1xi32>,
    } else {
    }
    %c0_i32_4 = arith.constant 0 : i32
    %16 = arith.cmpi sgt, %arg1, %c0_i32_4 : i32
    %17 = arith.extui %16 : i1 to i32
    %c0_i32_5 = arith.constant 0 : i32
    %18 = arith.cmpi ne, %17, %c0_i32_5 : i32
    scf.if %18 {
      %c0_8 = arith.constant 0 : index
      %c0_9 = arith.constant 0 : index
      %22 = vector.load %arg5[%c0_8, %c0_9] : memref<1024x1xf32, #tpu.memory_space<vmem>>, vector<1024x1xf32>
      %c0_10 = arith.constant 0 : index
      %c0_11 = arith.constant 0 : index
      %23 = vector.load %arg6[%c0_10, %c0_11] : memref<1024x1xi32, #tpu.memory_space<vmem>>, vector<1024x1xi32>
      %24 = arith.cmpf ogt, %6, %22 : vector<1024x1xf32>
      %25 = arith.select %24, %6, %22 : vector<1024x1xi1>, vector<1024x1xf32>
      %c0_12 = arith.constant 0 : index
      %c0_13 = arith.constant 0 : index
      %26 = vector.load %arg5[%c0_12, %c0_13] : memref<1024x1xf32, #tpu.memory_space<vmem>>, vector<1024x1xf32>
      tpu.vector_store %arg5[%c0_12, %c0_13], %25 {strides = array<i32>} : memref<1024x1xf32, #tpu.memory_space<vmem>>, vector<1024x1xf32>,
      %27 = arith.select %24, %12, %23 : vector<1024x1xi1>, vector<1024x1xi32>
      %c0_14 = arith.constant 0 : index
      %c0_15 = arith.constant 0 : index
      %28 = vector.load %arg6[%c0_14, %c0_15] : memref<1024x1xi32, #tpu.memory_space<vmem>>, vector<1024x1xi32>
      tpu.vector_store %arg6[%c0_14, %c0_15], %27 {strides = array<i32>} : memref<1024x1xi32, #tpu.memory_space<vmem>>, vector<1024x1xi32>,
    } else {
    }
    %c0_i32_6 = arith.constant 0 : i32
    %19 = arith.cmpi eq, %arg1, %c0_i32_6 : i32
    %20 = arith.extui %19 : i1 to i32
    %c0_i32_7 = arith.constant 0 : i32
    %21 = arith.cmpi ne, %20, %c0_i32_7 : i32
    scf.if %21 {
      %c0_8 = arith.constant 0 : index
      %22 = memref.load %arg2[%c0_8] : memref<1xf32, #tpu.memory_space<smem>>
      %c0_9 = arith.constant 0 : index
      %c0_10 = arith.constant 0 : index
      %23 = vector.load %arg5[%c0_9, %c0_10] : memref<1024x1xf32, #tpu.memory_space<vmem>>, vector<1024x1xf32>
      %24 = vector.broadcast %22 : f32 to vector<1024x1xf32>
      %25 = arith.cmpf oge, %23, %24 : vector<1024x1xf32>
      %c0_11 = arith.constant 0 : index
      %c0_12 = arith.constant 0 : index
      %26 = vector.load %arg6[%c0_11, %c0_12] : memref<1024x1xi32, #tpu.memory_space<vmem>>, vector<1024x1xi32>
      %c-1_i32 = arith.constant -1 : i32
      %27 = vector.broadcast %c-1_i32 : i32 to vector<1024x1xi32>
      %28 = arith.select %25, %26, %27 : vector<1024x1xi1>, vector<1024x1xi32>
      %c0_13 = arith.constant 0 : index
      %c0_14 = arith.constant 0 : index
      %29 = vector.load %arg4[%c0_13, %c0_14] : memref<1024x1xi32, #tpu.memory_space<vmem>>, vector<1024x1xi32>
      tpu.vector_store %arg4[%c0_13, %c0_14], %28 {strides = array<i32>} : memref<1024x1xi32, #tpu.memory_space<vmem>>, vector<1024x1xi32>,
    } else {
    }
    return
  }
  func.func @transform_0(%arg0: i32, %arg1: i32) -> i32 {
    %c0_i32 = arith.constant 0 : i32
    %c0_i32_0 = arith.constant 0 : i32
    return %c0_i32 : i32
  }
  func.func @transform_1(%arg0: i32, %arg1: i32) -> (i32, i32) {
    %c0_i32 = arith.constant 0 : i32
    return %arg0, %arg1 : i32, i32
  }
  func.func @transform_2(%arg0: i32, %arg1: i32) -> (i32, i32) {
    %c0_i32 = arith.constant 0 : i32
    %c0_i32_0 = arith.constant 0 : i32
    return %arg0, %c0_i32 : i32, i32
  }
}

</mosaic_0001>

<llo_original>
// kernel: tpu_custom_call.1
$region0: #{tpu_custom_call.1}
  #allocation0 [shape = 'u32[]', space=smem, size = 0x4, offset = 0x4, fixed_abs, tag = 'smem constant byte address 0x4 - core index']
  #allocation1 [shape = 'u32[72,128]{1,0:T(1,128)}', space=vmem, size = 0x9000, scoped, tag = 'internal scratch']
  #allocation2 [shape = 'f32[1024,1]{1,0:T(8,128)}', space=vmem, size = 0x80000, scoped, tag = 'scratch operand']
  #allocation3 [shape = 's32[1024,1]{1,0:T(8,128)}', space=vmem, size = 0x80000, scoped, tag = 'scratch operand']
  #allocation4 [shape = 'f32[1]{0:T(128)S(6)}', space=smem, size = 0x200, scoped, tag = 'scoped memory for tpu_custom_call.1']
  %s0 = inlined_call_operand.<no memory space> [shape: f32[1], index: 0, kind: input, shape index: {}]
  %s1 = inlined_call_operand.vmem [shape: f32[2048,64], index: 1, kind: input, shape index: {}]
  %s2 = inlined_call_operand.vmem [shape: s32[2048,1], index: 2, kind: output, shape index: {}]
  %s3 = sld [smem:[#allocation0]]
  $region53: #{tpu_custom_call.1} parent=0
    _
  %s5 = ssub.s32 1, %s3
  %s6 = scalar_select 0, %s5, %s3
  %7 = sst [smem:[#allocation4]] %s0
  loop: start=0, step=1, limit=4
  $region2: #{tpu_custom_call.1} parent=0 // loop_pre_header
    _
  $region3: #{tpu_custom_call.1} parent=0 // loop_header
    %s9 = sphi 0, %s13
    %p10 = scmp.ge.s32.totalorder %s9, 4
    %s16 = sphi 0, %s28
    %s17 = sphi 0, %s24
    %s18 = sphi 0, %s16
    %s19 = sphi 0, %s17
    %s20 = sphi 0, %s18
    %s21 = sphi 0, %s19
    %s29 = sphi 0, %s29
    %s31 = sphi 0, %s29
    %s32 = sphi 0, %s31
    %s46 = sphi 0, %s32
    %s54 = sphi 0, %s56
    %s57 = sphi 0, %s54
    %s58 = sphi 0, %s57
    %s74 = sphi 0, %s58
    %s80 = sphi 0, %s82
    %s83 = sphi 0, %s80
    %s84 = sphi 0, %s83
    %s100 = sphi 0, %s84
  $region4: #{tpu_custom_call.1} parent=0 // loop_header_branch
    %12 = sbr.rel (%p10) target = $region8
  $region5: #{tpu_custom_call.1} parent=0 // loop_body
    %s14 = ssub.s32 %s9, 1
    %s15 = ssub.s32 %s9, 2
    %s22 = sadd.s32 1, %s17
    %p23 = scmp.ge.s32.totalorder %s22, 1
    %s24 = scalar_select %p23, 0, %s22
    %s25 = sadd.s32 1, %s16
    %s26 = scalar_select %p23, %s25, %s16
    %p27 = scmp.ge.s32.totalorder %s26, 2
    %s28 = scalar_select %p27, 0, %s26
    %s30 = sadd.s32 %s29, 1
    %p33 = scmp.eq.s32.totalorder %s9, 1
    %p34 = scmp.ne.s32.totalorder %s29, %s31
    %p35 = scmp.eq.s32.totalorder %s9, 0
    %p36 = por %p34, %p35
    %p37 = scmp.ne.s32.totalorder %s29, %s31
    %p38 = scmp.eq.s32.totalorder %s14, 1
    %p39 = por %p37, %p38
    %p40 = scmp.ne.s32.totalorder %s31, %s32
    %p41 = scmp.eq.s32.totalorder %s14, 0
    %p42 = por %p40, %p41
    %p43 = scmp.ne.s32.totalorder %s31, %s32
    %p44 = scmp.eq.s32.totalorder %s15, 1
    %p45 = por %p43, %p44
    %p47 = scmp.ne.s32.totalorder %s32, %s46
    %p48 = scmp.eq.s32.totalorder %s15, 0
    %p49 = por %p47, %p48
    %s50 = ssub.s32 %s16, %s28
    %s51 = ssub.s32 %s17, %s24
    %s52 = sor.u32 %s50, %s51
    %p53 = scmp.eq.s32.totalorder %s52, 0
    %s55 = sadd.s32 %s54, 1
    %s56 = scalar_select %p53, %s54, %s55
    %p59 = pneg %p53
    %p60 = scmp.eq.s32.totalorder %s9, 1
    %p61 = por %p59, %p60
    %p62 = scmp.ne.s32.totalorder %s54, %s57
    %p63 = scmp.eq.s32.totalorder %s9, 0
    %p64 = por %p62, %p63
    %p65 = scmp.ne.s32.totalorder %s54, %s57
    %p66 = scmp.eq.s32.totalorder %s14, 1
    %p67 = por %p65, %p66
    %p68 = scmp.ne.s32.totalorder %s57, %s58
    %p69 = scmp.eq.s32.totalorder %s14, 0
    %p70 = por %p68, %p69
    %p71 = scmp.ne.s32.totalorder %s57, %s58
    %p72 = scmp.eq.s32.totalorder %s15, 1
    %p73 = por %p71, %p72
    %p75 = scmp.ne.s32.totalorder %s58, %s74
    %p76 = scmp.eq.s32.totalorder %s15, 0
    %p77 = por %p75, %p76
    %s78 = ssub.s32 %s16, %s28
    %p79 = scmp.eq.s32.totalorder %s78, 0
    %s81 = sadd.s32 %s80, 1
    %s82 = scalar_select %p79, %s80, %s81
    %p85 = pneg %p79
    %p86 = scmp.eq.s32.totalorder %s9, 1
    %p87 = por %p85, %p86
    %p88 = scmp.ne.s32.totalorder %s80, %s83
    %p89 = scmp.eq.s32.totalorder %s9, 0
    %p90 = por %p88, %p89
    %p91 = scmp.ne.s32.totalorder %s80, %s83
    %p92 = scmp.eq.s32.totalorder %s14, 1
    %p93 = por %p91, %p92
    %p94 = scmp.ne.s32.totalorder %s83, %s84
    %p95 = scmp.eq.s32.totalorder %s14, 0
    %p96 = por %p94, %p95
    %p97 = scmp.ne.s32.totalorder %s83, %s84
    %p98 = scmp.eq.s32.totalorder %s15, 1
    %p99 = por %p97, %p98
    %p101 = scmp.ne.s32.totalorder %s84, %s100
    %p102 = scmp.eq.s32.totalorder %s15, 0
    %p103 = por %p101, %p102
    %p104 = scmp.le.s32.totalorder 1, %s9
    %p105 = scmp.lt.s32.totalorder %s9, 3
    %p106 = pnand %p104, %p105
    %p107 = pneg %p106
    // Predicated region
    $region9: #{tpu_custom_call.1} parent=5 // pred_check
      _
    $region10: #{tpu_custom_call.1} parent=5 // pred_check_branch
      %109 = sbr.rel (%p106) target = $region12
    $region11: #{tpu_custom_call.1} parent=5 // pred_region
      %s110 = ssub.s32 %s9, 1
      // Predicated region
      $region13: #{tpu_custom_call.1} parent=11 // pred_check
        %p111 = pneg %p42
      $region14: #{tpu_custom_call.1} parent=11 // pred_check_branch
        %113 = sbr.rel (%p111) target = $region16
      $region15: #{tpu_custom_call.1} parent=11 // pred_region
        _
      $region16: #{tpu_custom_call.1} parent=11 // pred_fallthru
        _
    $region12: #{tpu_custom_call.1} parent=5 // pred_fallthru
      _
    %p114 = scmp.lt.s32.totalorder %s9, 2
    // Predicated region
    $region17: #{tpu_custom_call.1} parent=5 // pred_check
      %p115 = pneg %p114
    $region18: #{tpu_custom_call.1} parent=5 // pred_check_branch
      %117 = sbr.rel (%p115) target = $region20
    $region19: #{tpu_custom_call.1} parent=5 // pred_region
      // Predicated region
      $region21: #{tpu_custom_call.1} parent=19 // pred_check
        %p118 = pneg %p64
      $region22: #{tpu_custom_call.1} parent=19 // pred_check_branch
        %120 = sbr.rel (%p118) target = $region24
      $region23: #{tpu_custom_call.1} parent=19 // pred_region
        %s121 = smul.u32 128, %s16
        %p122 = scmp.lt.s32.totalorder %s121, 255
        %s123 = scalar_select %p122, %s121, 255
        %p124 = scmp.lt.s32.totalorder %s17, 0
        %s125 = scalar_select %p124, %s17, 0
        %s126 = sadd.s32 %s125, %s123
        %s127 = smul.addr %s126, 8
        %s128 = scalar_lea.vmem %s1, %s127
        %s129 = smul.u32 128, %s16
      $region24: #{tpu_custom_call.1} parent=19 // pred_fallthru
        _
    $region20: #{tpu_custom_call.1} parent=5 // pred_fallthru
      _
    %p130 = scmp.le.s32.totalorder 1, %s9
    %p131 = scmp.lt.s32.totalorder %s9, 3
    %p132 = pnand %p130, %p131
    %p133 = pneg %p132
    // Predicated region
    $region25: #{tpu_custom_call.1} parent=5 // pred_check
      _
    $region26: #{tpu_custom_call.1} parent=5 // pred_check_branch
      %135 = sbr.rel (%p132) target = $region28
    $region27: #{tpu_custom_call.1} parent=5 // pred_region
      %s136 = ssub.s32 %s9, 1
      %p137 = pneg %p42
      %p138 = pneg %p39
      %s139 = smul.u32 128, %s18
      %p140 = scmp.lt.s32.totalorder %s139, 255
      %s141 = scalar_select %p140, %s139, 255
      %p142 = scmp.lt.s32.totalorder %s19, 0
      %s143 = scalar_select %p142, %s19, 0
      %s144 = sadd.s32 %s143, %s141
      %s145 = smul.addr %s144, 8
      %s146 = scalar_lea.vmem %s1, %s145
      %p147 = pneg %p70
      %p148 = pneg %p67
      %p149 = pneg %p96
      %p150 = pneg %p93
      %s151 = smul.u32 128, %s18
      %p152 = scmp.lt.s32.totalorder %s151, 255
      %s153 = scalar_select %p152, %s151, 255
      %s154 = smul.addr %s153, 8
      %s155 = scalar_lea.vmem %s2, %s154
      %s156 = smul.u32 128, %s18
      %p157 = scmp.lt.s32.totalorder %s156, 255
      %s158 = scalar_select %p157, %s156, 255
      %p159 = scmp.lt.s32.totalorder %s19, 0
      %s160 = scalar_select %p159, %s19, 0
      %s161 = sadd.s32 %s160, %s158
      %s162 = smul.addr %s161, 8
      %s163 = scalar_lea.vmem %s1, %s162
      %s164 = smul.u32 128, %s18
      %s165 = smul.u32 128, %s18
      %p166 = scmp.lt.s32.totalorder %s165, 255
      %s167 = scalar_select %p166, %s165, 255
      %s168 = smul.addr %s167, 8
      %s169 = scalar_lea.vmem %s2, %s168
      %s170 = smul.u32 128, %s18
      %v171 = vld [vmem:[%s163] sm:$0xff]
      %v172 = vld [vmem:[%s163 + $0x8] sm:$0xff]
      %v173 = vld [vmem:[%s163 + $0x10] sm:$0xff]
      %v174 = vld [vmem:[%s163 + $0x18] sm:$0xff]
      %v175 = vld [vmem:[%s163 + $0x20] sm:$0xff]
      %v176 = vld [vmem:[%s163 + $0x28] sm:$0xff]
      %v177 = vld [vmem:[%s163 + $0x30] sm:$0xff]
      %v178 = vld [vmem:[%s163 + $0x38] sm:$0xff]
      %v179 = vld [vmem:[%s163 + $0x40] sm:$0xff]
      %v180 = vld [vmem:[%s163 + $0x48] sm:$0xff]
      %v181 = vld [vmem:[%s163 + $0x50] sm:$0xff]
      %v182 = vld [vmem:[%s163 + $0x58] sm:$0xff]
      %v183 = vld [vmem:[%s163 + $0x60] sm:$0xff]
      %v184 = vld [vmem:[%s163 + $0x68] sm:$0xff]
      %v185 = vld [vmem:[%s163 + $0x70] sm:$0xff]
      %v186 = vld [vmem:[%s163 + $0x78] sm:$0xff]
      %v187 = vld [vmem:[%s163 + $0x80] sm:$0xff]
      %v188 = vld [vmem:[%s163 + $0x88] sm:$0xff]
      %v189 = vld [vmem:[%s163 + $0x90] sm:$0xff]
      %v190 = vld [vmem:[%s163 + $0x98] sm:$0xff]
      %v191 = vld [vmem:[%s163 + $0xa0] sm:$0xff]
      %v192 = vld [vmem:[%s163 + $0xa8] sm:$0xff]
      %v193 = vld [vmem:[%s163 + $0xb0] sm:$0xff]
      %v194 = vld [vmem:[%s163 + $0xb8] sm:$0xff]
      %v195 = vld [vmem:[%s163 + $0xc0] sm:$0xff]
      %v196 = vld [vmem:[%s163 + $0xc8] sm:$0xff]
      %v197 = vld [vmem:[%s163 + $0xd0] sm:$0xff]
      %v198 = vld [vmem:[%s163 + $0xd8] sm:$0xff]
      %v199 = vld [vmem:[%s163 + $0xe0] sm:$0xff]
      %v200 = vld [vmem:[%s163 + $0xe8] sm:$0xff]
      %v201 = vld [vmem:[%s163 + $0xf0] sm:$0xff]
      %v202 = vld [vmem:[%s163 + $0xf8] sm:$0xff]
      %v203 = vld [vmem:[%s163 + $0x100] sm:$0xff]
      %v204 = vld [vmem:[%s163 + $0x108] sm:$0xff]
      %v205 = vld [vmem:[%s163 + $0x110] sm:$0xff]
      %v206 = vld [vmem:[%s163 + $0x118] sm:$0xff]
      %v207 = vld [vmem:[%s163 + $0x120] sm:$0xff]
      %v208 = vld [vmem:[%s163 + $0x128] sm:$0xff]
      %v209 = vld [vmem:[%s163 + $0x130] sm:$0xff]
      %v210 = vld [vmem:[%s163 + $0x138] sm:$0xff]
      %v211 = vld [vmem:[%s163 + $0x140] sm:$0xff]
      %v212 = vld [vmem:[%s163 + $0x148] sm:$0xff]
      %v213 = vld [vmem:[%s163 + $0x150] sm:$0xff]
      %v214 = vld [vmem:[%s163 + $0x158] sm:$0xff]
      %v215 = vld [vmem:[%s163 + $0x160] sm:$0xff]
      %v216 = vld [vmem:[%s163 + $0x168] sm:$0xff]
      %v217 = vld [vmem:[%s163 + $0x170] sm:$0xff]
      %v218 = vld [vmem:[%s163 + $0x178] sm:$0xff]
      %v219 = vld [vmem:[%s163 + $0x180] sm:$0xff]
      %v220 = vld [vmem:[%s163 + $0x188] sm:$0xff]
      %v221 = vld [vmem:[%s163 + $0x190] sm:$0xff]
      %v222 = vld [vmem:[%s163 + $0x198] sm:$0xff]
      %v223 = vld [vmem:[%s163 + $0x1a0] sm:$0xff]
      %v224 = vld [vmem:[%s163 + $0x1a8] sm:$0xff]
      %v225 = vld [vmem:[%s163 + $0x1b0] sm:$0xff]
      %v226 = vld [vmem:[%s163 + $0x1b8] sm:$0xff]
      %v227 = vld [vmem:[%s163 + $0x1c0] sm:$0xff]
      %v228 = vld [vmem:[%s163 + $0x1c8] sm:$0xff]
      %v229 = vld [vmem:[%s163 + $0x1d0] sm:$0xff]
      %v230 = vld [vmem:[%s163 + $0x1d8] sm:$0xff]
      %v231 = vld [vmem:[%s163 + $0x1e0] sm:$0xff]
      %v232 = vld [vmem:[%s163 + $0x1e8] sm:$0xff]
      %v233 = vld [vmem:[%s163 + $0x1f0] sm:$0xff]
      %v234 = vld [vmem:[%s163 + $0x1f8] sm:$0xff]
      %v235 = vld [vmem:[%s163 + $0x200] sm:$0xff]
      %v236 = vld [vmem:[%s163 + $0x208] sm:$0xff]
      %v237 = vld [vmem:[%s163 + $0x210] sm:$0xff]
      %v238 = vld [vmem:[%s163 + $0x218] sm:$0xff]
      %v239 = vld [vmem:[%s163 + $0x220] sm:$0xff]
      %v240 = vld [vmem:[%s163 + $0x228] sm:$0xff]
      %v241 = vld [vmem:[%s163 + $0x230] sm:$0xff]
      %v242 = vld [vmem:[%s163 + $0x238] sm:$0xff]
      %v243 = vld [vmem:[%s163 + $0x240] sm:$0xff]
      %v244 = vld [vmem:[%s163 + $0x248] sm:$0xff]
      %v245 = vld [vmem:[%s163 + $0x250] sm:$0xff]
      %v246 = vld [vmem:[%s163 + $0x258] sm:$0xff]
      %v247 = vld [vmem:[%s163 + $0x260] sm:$0xff]
      %v248 = vld [vmem:[%s163 + $0x268] sm:$0xff]
      %v249 = vld [vmem:[%s163 + $0x270] sm:$0xff]
      %v250 = vld [vmem:[%s163 + $0x278] sm:$0xff]
      %v251 = vld [vmem:[%s163 + $0x280] sm:$0xff]
      %v252 = vld [vmem:[%s163 + $0x288] sm:$0xff]
      %v253 = vld [vmem:[%s163 + $0x290] sm:$0xff]
      %v254 = vld [vmem:[%s163 + $0x298] sm:$0xff]
      %v255 = vld [vmem:[%s163 + $0x2a0] sm:$0xff]
      %v256 = vld [vmem:[%s163 + $0x2a8] sm:$0xff]
      %v257 = vld [vmem:[%s163 + $0x2b0] sm:$0xff]
      %v258 = vld [vmem:[%s163 + $0x2b8] sm:$0xff]
      %v259 = vld [vmem:[%s163 + $0x2c0] sm:$0xff]
      %v260 = vld [vmem:[%s163 + $0x2c8] sm:$0xff]
      %v261 = vld [vmem:[%s163 + $0x2d0] sm:$0xff]
      %v262 = vld [vmem:[%s163 + $0x2d8] sm:$0xff]
      %v263 = vld [vmem:[%s163 + $0x2e0] sm:$0xff]
      %v264 = vld [vmem:[%s163 + $0x2e8] sm:$0xff]
      %v265 = vld [vmem:[%s163 + $0x2f0] sm:$0xff]
      %v266 = vld [vmem:[%s163 + $0x2f8] sm:$0xff]
      %v267 = vld [vmem:[%s163 + $0x300] sm:$0xff]
      %v268 = vld [vmem:[%s163 + $0x308] sm:$0xff]
      %v269 = vld [vmem:[%s163 + $0x310] sm:$0xff]
      %v270 = vld [vmem:[%s163 + $0x318] sm:$0xff]
      %v271 = vld [vmem:[%s163 + $0x320] sm:$0xff]
      %v272 = vld [vmem:[%s163 + $0x328] sm:$0xff]
      %v273 = vld [vmem:[%s163 + $0x330] sm:$0xff]
      %v274 = vld [vmem:[%s163 + $0x338] sm:$0xff]
      %v275 = vld [vmem:[%s163 + $0x340] sm:$0xff]
      %v276 = vld [vmem:[%s163 + $0x348] sm:$0xff]
      %v277 = vld [vmem:[%s163 + $0x350] sm:$0xff]
      %v278 = vld [vmem:[%s163 + $0x358] sm:$0xff]
      %v279 = vld [vmem:[%s163 + $0x360] sm:$0xff]
      %v280 = vld [vmem:[%s163 + $0x368] sm:$0xff]
      %v281 = vld [vmem:[%s163 + $0x370] sm:$0xff]
      %v282 = vld [vmem:[%s163 + $0x378] sm:$0xff]
      %v283 = vld [vmem:[%s163 + $0x380] sm:$0xff]
      %v284 = vld [vmem:[%s163 + $0x388] sm:$0xff]
      %v285 = vld [vmem:[%s163 + $0x390] sm:$0xff]
      %v286 = vld [vmem:[%s163 + $0x398] sm:$0xff]
      %v287 = vld [vmem:[%s163 + $0x3a0] sm:$0xff]
      %v288 = vld [vmem:[%s163 + $0x3a8] sm:$0xff]
      %v289 = vld [vmem:[%s163 + $0x3b0] sm:$0xff]
      %v290 = vld [vmem:[%s163 + $0x3b8] sm:$0xff]
      %v291 = vld [vmem:[%s163 + $0x3c0] sm:$0xff]
      %v292 = vld [vmem:[%s163 + $0x3c8] sm:$0xff]
      %v293 = vld [vmem:[%s163 + $0x3d0] sm:$0xff]
      %v294 = vld [vmem:[%s163 + $0x3d8] sm:$0xff]
      %v295 = vld [vmem:[%s163 + $0x3e0] sm:$0xff]
      %v296 = vld [vmem:[%s163 + $0x3e8] sm:$0xff]
      %v297 = vld [vmem:[%s163 + $0x3f0] sm:$0xff]
      %v298 = vld [vmem:[%s163 + $0x3f8] sm:$0xff]
      %v299 = vlaneseq
      %v300 = vand.u32 %v299, 127
      %s301 = smul.u32 %s19, 64
      %v302 = vstv %s301
      %v303 = vadd.s32 %v300, %v302
      %vm304 = vcmask 523264
      %v305 = vsel %vm304, %v171, -inf
      %306 = vmax.xlane.f32.xlu0 %v305
      %v307 = vpop.xlane.xlu0 %306
      %v308 = vsel %vm304, %v172, -inf
      %309 = vmax.xlane.f32.xlu0 %v308
      %v310 = vpop.xlane.xlu0 %309
      %v311 = vsel %vm304, %v173, -inf
      %312 = vmax.xlane.f32.xlu0 %v311
      %v313 = vpop.xlane.xlu0 %312
      %v314 = vsel %vm304, %v174, -inf
      %315 = vmax.xlane.f32.xlu0 %v314
      %v316 = vpop.xlane.xlu0 %315
      %v317 = vsel %vm304, %v175, -inf
      %318 = vmax.xlane.f32.xlu0 %v317
      %v319 = vpop.xlane.xlu0 %318
      %v320 = vsel %vm304, %v176, -inf
      %321 = vmax.xlane.f32.xlu0 %v320
      %v322 = vpop.xlane.xlu0 %321
      %v323 = vsel %vm304, %v177, -inf
      %324 = vmax.xlane.f32.xlu0 %v323
      %v325 = vpop.xlane.xlu0 %324
      %v326 = vsel %vm304, %v178, -inf
      %327 = vmax.xlane.f32.xlu0 %v326
      %v328 = vpop.xlane.xlu0 %327
      %v329 = vsel %vm304, %v179, -inf
      %330 = vmax.xlane.f32.xlu0 %v329
      %v331 = vpop.xlane.xlu0 %330
      %v332 = vsel %vm304, %v180, -inf
      %333 = vmax.xlane.f32.xlu0 %v332
      %v334 = vpop.xlane.xlu0 %333
      %v335 = vsel %vm304, %v181, -inf
      %336 = vmax.xlane.f32.xlu0 %v335
      %v337 = vpop.xlane.xlu0 %336
      %v338 = vsel %vm304, %v182, -inf
      %339 = vmax.xlane.f32.xlu0 %v338
      %v340 = vpop.xlane.xlu0 %339
      %v341 = vsel %vm304, %v183, -inf
      %342 = vmax.xlane.f32.xlu0 %v341
      %v343 = vpop.xlane.xlu0 %342
      %v344 = vsel %vm304, %v184, -inf
      %345 = vmax.xlane.f32.xlu0 %v344
      %v346 = vpop.xlane.xlu0 %345
      %v347 = vsel %vm304, %v185, -inf
      %348 = vmax.xlane.f32.xlu0 %v347
      %v349 = vpop.xlane.xlu0 %348
      %v350 = vsel %vm304, %v186, -inf
      %351 = vmax.xlane.f32.xlu0 %v350
      %v352 = vpop.xlane.xlu0 %351
      %v353 = vsel %vm304, %v187, -inf
      %354 = vmax.xlane.f32.xlu0 %v353
      %v355 = vpop.xlane.xlu0 %354
      %v356 = vsel %vm304, %v188, -inf
      %357 = vmax.xlane.f32.xlu0 %v356
      %v358 = vpop.xlane.xlu0 %357
      %v359 = vsel %vm304, %v189, -inf
      %360 = vmax.xlane.f32.xlu0 %v359
      %v361 = vpop.xlane.xlu0 %360
      %v362 = vsel %vm304, %v190, -inf
      %363 = vmax.xlane.f32.xlu0 %v362
      %v364 = vpop.xlane.xlu0 %363
      %v365 = vsel %vm304, %v191, -inf
      %366 = vmax.xlane.f32.xlu0 %v365
      %v367 = vpop.xlane.xlu0 %366
      %v368 = vsel %vm304, %v192, -inf
      %369 = vmax.xlane.f32.xlu0 %v368
      %v370 = vpop.xlane.xlu0 %369
      %v371 = vsel %vm304, %v193, -inf
      %372 = vmax.xlane.f32.xlu0 %v371
      %v373 = vpop.xlane.xlu0 %372
      %v374 = vsel %vm304, %v194, -inf
      %375 = vmax.xlane.f32.xlu0 %v374
      %v376 = vpop.xlane.xlu0 %375
      %v377 = vsel %vm304, %v195, -inf
      %378 = vmax.xlane.f32.xlu0 %v377
      %v379 = vpop.xlane.xlu0 %378
      %v380 = vsel %vm304, %v196, -inf
      %381 = vmax.xlane.f32.xlu0 %v380
      %v382 = vpop.xlane.xlu0 %381
      %v383 = vsel %vm304, %v197, -inf
      %384 = vmax.xlane.f32.xlu0 %v383
      %v385 = vpop.xlane.xlu0 %384
      %v386 = vsel %vm304, %v198, -inf
      %387 = vmax.xlane.f32.xlu0 %v386
      %v388 = vpop.xlane.xlu0 %387
      %v389 = vsel %vm304, %v199, -inf
      %390 = vmax.xlane.f32.xlu0 %v389
      %v391 = vpop.xlane.xlu0 %390
      %v392 = vsel %vm304, %v200, -inf
      %393 = vmax.xlane.f32.xlu0 %v392
      %v394 = vpop.xlane.xlu0 %393
      %v395 = vsel %vm304, %v201, -inf
      %396 = vmax.xlane.f32.xlu0 %v395
      %v397 = vpop.xlane.xlu0 %396
      %v398 = vsel %vm304, %v202, -inf
      %399 = vmax.xlane.f32.xlu0 %v398
      %v400 = vpop.xlane.xlu0 %399
      %v401 = vsel %vm304, %v203, -inf
      %402 = vmax.xlane.f32.xlu0 %v401
      %v403 = vpop.xlane.xlu0 %402
      %v404 = vsel %vm304, %v204, -inf
      %405 = vmax.xlane.f32.xlu0 %v404
      %v406 = vpop.xlane.xlu0 %405
      %v407 = vsel %vm304, %v205, -inf
      %408 = vmax.xlane.f32.xlu0 %v407
      %v409 = vpop.xlane.xlu0 %408
      %v410 = vsel %vm304, %v206, -inf
      %411 = vmax.xlane.f32.xlu0 %v410
      %v412 = vpop.xlane.xlu0 %411
      %v413 = vsel %vm304, %v207, -inf
      %414 = vmax.xlane.f32.xlu0 %v413
      %v415 = vpop.xlane.xlu0 %414
      %v416 = vsel %vm304, %v208, -inf
      %417 = vmax.xlane.f32.xlu0 %v416
      %v418 = vpop.xlane.xlu0 %417
      %v419 = vsel %vm304, %v209, -inf
      %420 = vmax.xlane.f32.xlu0 %v419
      %v421 = vpop.xlane.xlu0 %420
      %v422 = vsel %vm304, %v210, -inf
      %423 = vmax.xlane.f32.xlu0 %v422
      %v424 = vpop.xlane.xlu0 %423
      %v425 = vsel %vm304, %v211, -inf
      %426 = vmax.xlane.f32.xlu0 %v425
      %v427 = vpop.xlane.xlu0 %426
      %v428 = vsel %vm304, %v212, -inf
      %429 = vmax.xlane.f32.xlu0 %v428
      %v430 = vpop.xlane.xlu0 %429
      %v431 = vsel %vm304, %v213, -inf
      %432 = vmax.xlane.f32.xlu0 %v431
      %v433 = vpop.xlane.xlu0 %432
      %v434 = vsel %vm304, %v214, -inf
      %435 = vmax.xlane.f32.xlu0 %v434
      %v436 = vpop.xlane.xlu0 %435
      %v437 = vsel %vm304, %v215, -inf
      %438 = vmax.xlane.f32.xlu0 %v437
      %v439 = vpop.xlane.xlu0 %438
      %v440 = vsel %vm304, %v216, -inf
      %441 = vmax.xlane.f32.xlu0 %v440
      %v442 = vpop.xlane.xlu0 %441
      %v443 = vsel %vm304, %v217, -inf
      %444 = vmax.xlane.f32.xlu0 %v443
      %v445 = vpop.xlane.xlu0 %444
      %v446 = vsel %vm304, %v218, -inf
      %447 = vmax.xlane.f32.xlu0 %v446
      %v448 = vpop.xlane.xlu0 %447
      %v449 = vsel %vm304, %v219, -inf
      %450 = vmax.xlane.f32.xlu0 %v449
      %v451 = vpop.xlane.xlu0 %450
      %v452 = vsel %vm304, %v220, -inf
      %453 = vmax.xlane.f32.xlu0 %v452
      %v454 = vpop.xlane.xlu0 %453
      %v455 = vsel %vm304, %v221, -inf
      %456 = vmax.xlane.f32.xlu0 %v455
      %v457 = vpop.xlane.xlu0 %456
      %v458 = vsel %vm304, %v222, -inf
      %459 = vmax.xlane.f32.xlu0 %v458
      %v460 = vpop.xlane.xlu0 %459
      %v461 = vsel %vm304, %v223, -inf
      %462 = vmax.xlane.f32.xlu0 %v461
      %v463 = vpop.xlane.xlu0 %462
      %v464 = vsel %vm304, %v224, -inf
      %465 = vmax.xlane.f32.xlu0 %v464
      %v466 = vpop.xlane.xlu0 %465
      %v467 = vsel %vm304, %v225, -inf
      %468 = vmax.xlane.f32.xlu0 %v467
      %v469 = vpop.xlane.xlu0 %468
      %v470 = vsel %vm304, %v226, -inf
      %471 = vmax.xlane.f32.xlu0 %v470
      %v472 = vpop.xlane.xlu0 %471
      %v473 = vsel %vm304, %v227, -inf
      %474 = vmax.xlane.f32.xlu0 %v473
      %v475 = vpop.xlane.xlu0 %474
      %v476 = vsel %vm304, %v228, -inf
      %477 = vmax.xlane.f32.xlu0 %v476
      %v478 = vpop.xlane.xlu0 %477
      %v479 = vsel %vm304, %v229, -inf
      %480 = vmax.xlane.f32.xlu0 %v479
      %v481 = vpop.xlane.xlu0 %480
      %v482 = vsel %vm304, %v230, -inf
      %483 = vmax.xlane.f32.xlu0 %v482
      %v484 = vpop.xlane.xlu0 %483
      %v485 = vsel %vm304, %v231, -inf
      %486 = vmax.xlane.f32.xlu0 %v485
      %v487 = vpop.xlane.xlu0 %486
      %v488 = vsel %vm304, %v232, -inf
      %489 = vmax.xlane.f32.xlu0 %v488
      %v490 = vpop.xlane.xlu0 %489
      %v491 = vsel %vm304, %v233, -inf
      %492 = vmax.xlane.f32.xlu0 %v491
      %v493 = vpop.xlane.xlu0 %492
      %v494 = vsel %vm304, %v234, -inf
      %495 = vmax.xlane.f32.xlu0 %v494
      %v496 = vpop.xlane.xlu0 %495
      %v497 = vsel %vm304, %v235, -inf
      %498 = vmax.xlane.f32.xlu0 %v497
      %v499 = vpop.xlane.xlu0 %498
      %v500 = vsel %vm304, %v236, -inf
      %501 = vmax.xlane.f32.xlu0 %v500
      %v502 = vpop.xlane.xlu0 %501
      %v503 = vsel %vm304, %v237, -inf
      %504 = vmax.xlane.f32.xlu0 %v503
      %v505 = vpop.xlane.xlu0 %504
      %v506 = vsel %vm304, %v238, -inf
      %507 = vmax.xlane.f32.xlu0 %v506
      %v508 = vpop.xlane.xlu0 %507
      %v509 = vsel %vm304, %v239, -inf
      %510 = vmax.xlane.f32.xlu0 %v509
      %v511 = vpop.xlane.xlu0 %510
      %v512 = vsel %vm304, %v240, -inf
      %513 = vmax.xlane.f32.xlu0 %v512
      %v514 = vpop.xlane.xlu0 %513
      %v515 = vsel %vm304, %v241, -inf
      %516 = vmax.xlane.f32.xlu0 %v515
      %v517 = vpop.xlane.xlu0 %516
      %v518 = vsel %vm304, %v242, -inf
      %519 = vmax.xlane.f32.xlu0 %v518
      %v520 = vpop.xlane.xlu0 %519
      %v521 = vsel %vm304, %v243, -inf
      %522 = vmax.xlane.f32.xlu0 %v521
      %v523 = vpop.xlane.xlu0 %522
      %v524 = vsel %vm304, %v244, -inf
      %525 = vmax.xlane.f32.xlu0 %v524
      %v526 = vpop.xlane.xlu0 %525
      %v527 = vsel %vm304, %v245, -inf
      %528 = vmax.xlane.f32.xlu0 %v527
      %v529 = vpop.xlane.xlu0 %528
      %v530 = vsel %vm304, %v246, -inf
      %531 = vmax.xlane.f32.xlu0 %v530
      %v532 = vpop.xlane.xlu0 %531
      %v533 = vsel %vm304, %v247, -inf
      %534 = vmax.xlane.f32.xlu0 %v533
      %v535 = vpop.xlane.xlu0 %534
      %v536 = vsel %vm304, %v248, -inf
      %537 = vmax.xlane.f32.xlu0 %v536
      %v538 = vpop.xlane.xlu0 %537
      %v539 = vsel %vm304, %v249, -inf
      %540 = vmax.xlane.f32.xlu0 %v539
      %v541 = vpop.xlane.xlu0 %540
      %v542 = vsel %vm304, %v250, -inf
      %543 = vmax.xlane.f32.xlu0 %v542
      %v544 = vpop.xlane.xlu0 %543
      %v545 = vsel %vm304, %v251, -inf
      %546 = vmax.xlane.f32.xlu0 %v545
      %v547 = vpop.xlane.xlu0 %546
      %v548 = vsel %vm304, %v252, -inf
      %549 = vmax.xlane.f32.xlu0 %v548
      %v550 = vpop.xlane.xlu0 %549
      %v551 = vsel %vm304, %v253, -inf
      %552 = vmax.xlane.f32.xlu0 %v551
      %v553 = vpop.xlane.xlu0 %552
      %v554 = vsel %vm304, %v254, -inf
      %555 = vmax.xlane.f32.xlu0 %v554
      %v556 = vpop.xlane.xlu0 %555
      %v557 = vsel %vm304, %v255, -inf
      %558 = vmax.xlane.f32.xlu0 %v557
      %v559 = vpop.xlane.xlu0 %558
      %v560 = vsel %vm304, %v256, -inf
      %561 = vmax.xlane.f32.xlu0 %v560
      %v562 = vpop.xlane.xlu0 %561
      %v563 = vsel %vm304, %v257, -inf
      %564 = vmax.xlane.f32.xlu0 %v563
      %v565 = vpop.xlane.xlu0 %564
      %v566 = vsel %vm304, %v258, -inf
      %567 = vmax.xlane.f32.xlu0 %v566
      %v568 = vpop.xlane.xlu0 %567
      %v569 = vsel %vm304, %v259, -inf
      %570 = vmax.xlane.f32.xlu0 %v569
      %v571 = vpop.xlane.xlu0 %570
      %v572 = vsel %vm304, %v260, -inf
      %573 = vmax.xlane.f32.xlu0 %v572
      %v574 = vpop.xlane.xlu0 %573
      %v575 = vsel %vm304, %v261, -inf
      %576 = vmax.xlane.f32.xlu0 %v575
      %v577 = vpop.xlane.xlu0 %576
      %v578 = vsel %vm304, %v262, -inf
      %579 = vmax.xlane.f32.xlu0 %v578
      %v580 = vpop.xlane.xlu0 %579
      %v581 = vsel %vm304, %v263, -inf
      %582 = vmax.xlane.f32.xlu0 %v581
      %v583 = vpop.xlane.xlu0 %582
      %v584 = vsel %vm304, %v264, -inf
      %585 = vmax.xlane.f32.xlu0 %v584
      %v586 = vpop.xlane.xlu0 %585
      %v587 = vsel %vm304, %v265, -inf
      %588 = vmax.xlane.f32.xlu0 %v587
      %v589 = vpop.xlane.xlu0 %588
      %v590 = vsel %vm304, %v266, -inf
      %591 = vmax.xlane.f32.xlu0 %v590
      %v592 = vpop.xlane.xlu0 %591
      %v593 = vsel %vm304, %v267, -inf
      %594 = vmax.xlane.f32.xlu0 %v593
      %v595 = vpop.xlane.xlu0 %594
      %v596 = vsel %vm304, %v268, -inf
      %597 = vmax.xlane.f32.xlu0 %v596
      %v598 = vpop.xlane.xlu0 %597
      %v599 = vsel %vm304, %v269, -inf
      %600 = vmax.xlane.f32.xlu0 %v599
      %v601 = vpop.xlane.xlu0 %600
      %v602 = vsel %vm304, %v270, -inf
      %603 = vmax.xlane.f32.xlu0 %v602
      %v604 = vpop.xlane.xlu0 %603
      %v605 = vsel %vm304, %v271, -inf
      %606 = vmax.xlane.f32.xlu0 %v605
      %v607 = vpop.xlane.xlu0 %606
      %v608 = vsel %vm304, %v272, -inf
      %609 = vmax.xlane.f32.xlu0 %v608
      %v610 = vpop.xlane.xlu0 %609
      %v611 = vsel %vm304, %v273, -inf
      %612 = vmax.xlane.f32.xlu0 %v611
      %v613 = vpop.xlane.xlu0 %612
      %v614 = vsel %vm304, %v274, -inf
      %615 = vmax.xlane.f32.xlu0 %v614
      %v616 = vpop.xlane.xlu0 %615
      %v617 = vsel %vm304, %v275, -inf
      %618 = vmax.xlane.f32.xlu0 %v617
      %v619 = vpop.xlane.xlu0 %618
      %v620 = vsel %vm304, %v276, -inf
      %621 = vmax.xlane.f32.xlu0 %v620
      %v622 = vpop.xlane.xlu0 %621
      %v623 = vsel %vm304, %v277, -inf
      %624 = vmax.xlane.f32.xlu0 %v623
      %v625 = vpop.xlane.xlu0 %624
      %v626 = vsel %vm304, %v278, -inf
      %627 = vmax.xlane.f32.xlu0 %v626
      %v628 = vpop.xlane.xlu0 %627
      %v629 = vsel %vm304, %v279, -inf
      %630 = vmax.xlane.f32.xlu0 %v629
      %v631 = vpop.xlane.xlu0 %630
      %v632 = vsel %vm304, %v280, -inf
      %633 = vmax.xlane.f32.xlu0 %v632
      %v634 = vpop.xlane.xlu0 %633
      %v635 = vsel %vm304, %v281, -inf
      %636 = vmax.xlane.f32.xlu0 %v635
      %v637 = vpop.xlane.xlu0 %636
      %v638 = vsel %vm304, %v282, -inf
      %639 = vmax.xlane.f32.xlu0 %v638
      %v640 = vpop.xlane.xlu0 %639
      %v641 = vsel %vm304, %v283, -inf
      %642 = vmax.xlane.f32.xlu0 %v641
      %v643 = vpop.xlane.xlu0 %642
      %v644 = vsel %vm304, %v284, -inf
      %645 = vmax.xlane.f32.xlu0 %v644
      %v646 = vpop.xlane.xlu0 %645
      %v647 = vsel %vm304, %v285, -inf
      %648 = vmax.xlane.f32.xlu0 %v647
      %v649 = vpop.xlane.xlu0 %648
      %v650 = vsel %vm304, %v286, -inf
      %651 = vmax.xlane.f32.xlu0 %v650
      %v652 = vpop.xlane.xlu0 %651
      %v653 = vsel %vm304, %v287, -inf
      %654 = vmax.xlane.f32.xlu0 %v653
      %v655 = vpop.xlane.xlu0 %654
      %v656 = vsel %vm304, %v288, -inf
      %657 = vmax.xlane.f32.xlu0 %v656
      %v658 = vpop.xlane.xlu0 %657
      %v659 = vsel %vm304, %v289, -inf
      %660 = vmax.xlane.f32.xlu0 %v659
      %v661 = vpop.xlane.xlu0 %660
      %v662 = vsel %vm304, %v290, -inf
      %663 = vmax.xlane.f32.xlu0 %v662
      %v664 = vpop.xlane.xlu0 %663
      %v665 = vsel %vm304, %v291, -inf
      %666 = vmax.xlane.f32.xlu0 %v665
      %v667 = vpop.xlane.xlu0 %666
      %v668 = vsel %vm304, %v292, -inf
      %669 = vmax.xlane.f32.xlu0 %v668
      %v670 = vpop.xlane.xlu0 %669
      %v671 = vsel %vm304, %v293, -inf
      %672 = vmax.xlane.f32.xlu0 %v671
      %v673 = vpop.xlane.xlu0 %672
      %v674 = vsel %vm304, %v294, -inf
      %675 = vmax.xlane.f32.xlu0 %v674
      %v676 = vpop.xlane.xlu0 %675
      %v677 = vsel %vm304, %v295, -inf
      %678 = vmax.xlane.f32.xlu0 %v677
      %v679 = vpop.xlane.xlu0 %678
      %v680 = vsel %vm304, %v296, -inf
      %681 = vmax.xlane.f32.xlu0 %v680
      %v682 = vpop.xlane.xlu0 %681
      %v683 = vsel %vm304, %v297, -inf
      %684 = vmax.xlane.f32.xlu0 %v683
      %v685 = vpop.xlane.xlu0 %684
      %v686 = vsel %vm304, %v298, -inf
      %687 = vmax.xlane.f32.xlu0 %v686
      %v688 = vpop.xlane.xlu0 %687
      %vm689 = vcmp.eq.f32.partialorder %v171, %v307
      %vm690 = vcmp.eq.f32.partialorder %v172, %v310
      %vm691 = vcmp.eq.f32.partialorder %v173, %v313
      %vm692 = vcmp.eq.f32.partialorder %v174, %v316
      %vm693 = vcmp.eq.f32.partialorder %v175, %v319
      %vm694 = vcmp.eq.f32.partialorder %v176, %v322
      %vm695 = vcmp.eq.f32.partialorder %v177, %v325
      %vm696 = vcmp.eq.f32.partialorder %v178, %v328
      %vm697 = vcmp.eq.f32.partialorder %v179, %v331
      %vm698 = vcmp.eq.f32.partialorder %v180, %v334
      %vm699 = vcmp.eq.f32.partialorder %v181, %v337
      %vm700 = vcmp.eq.f32.partialorder %v182, %v340
      %vm701 = vcmp.eq.f32.partialorder %v183, %v343
      %vm702 = vcmp.eq.f32.partialorder %v184, %v346
      %vm703 = vcmp.eq.f32.partialorder %v185, %v349
      %vm704 = vcmp.eq.f32.partialorder %v186, %v352
      %vm705 = vcmp.eq.f32.partialorder %v187, %v355
      %vm706 = vcmp.eq.f32.partialorder %v188, %v358
      %vm707 = vcmp.eq.f32.partialorder %v189, %v361
      %vm708 = vcmp.eq.f32.partialorder %v190, %v364
      %vm709 = vcmp.eq.f32.partialorder %v191, %v367
      %vm710 = vcmp.eq.f32.partialorder %v192, %v370
      %vm711 = vcmp.eq.f32.partialorder %v193, %v373
      %vm712 = vcmp.eq.f32.partialorder %v194, %v376
      %vm713 = vcmp.eq.f32.partialorder %v195, %v379
      %vm714 = vcmp.eq.f32.partialorder %v196, %v382
      %vm715 = vcmp.eq.f32.partialorder %v197, %v385
      %vm716 = vcmp.eq.f32.partialorder %v198, %v388
      %vm717 = vcmp.eq.f32.partialorder %v199, %v391
      %vm718 = vcmp.eq.f32.partialorder %v200, %v394
      %vm719 = vcmp.eq.f32.partialorder %v201, %v397
      %vm720 = vcmp.eq.f32.partialorder %v202, %v400
      %vm721 = vcmp.eq.f32.partialorder %v203, %v403
      %vm722 = vcmp.eq.f32.partialorder %v204, %v406
      %vm723 = vcmp.eq.f32.partialorder %v205, %v409
      %vm724 = vcmp.eq.f32.partialorder %v206, %v412
      %vm725 = vcmp.eq.f32.partialorder %v207, %v415
      %vm726 = vcmp.eq.f32.partialorder %v208, %v418
      %vm727 = vcmp.eq.f32.partialorder %v209, %v421
      %vm728 = vcmp.eq.f32.partialorder %v210, %v424
      %vm729 = vcmp.eq.f32.partialorder %v211, %v427
      %vm730 = vcmp.eq.f32.partialorder %v212, %v430
      %vm731 = vcmp.eq.f32.partialorder %v213, %v433
      %vm732 = vcmp.eq.f32.partialorder %v214, %v436
      %vm733 = vcmp.eq.f32.partialorder %v215, %v439
      %vm734 = vcmp.eq.f32.partialorder %v216, %v442
      %vm735 = vcmp.eq.f32.partialorder %v217, %v445
      %vm736 = vcmp.eq.f32.partialorder %v218, %v448
      %vm737 = vcmp.eq.f32.partialorder %v219, %v451
      %vm738 = vcmp.eq.f32.partialorder %v220, %v454
      %vm739 = vcmp.eq.f32.partialorder %v221, %v457
      %vm740 = vcmp.eq.f32.partialorder %v222, %v460
      %vm741 = vcmp.eq.f32.partialorder %v223, %v463
      %vm742 = vcmp.eq.f32.partialorder %v224, %v466
      %vm743 = vcmp.eq.f32.partialorder %v225, %v469
      %vm744 = vcmp.eq.f32.partialorder %v226, %v472
      %vm745 = vcmp.eq.f32.partialorder %v227, %v475
      %vm746 = vcmp.eq.f32.partialorder %v228, %v478
      %vm747 = vcmp.eq.f32.partialorder %v229, %v481
      %vm748 = vcmp.eq.f32.partialorder %v230, %v484
      %vm749 = vcmp.eq.f32.partialorder %v231, %v487
      %vm750 = vcmp.eq.f32.partialorder %v232, %v490
      %vm751 = vcmp.eq.f32.partialorder %v233, %v493
      %vm752 = vcmp.eq.f32.partialorder %v234, %v496
      %vm753 = vcmp.eq.f32.partialorder %v235, %v499
      %vm754 = vcmp.eq.f32.partialorder %v236, %v502
      %vm755 = vcmp.eq.f32.partialorder %v237, %v505
      %vm756 = vcmp.eq.f32.partialorder %v238, %v508
      %vm757 = vcmp.eq.f32.partialorder %v239, %v511
      %vm758 = vcmp.eq.f32.partialorder %v240, %v514
      %vm759 = vcmp.eq.f32.partialorder %v241, %v517
      %vm760 = vcmp.eq.f32.partialorder %v242, %v520
      %vm761 = vcmp.eq.f32.partialorder %v243, %v523
      %vm762 = vcmp.eq.f32.partialorder %v244, %v526
      %vm763 = vcmp.eq.f32.partialorder %v245, %v529
      %vm764 = vcmp.eq.f32.partialorder %v246, %v532
      %vm765 = vcmp.eq.f32.partialorder %v247, %v535
      %vm766 = vcmp.eq.f32.partialorder %v248, %v538
      %vm767 = vcmp.eq.f32.partialorder %v249, %v541
      %vm768 = vcmp.eq.f32.partialorder %v250, %v544
      %vm769 = vcmp.eq.f32.partialorder %v251, %v547
      %vm770 = vcmp.eq.f32.partialorder %v252, %v550
      %vm771 = vcmp.eq.f32.partialorder %v253, %v553
      %vm772 = vcmp.eq.f32.partialorder %v254, %v556
      %vm773 = vcmp.eq.f32.partialorder %v255, %v559
      %vm774 = vcmp.eq.f32.partialorder %v256, %v562
      %vm775 = vcmp.eq.f32.partialorder %v257, %v565
      %vm776 = vcmp.eq.f32.partialorder %v258, %v568
      %vm777 = vcmp.eq.f32.partialorder %v259, %v571
      %vm778 = vcmp.eq.f32.partialorder %v260, %v574
      %vm779 = vcmp.eq.f32.partialorder %v261, %v577
      %vm780 = vcmp.eq.f32.partialorder %v262, %v580
      %vm781 = vcmp.eq.f32.partialorder %v263, %v583
      %vm782 = vcmp.eq.f32.partialorder %v264, %v586
      %vm783 = vcmp.eq.f32.partialorder %v265, %v589
      %vm784 = vcmp.eq.f32.partialorder %v266, %v592
      %vm785 = vcmp.eq.f32.partialorder %v267, %v595
      %vm786 = vcmp.eq.f32.partialorder %v268, %v598
      %vm787 = vcmp.eq.f32.partialorder %v269, %v601
      %vm788 = vcmp.eq.f32.partialorder %v270, %v604
      %vm789 = vcmp.eq.f32.partialorder %v271, %v607
      %vm790 = vcmp.eq.f32.partialorder %v272, %v610
      %vm791 = vcmp.eq.f32.partialorder %v273, %v613
      %vm792 = vcmp.eq.f32.partialorder %v274, %v616
      %vm793 = vcmp.eq.f32.partialorder %v275, %v619
      %vm794 = vcmp.eq.f32.partialorder %v276, %v622
      %vm795 = vcmp.eq.f32.partialorder %v277, %v625
      %vm796 = vcmp.eq.f32.partialorder %v278, %v628
      %vm797 = vcmp.eq.f32.partialorder %v279, %v631
      %vm798 = vcmp.eq.f32.partialorder %v280, %v634
      %vm799 = vcmp.eq.f32.partialorder %v281, %v637
      %vm800 = vcmp.eq.f32.partialorder %v282, %v640
      %vm801 = vcmp.eq.f32.partialorder %v283, %v643
      %vm802 = vcmp.eq.f32.partialorder %v284, %v646
      %vm803 = vcmp.eq.f32.partialorder %v285, %v649
      %vm804 = vcmp.eq.f32.partialorder %v286, %v652
      %vm805 = vcmp.eq.f32.partialorder %v287, %v655
      %vm806 = vcmp.eq.f32.partialorder %v288, %v658
      %vm807 = vcmp.eq.f32.partialorder %v289, %v661
      %vm808 = vcmp.eq.f32.partialorder %v290, %v664
      %vm809 = vcmp.eq.f32.partialorder %v291, %v667
      %vm810 = vcmp.eq.f32.partialorder %v292, %v670
      %vm811 = vcmp.eq.f32.partialorder %v293, %v673
      %vm812 = vcmp.eq.f32.partialorder %v294, %v676
      %vm813 = vcmp.eq.f32.partialorder %v295, %v679
      %vm814 = vcmp.eq.f32.partialorder %v296, %v682
      %vm815 = vcmp.eq.f32.partialorder %v297, %v685
      %vm816 = vcmp.eq.f32.partialorder %v298, %v688
      %v817 = vsel %vm689, %v303, 64
      %v818 = vsel %vm690, %v303, 64
      %v819 = vsel %vm691, %v303, 64
      %v820 = vsel %vm692, %v303, 64
      %v821 = vsel %vm693, %v303, 64
      %v822 = vsel %vm694, %v303, 64
      %v823 = vsel %vm695, %v303, 64
      %v824 = vsel %vm696, %v303, 64
      %v825 = vsel %vm697, %v303, 64
      %v826 = vsel %vm698, %v303, 64
      %v827 = vsel %vm699, %v303, 64
      %v828 = vsel %vm700, %v303, 64
      %v829 = vsel %vm701, %v303, 64
      %v830 = vsel %vm702, %v303, 64
      %v831 = vsel %vm703, %v303, 64
      %v832 = vsel %vm704, %v303, 64
      %v833 = vsel %vm705, %v303, 64
      %v834 = vsel %vm706, %v303, 64
      %v835 = vsel %vm707, %v303, 64
      %v836 = vsel %vm708, %v303, 64
      %v837 = vsel %vm709, %v303, 64
      %v838 = vsel %vm710, %v303, 64
      %v839 = vsel %vm711, %v303, 64
      %v840 = vsel %vm712, %v303, 64
      %v841 = vsel %vm713, %v303, 64
      %v842 = vsel %vm714, %v303, 64
      %v843 = vsel %vm715, %v303, 64
      %v844 = vsel %vm716, %v303, 64
      %v845 = vsel %vm717, %v303, 64
      %v846 = vsel %vm718, %v303, 64
      %v847 = vsel %vm719, %v303, 64
      %v848 = vsel %vm720, %v303, 64
      %v849 = vsel %vm721, %v303, 64
      %v850 = vsel %vm722, %v303, 64
      %v851 = vsel %vm723, %v303, 64
      %v852 = vsel %vm724, %v303, 64
      %v853 = vsel %vm725, %v303, 64
      %v854 = vsel %vm726, %v303, 64
      %v855 = vsel %vm727, %v303, 64
      %v856 = vsel %vm728, %v303, 64
      %v857 = vsel %vm729, %v303, 64
      %v858 = vsel %vm730, %v303, 64
      %v859 = vsel %vm731, %v303, 64
      %v860 = vsel %vm732, %v303, 64
      %v861 = vsel %vm733, %v303, 64
      %v862 = vsel %vm734, %v303, 64
      %v863 = vsel %vm735, %v303, 64
      %v864 = vsel %vm736, %v303, 64
      %v865 = vsel %vm737, %v303, 64
      %v866 = vsel %vm738, %v303, 64
      %v867 = vsel %vm739, %v303, 64
      %v868 = vsel %vm740, %v303, 64
      %v869 = vsel %vm741, %v303, 64
      %v870 = vsel %vm742, %v303, 64
      %v871 = vsel %vm743, %v303, 64
      %v872 = vsel %vm744, %v303, 64
      %v873 = vsel %vm745, %v303, 64
      %v874 = vsel %vm746, %v303, 64
      %v875 = vsel %vm747, %v303, 64
      %v876 = vsel %vm748, %v303, 64
      %v877 = vsel %vm749, %v303, 64
      %v878 = vsel %vm750, %v303, 64
      %v879 = vsel %vm751, %v303, 64
      %v880 = vsel %vm752, %v303, 64
      %v881 = vsel %vm753, %v303, 64
      %v882 = vsel %vm754, %v303, 64
      %v883 = vsel %vm755, %v303, 64
      %v884 = vsel %vm756, %v303, 64
      %v885 = vsel %vm757, %v303, 64
      %v886 = vsel %vm758, %v303, 64
      %v887 = vsel %vm759, %v303, 64
      %v888 = vsel %vm760, %v303, 64
      %v889 = vsel %vm761, %v303, 64
      %v890 = vsel %vm762, %v303, 64
      %v891 = vsel %vm763, %v303, 64
      %v892 = vsel %vm764, %v303, 64
      %v893 = vsel %vm765, %v303, 64
      %v894 = vsel %vm766, %v303, 64
      %v895 = vsel %vm767, %v303, 64
      %v896 = vsel %vm768, %v303, 64
      %v897 = vsel %vm769, %v303, 64
      %v898 = vsel %vm770, %v303, 64
      %v899 = vsel %vm771, %v303, 64
      %v900 = vsel %vm772, %v303, 64
      %v901 = vsel %vm773, %v303, 64
      %v902 = vsel %vm774, %v303, 64
      %v903 = vsel %vm775, %v303, 64
      %v904 = vsel %vm776, %v303, 64
      %v905 = vsel %vm777, %v303, 64
      %v906 = vsel %vm778, %v303, 64
      %v907 = vsel %vm779, %v303, 64
      %v908 = vsel %vm780, %v303, 64
      %v909 = vsel %vm781, %v303, 64
      %v910 = vsel %vm782, %v303, 64
      %v911 = vsel %vm783, %v303, 64
      %v912 = vsel %vm784, %v303, 64
      %v913 = vsel %vm785, %v303, 64
      %v914 = vsel %vm786, %v303, 64
      %v915 = vsel %vm787, %v303, 64
      %v916 = vsel %vm788, %v303, 64
      %v917 = vsel %vm789, %v303, 64
      %v918 = vsel %vm790, %v303, 64
      %v919 = vsel %vm791, %v303, 64
      %v920 = vsel %vm792, %v303, 64
      %v921 = vsel %vm793, %v303, 64
      %v922 = vsel %vm794, %v303, 64
      %v923 = vsel %vm795, %v303, 64
      %v924 = vsel %vm796, %v303, 64
      %v925 = vsel %vm797, %v303, 64
      %v926 = vsel %vm798, %v303, 64
      %v927 = vsel %vm799, %v303, 64
      %v928 = vsel %vm800, %v303, 64
      %v929 = vsel %vm801, %v303, 64
      %v930 = vsel %vm802, %v303, 64
      %v931 = vsel %vm803, %v303, 64
      %v932 = vsel %vm804, %v303, 64
      %v933 = vsel %vm805, %v303, 64
      %v934 = vsel %vm806, %v303, 64
      %v935 = vsel %vm807, %v303, 64
      %v936 = vsel %vm808, %v303, 64
      %v937 = vsel %vm809, %v303, 64
      %v938 = vsel %vm810, %v303, 64
      %v939 = vsel %vm811, %v303, 64
      %v940 = vsel %vm812, %v303, 64
      %v941 = vsel %vm813, %v303, 64
      %v942 = vsel %vm814, %v303, 64
      %v943 = vsel %vm815, %v303, 64
      %v944 = vsel %vm816, %v303, 64
      %v945 = vsel %vm304, %v817, 2147483647
      %v946 = vand.u32 %v945, 65535
      %v947 = vshra.s32 %v945, 16
      %v948 = vcvt.s32.f32 %v946
      %v949 = vcvt.s32.f32 %v947
      %950 = vmin.xlane.f32.xlu0 %v949
      %v951 = vpop.xlane.xlu0 %950
      %vm952 = vcmp.eq.f32.partialorder %v949, %v951
      %v953 = vsel %vm952, %v948, inf
      %954 = vmin.xlane.f32.xlu0 %v953
      %v955 = vpop.xlane.xlu0 %954
      %v956 = vcvt.f32.s32 %v955
      %v957 = vcvt.f32.s32 %v951
      %v958 = vshll.u32 %v957, 16
      %v959 = vadd.s32 %v958, %v956
      %v960 = vsel %vm304, %v818, 2147483647
      %v961 = vand.u32 %v960, 65535
      %v962 = vshra.s32 %v960, 16
      %v963 = vcvt.s32.f32 %v961
      %v964 = vcvt.s32.f32 %v962
      %965 = vmin.xlane.f32.xlu0 %v964
      %v966 = vpop.xlane.xlu0 %965
      %vm967 = vcmp.eq.f32.partialorder %v964, %v966
      %v968 = vsel %vm967, %v963, inf
      %969 = vmin.xlane.f32.xlu0 %v968
      %v970 = vpop.xlane.xlu0 %969
      %v971 = vcvt.f32.s32 %v970
      %v972 = vcvt.f32.s32 %v966
      %v973 = vshll.u32 %v972, 16
      %v974 = vadd.s32 %v973, %v971
      %v975 = vsel %vm304, %v819, 2147483647
      %v976 = vand.u32 %v975, 65535
      %v977 = vshra.s32 %v975, 16
      %v978 = vcvt.s32.f32 %v976
      %v979 = vcvt.s32.f32 %v977
      %980 = vmin.xlane.f32.xlu0 %v979
      %v981 = vpop.xlane.xlu0 %980
      %vm982 = vcmp.eq.f32.partialorder %v979, %v981
      %v983 = vsel %vm982, %v978, inf
      %984 = vmin.xlane.f32.xlu0 %v983
      %v985 = vpop.xlane.xlu0 %984
      %v986 = vcvt.f32.s32 %v985
      %v987 = vcvt.f32.s32 %v981
      %v988 = vshll.u32 %v987, 16
      %v989 = vadd.s32 %v988, %v986
      %v990 = vsel %vm304, %v820, 2147483647
      %v991 = vand.u32 %v990, 65535
      %v992 = vshra.s32 %v990, 16
      %v993 = vcvt.s32.f32 %v991
      %v994 = vcvt.s32.f32 %v992
      %995 = vmin.xlane.f32.xlu0 %v994
      %v996 = vpop.xlane.xlu0 %995
      %vm997 = vcmp.eq.f32.partialorder %v994, %v996
      %v998 = vsel %vm997, %v993, inf
      %999 = vmin.xlane.f32.xlu0 %v998
      %v1000 = vpop.xlane.xlu0 %999
      %v1001 = vcvt.f32.s32 %v1000
      %v1002 = vcvt.f32.s32 %v996
      %v1003 = vshll.u32 %v1002, 16
      %v1004 = vadd.s32 %v1003, %v1001
      %v1005 = vsel %vm304, %v821, 2147483647
      %v1006 = vand.u32 %v1005, 65535
      %v1007 = vshra.s32 %v1005, 16
      %v1008 = vcvt.s32.f32 %v1006
      %v1009 = vcvt.s32.f32 %v1007
      %1010 = vmin.xlane.f32.xlu0 %v1009
      %v1011 = vpop.xlane.xlu0 %1010
      %vm1012 = vcmp.eq.f32.partialorder %v1009, %v1011
      %v1013 = vsel %vm1012, %v1008, inf
      %1014 = vmin.xlane.f32.xlu0 %v1013
      %v1015 = vpop.xlane.xlu0 %1014
      %v1016 = vcvt.f32.s32 %v1015
      %v1017 = vcvt.f32.s32 %v1011
      %v1018 = vshll.u32 %v1017, 16
      %v1019 = vadd.s32 %v1018, %v1016
      %v1020 = vsel %vm304, %v822, 2147483647
      %v1021 = vand.u32 %v1020, 65535
      %v1022 = vshra.s32 %v1020, 16
      %v1023 = vcvt.s32.f32 %v1021
      %v1024 = vcvt.s32.f32 %v1022
      %1025 = vmin.xlane.f32.xlu0 %v1024
      %v1026 = vpop.xlane.xlu0 %1025
      %vm1027 = vcmp.eq.f32.partialorder %v1024, %v1026
      %v1028 = vsel %vm1027, %v1023, inf
      %1029 = vmin.xlane.f32.xlu0 %v1028
      %v1030 = vpop.xlane.xlu0 %1029
      %v1031 = vcvt.f32.s32 %v1030
      %v1032 = vcvt.f32.s32 %v1026
      %v1033 = vshll.u32 %v1032, 16
      %v1034 = vadd.s32 %v1033, %v1031
      %v1035 = vsel %vm304, %v823, 2147483647
      %v1036 = vand.u32 %v1035, 65535
      %v1037 = vshra.s32 %v1035, 16
      %v1038 = vcvt.s32.f32 %v1036
      %v1039 = vcvt.s32.f32 %v1037
      %1040 = vmin.xlane.f32.xlu0 %v1039
      %v1041 = vpop.xlane.xlu0 %1040
      %vm1042 = vcmp.eq.f32.partialorder %v1039, %v1041
      %v1043 = vsel %vm1042, %v1038, inf
      %1044 = vmin.xlane.f32.xlu0 %v1043
      %v1045 = vpop.xlane.xlu0 %1044
      %v1046 = vcvt.f32.s32 %v1045
      %v1047 = vcvt.f32.s32 %v1041
      %v1048 = vshll.u32 %v1047, 16
      %v1049 = vadd.s32 %v1048, %v1046
      %v1050 = vsel %vm304, %v824, 2147483647
      %v1051 = vand.u32 %v1050, 65535
      %v1052 = vshra.s32 %v1050, 16
      %v1053 = vcvt.s32.f32 %v1051
      %v1054 = vcvt.s32.f32 %v1052
      %1055 = vmin.xlane.f32.xlu0 %v1054
      %v1056 = vpop.xlane.xlu0 %1055
      %vm1057 = vcmp.eq.f32.partialorder %v1054, %v1056
      %v1058 = vsel %vm1057, %v1053, inf
      %1059 = vmin.xlane.f32.xlu0 %v1058
      %v1060 = vpop.xlane.xlu0 %1059
      %v1061 = vcvt.f32.s32 %v1060
      %v1062 = vcvt.f32.s32 %v1056
      %v1063 = vshll.u32 %v1062, 16
      %v1064 = vadd.s32 %v1063, %v1061
      %v1065 = vsel %vm304, %v825, 2147483647
      %v1066 = vand.u32 %v1065, 65535
      %v1067 = vshra.s32 %v1065, 16
      %v1068 = vcvt.s32.f32 %v1066
      %v1069 = vcvt.s32.f32 %v1067
      %1070 = vmin.xlane.f32.xlu0 %v1069
      %v1071 = vpop.xlane.xlu0 %1070
      %vm1072 = vcmp.eq.f32.partialorder %v1069, %v1071
      %v1073 = vsel %vm1072, %v1068, inf
      %1074 = vmin.xlane.f32.xlu0 %v1073
      %v1075 = vpop.xlane.xlu0 %1074
      %v1076 = vcvt.f32.s32 %v1075
      %v1077 = vcvt.f32.s32 %v1071
      %v1078 = vshll.u32 %v1077, 16
      %v1079 = vadd.s32 %v1078, %v1076
      %v1080 = vsel %vm304, %v826, 2147483647
      %v1081 = vand.u32 %v1080, 65535
      %v1082 = vshra.s32 %v1080, 16
      %v1083 = vcvt.s32.f32 %v1081
      %v1084 = vcvt.s32.f32 %v1082
      %1085 = vmin.xlane.f32.xlu0 %v1084
      %v1086 = vpop.xlane.xlu0 %1085
      %vm1087 = vcmp.eq.f32.partialorder %v1084, %v1086
      %v1088 = vsel %vm1087, %v1083, inf
      %1089 = vmin.xlane.f32.xlu0 %v1088
      %v1090 = vpop.xlane.xlu0 %1089
      %v1091 = vcvt.f32.s32 %v1090
      %v1092 = vcvt.f32.s32 %v1086
      %v1093 = vshll.u32 %v1092, 16
      %v1094 = vadd.s32 %v1093, %v1091
      %v1095 = vsel %vm304, %v827, 2147483647
      %v1096 = vand.u32 %v1095, 65535
      %v1097 = vshra.s32 %v1095, 16
      %v1098 = vcvt.s32.f32 %v1096
      %v1099 = vcvt.s32.f32 %v1097
      %1100 = vmin.xlane.f32.xlu0 %v1099
      %v1101 = vpop.xlane.xlu0 %1100
      %vm1102 = vcmp.eq.f32.partialorder %v1099, %v1101
      %v1103 = vsel %vm1102, %v1098, inf
      %1104 = vmin.xlane.f32.xlu0 %v1103
      %v1105 = vpop.xlane.xlu0 %1104
      %v1106 = vcvt.f32.s32 %v1105
      %v1107 = vcvt.f32.s32 %v1101
      %v1108 = vshll.u32 %v1107, 16
      %v1109 = vadd.s32 %v1108, %v1106
      %v1110 = vsel %vm304, %v828, 2147483647
      %v1111 = vand.u32 %v1110, 65535
      %v1112 = vshra.s32 %v1110, 16
      %v1113 = vcvt.s32.f32 %v1111
      %v1114 = vcvt.s32.f32 %v1112
      %1115 = vmin.xlane.f32.xlu0 %v1114
      %v1116 = vpop.xlane.xlu0 %1115
      %vm1117 = vcmp.eq.f32.partialorder %v1114, %v1116
      %v1118 = vsel %vm1117, %v1113, inf
      %1119 = vmin.xlane.f32.xlu0 %v1118
      %v1120 = vpop.xlane.xlu0 %1119
      %v1121 = vcvt.f32.s32 %v1120
      %v1122 = vcvt.f32.s32 %v1116
      %v1123 = vshll.u32 %v1122, 16
      %v1124 = vadd.s32 %v1123, %v1121
      %v1125 = vsel %vm304, %v829, 2147483647
      %v1126 = vand.u32 %v1125, 65535
      %v1127 = vshra.s32 %v1125, 16
      %v1128 = vcvt.s32.f32 %v1126
      %v1129 = vcvt.s32.f32 %v1127
      %1130 = vmin.xlane.f32.xlu0 %v1129
      %v1131 = vpop.xlane.xlu0 %1130
      %vm1132 = vcmp.eq.f32.partialorder %v1129, %v1131
      %v1133 = vsel %vm1132, %v1128, inf
      %1134 = vmin.xlane.f32.xlu0 %v1133
      %v1135 = vpop.xlane.xlu0 %1134
      %v1136 = vcvt.f32.s32 %v1135
      %v1137 = vcvt.f32.s32 %v1131
      %v1138 = vshll.u32 %v1137, 16
      %v1139 = vadd.s32 %v1138, %v1136
      %v1140 = vsel %vm304, %v830, 2147483647
      %v1141 = vand.u32 %v1140, 65535
      %v1142 = vshra.s32 %v1140, 16
      %v1143 = vcvt.s32.f32 %v1141
      %v1144 = vcvt.s32.f32 %v1142
      %1145 = vmin.xlane.f32.xlu0 %v1144
      %v1146 = vpop.xlane.xlu0 %1145
      %vm1147 = vcmp.eq.f32.partialorder %v1144, %v1146
      %v1148 = vsel %vm1147, %v1143, inf
      %1149 = vmin.xlane.f32.xlu0 %v1148
      %v1150 = vpop.xlane.xlu0 %1149
      %v1151 = vcvt.f32.s32 %v1150
      %v1152 = vcvt.f32.s32 %v1146
      %v1153 = vshll.u32 %v1152, 16
      %v1154 = vadd.s32 %v1153, %v1151
      %v1155 = vsel %vm304, %v831, 2147483647
      %v1156 = vand.u32 %v1155, 65535
      %v1157 = vshra.s32 %v1155, 16
      %v1158 = vcvt.s32.f32 %v1156
      %v1159 = vcvt.s32.f32 %v1157
      %1160 = vmin.xlane.f32.xlu0 %v1159
      %v1161 = vpop.xlane.xlu0 %1160
      %vm1162 = vcmp.eq.f32.partialorder %v1159, %v1161
      %v1163 = vsel %vm1162, %v1158, inf
      %1164 = vmin.xlane.f32.xlu0 %v1163
      %v1165 = vpop.xlane.xlu0 %1164
      %v1166 = vcvt.f32.s32 %v1165
      %v1167 = vcvt.f32.s32 %v1161
      %v1168 = vshll.u32 %v1167, 16
      %v1169 = vadd.s32 %v1168, %v1166
      %v1170 = vsel %vm304, %v832, 2147483647
      %v1171 = vand.u32 %v1170, 65535
      %v1172 = vshra.s32 %v1170, 16
      %v1173 = vcvt.s32.f32 %v1171
      %v1174 = vcvt.s32.f32 %v1172
      %1175 = vmin.xlane.f32.xlu0 %v1174
      %v1176 = vpop.xlane.xlu0 %1175
      %vm1177 = vcmp.eq.f32.partialorder %v1174, %v1176
      %v1178 = vsel %vm1177, %v1173, inf
      %1179 = vmin.xlane.f32.xlu0 %v1178
      %v1180 = vpop.xlane.xlu0 %1179
      %v1181 = vcvt.f32.s32 %v1180
      %v1182 = vcvt.f32.s32 %v1176
      %v1183 = vshll.u32 %v1182, 16
      %v1184 = vadd.s32 %v1183, %v1181
      %v1185 = vsel %vm304, %v833, 2147483647
      %v1186 = vand.u32 %v1185, 65535
      %v1187 = vshra.s32 %v1185, 16
      %v1188 = vcvt.s32.f32 %v1186
      %v1189 = vcvt.s32.f32 %v1187
      %1190 = vmin.xlane.f32.xlu0 %v1189
      %v1191 = vpop.xlane.xlu0 %1190
      %vm1192 = vcmp.eq.f32.partialorder %v1189, %v1191
      %v1193 = vsel %vm1192, %v1188, inf
      %1194 = vmin.xlane.f32.xlu0 %v1193
      %v1195 = vpop.xlane.xlu0 %1194
      %v1196 = vcvt.f32.s32 %v1195
      %v1197 = vcvt.f32.s32 %v1191
      %v1198 = vshll.u32 %v1197, 16
      %v1199 = vadd.s32 %v1198, %v1196
      %v1200 = vsel %vm304, %v834, 2147483647
      %v1201 = vand.u32 %v1200, 65535
      %v1202 = vshra.s32 %v1200, 16
      %v1203 = vcvt.s32.f32 %v1201
      %v1204 = vcvt.s32.f32 %v1202
      %1205 = vmin.xlane.f32.xlu0 %v1204
      %v1206 = vpop.xlane.xlu0 %1205
      %vm1207 = vcmp.eq.f32.partialorder %v1204, %v1206
      %v1208 = vsel %vm1207, %v1203, inf
      %1209 = vmin.xlane.f32.xlu0 %v1208
      %v1210 = vpop.xlane.xlu0 %1209
      %v1211 = vcvt.f32.s32 %v1210
      %v1212 = vcvt.f32.s32 %v1206
      %v1213 = vshll.u32 %v1212, 16
      %v1214 = vadd.s32 %v1213, %v1211
      %v1215 = vsel %vm304, %v835, 2147483647
      %v1216 = vand.u32 %v1215, 65535
      %v1217 = vshra.s32 %v1215, 16
      %v1218 = vcvt.s32.f32 %v1216
      %v1219 = vcvt.s32.f32 %v1217
      %1220 = vmin.xlane.f32.xlu0 %v1219
      %v1221 = vpop.xlane.xlu0 %1220
      %vm1222 = vcmp.eq.f32.partialorder %v1219, %v1221
      %v1223 = vsel %vm1222, %v1218, inf
      %1224 = vmin.xlane.f32.xlu0 %v1223
      %v1225 = vpop.xlane.xlu0 %1224
      %v1226 = vcvt.f32.s32 %v1225
      %v1227 = vcvt.f32.s32 %v1221
      %v1228 = vshll.u32 %v1227, 16
      %v1229 = vadd.s32 %v1228, %v1226
      %v1230 = vsel %vm304, %v836, 2147483647
      %v1231 = vand.u32 %v1230, 65535
      %v1232 = vshra.s32 %v1230, 16
      %v1233 = vcvt.s32.f32 %v1231
      %v1234 = vcvt.s32.f32 %v1232
      %1235 = vmin.xlane.f32.xlu0 %v1234
      %v1236 = vpop.xlane.xlu0 %1235
      %vm1237 = vcmp.eq.f32.partialorder %v1234, %v1236
      %v1238 = vsel %vm1237, %v1233, inf
      %1239 = vmin.xlane.f32.xlu0 %v1238
      %v1240 = vpop.xlane.xlu0 %1239
      %v1241 = vcvt.f32.s32 %v1240
      %v1242 = vcvt.f32.s32 %v1236
      %v1243 = vshll.u32 %v1242, 16
      %v1244 = vadd.s32 %v1243, %v1241
      %v1245 = vsel %vm304, %v837, 2147483647
      %v1246 = vand.u32 %v1245, 65535
      %v1247 = vshra.s32 %v1245, 16
      %v1248 = vcvt.s32.f32 %v1246
      %v1249 = vcvt.s32.f32 %v1247
      %1250 = vmin.xlane.f32.xlu0 %v1249
      %v1251 = vpop.xlane.xlu0 %1250
      %vm1252 = vcmp.eq.f32.partialorder %v1249, %v1251
      %v1253 = vsel %vm1252, %v1248, inf
      %1254 = vmin.xlane.f32.xlu0 %v1253
      %v1255 = vpop.xlane.xlu0 %1254
      %v1256 = vcvt.f32.s32 %v1255
      %v1257 = vcvt.f32.s32 %v1251
      %v1258 = vshll.u32 %v1257, 16
      %v1259 = vadd.s32 %v1258, %v1256
      %v1260 = vsel %vm304, %v838, 2147483647
      %v1261 = vand.u32 %v1260, 65535
      %v1262 = vshra.s32 %v1260, 16
      %v1263 = vcvt.s32.f32 %v1261
      %v1264 = vcvt.s32.f32 %v1262
      %1265 = vmin.xlane.f32.xlu0 %v1264
      %v1266 = vpop.xlane.xlu0 %1265
      %vm1267 = vcmp.eq.f32.partialorder %v1264, %v1266
      %v1268 = vsel %vm1267, %v1263, inf
      %1269 = vmin.xlane.f32.xlu0 %v1268
      %v1270 = vpop.xlane.xlu0 %1269
      %v1271 = vcvt.f32.s32 %v1270
      %v1272 = vcvt.f32.s32 %v1266
      %v1273 = vshll.u32 %v1272, 16
      %v1274 = vadd.s32 %v1273, %v1271
      %v1275 = vsel %vm304, %v839, 2147483647
      %v1276 = vand.u32 %v1275, 65535
      %v1277 = vshra.s32 %v1275, 16
      %v1278 = vcvt.s32.f32 %v1276
      %v1279 = vcvt.s32.f32 %v1277
      %1280 = vmin.xlane.f32.xlu0 %v1279
      %v1281 = vpop.xlane.xlu0 %1280
      %vm1282 = vcmp.eq.f32.partialorder %v1279, %v1281
      %v1283 = vsel %vm1282, %v1278, inf
      %1284 = vmin.xlane.f32.xlu0 %v1283
      %v1285 = vpop.xlane.xlu0 %1284
      %v1286 = vcvt.f32.s32 %v1285
      %v1287 = vcvt.f32.s32 %v1281
      %v1288 = vshll.u32 %v1287, 16
      %v1289 = vadd.s32 %v1288, %v1286
      %v1290 = vsel %vm304, %v840, 2147483647
      %v1291 = vand.u32 %v1290, 65535
      %v1292 = vshra.s32 %v1290, 16
      %v1293 = vcvt.s32.f32 %v1291
      %v1294 = vcvt.s32.f32 %v1292
      %1295 = vmin.xlane.f32.xlu0 %v1294
      %v1296 = vpop.xlane.xlu0 %1295
      %vm1297 = vcmp.eq.f32.partialorder %v1294, %v1296
      %v1298 = vsel %vm1297, %v1293, inf
      %1299 = vmin.xlane.f32.xlu0 %v1298
      %v1300 = vpop.xlane.xlu0 %1299
      %v1301 = vcvt.f32.s32 %v1300
      %v1302 = vcvt.f32.s32 %v1296
      %v1303 = vshll.u32 %v1302, 16
      %v1304 = vadd.s32 %v1303, %v1301
      %v1305 = vsel %vm304, %v841, 2147483647
      %v1306 = vand.u32 %v1305, 65535
      %v1307 = vshra.s32 %v1305, 16
      %v1308 = vcvt.s32.f32 %v1306
      %v1309 = vcvt.s32.f32 %v1307
      %1310 = vmin.xlane.f32.xlu0 %v1309
      %v1311 = vpop.xlane.xlu0 %1310
      %vm1312 = vcmp.eq.f32.partialorder %v1309, %v1311
      %v1313 = vsel %vm1312, %v1308, inf
      %1314 = vmin.xlane.f32.xlu0 %v1313
      %v1315 = vpop.xlane.xlu0 %1314
      %v1316 = vcvt.f32.s32 %v1315
      %v1317 = vcvt.f32.s32 %v1311
      %v1318 = vshll.u32 %v1317, 16
      %v1319 = vadd.s32 %v1318, %v1316
      %v1320 = vsel %vm304, %v842, 2147483647
      %v1321 = vand.u32 %v1320, 65535
      %v1322 = vshra.s32 %v1320, 16
      %v1323 = vcvt.s32.f32 %v1321
      %v1324 = vcvt.s32.f32 %v1322
      %1325 = vmin.xlane.f32.xlu0 %v1324
      %v1326 = vpop.xlane.xlu0 %1325
      %vm1327 = vcmp.eq.f32.partialorder %v1324, %v1326
      %v1328 = vsel %vm1327, %v1323, inf
      %1329 = vmin.xlane.f32.xlu0 %v1328
      %v1330 = vpop.xlane.xlu0 %1329
      %v1331 = vcvt.f32.s32 %v1330
      %v1332 = vcvt.f32.s32 %v1326
      %v1333 = vshll.u32 %v1332, 16
      %v1334 = vadd.s32 %v1333, %v1331
      %v1335 = vsel %vm304, %v843, 2147483647
      %v1336 = vand.u32 %v1335, 65535
      %v1337 = vshra.s32 %v1335, 16
      %v1338 = vcvt.s32.f32 %v1336
      %v1339 = vcvt.s32.f32 %v1337
      %1340 = vmin.xlane.f32.xlu0 %v1339
      %v1341 = vpop.xlane.xlu0 %1340
      %vm1342 = vcmp.eq.f32.partialorder %v1339, %v1341
      %v1343 = vsel %vm1342, %v1338, inf
      %1344 = vmin.xlane.f32.xlu0 %v1343
      %v1345 = vpop.xlane.xlu0 %1344
      %v1346 = vcvt.f32.s32 %v1345
      %v1347 = vcvt.f32.s32 %v1341
      %v1348 = vshll.u32 %v1347, 16
      %v1349 = vadd.s32 %v1348, %v1346
      %v1350 = vsel %vm304, %v844, 2147483647
      %v1351 = vand.u32 %v1350, 65535
      %v1352 = vshra.s32 %v1350, 16
      %v1353 = vcvt.s32.f32 %v1351
      %v1354 = vcvt.s32.f32 %v1352
      %1355 = vmin.xlane.f32.xlu0 %v1354
      %v1356 = vpop.xlane.xlu0 %1355
      %vm1357 = vcmp.eq.f32.partialorder %v1354, %v1356
      %v1358 = vsel %vm1357, %v1353, inf
      %1359 = vmin.xlane.f32.xlu0 %v1358
      %v1360 = vpop.xlane.xlu0 %1359
      %v1361 = vcvt.f32.s32 %v1360
      %v1362 = vcvt.f32.s32 %v1356
      %v1363 = vshll.u32 %v1362, 16
      %v1364 = vadd.s32 %v1363, %v1361
      %v1365 = vsel %vm304, %v845, 2147483647
      %v1366 = vand.u32 %v1365, 65535
      %v1367 = vshra.s32 %v1365, 16
      %v1368 = vcvt.s32.f32 %v1366
      %v1369 = vcvt.s32.f32 %v1367
      %1370 = vmin.xlane.f32.xlu0 %v1369
      %v1371 = vpop.xlane.xlu0 %1370
      %vm1372 = vcmp.eq.f32.partialorder %v1369, %v1371
      %v1373 = vsel %vm1372, %v1368, inf
      %1374 = vmin.xlane.f32.xlu0 %v1373
      %v1375 = vpop.xlane.xlu0 %1374
      %v1376 = vcvt.f32.s32 %v1375
      %v1377 = vcvt.f32.s32 %v1371
      %v1378 = vshll.u32 %v1377, 16
      %v1379 = vadd.s32 %v1378, %v1376
      %v1380 = vsel %vm304, %v846, 2147483647
      %v1381 = vand.u32 %v1380, 65535
      %v1382 = vshra.s32 %v1380, 16
      %v1383 = vcvt.s32.f32 %v1381
      %v1384 = vcvt.s32.f32 %v1382
      %1385 = vmin.xlane.f32.xlu0 %v1384
      %v1386 = vpop.xlane.xlu0 %1385
      %vm1387 = vcmp.eq.f32.partialorder %v1384, %v1386
      %v1388 = vsel %vm1387, %v1383, inf
      %1389 = vmin.xlane.f32.xlu0 %v1388
      %v1390 = vpop.xlane.xlu0 %1389
      %v1391 = vcvt.f32.s32 %v1390
      %v1392 = vcvt.f32.s32 %v1386
      %v1393 = vshll.u32 %v1392, 16
      %v1394 = vadd.s32 %v1393, %v1391
      %v1395 = vsel %vm304, %v847, 2147483647
      %v1396 = vand.u32 %v1395, 65535
      %v1397 = vshra.s32 %v1395, 16
      %v1398 = vcvt.s32.f32 %v1396
      %v1399 = vcvt.s32.f32 %v1397
      %1400 = vmin.xlane.f32.xlu0 %v1399
      %v1401 = vpop.xlane.xlu0 %1400
      %vm1402 = vcmp.eq.f32.partialorder %v1399, %v1401
      %v1403 = vsel %vm1402, %v1398, inf
      %1404 = vmin.xlane.f32.xlu0 %v1403
      %v1405 = vpop.xlane.xlu0 %1404
      %v1406 = vcvt.f32.s32 %v1405
      %v1407 = vcvt.f32.s32 %v1401
      %v1408 = vshll.u32 %v1407, 16
      %v1409 = vadd.s32 %v1408, %v1406
      %v1410 = vsel %vm304, %v848, 2147483647
      %v1411 = vand.u32 %v1410, 65535
      %v1412 = vshra.s32 %v1410, 16
      %v1413 = vcvt.s32.f32 %v1411
      %v1414 = vcvt.s32.f32 %v1412
      %1415 = vmin.xlane.f32.xlu0 %v1414
      %v1416 = vpop.xlane.xlu0 %1415
      %vm1417 = vcmp.eq.f32.partialorder %v1414, %v1416
      %v1418 = vsel %vm1417, %v1413, inf
      %1419 = vmin.xlane.f32.xlu0 %v1418
      %v1420 = vpop.xlane.xlu0 %1419
      %v1421 = vcvt.f32.s32 %v1420
      %v1422 = vcvt.f32.s32 %v1416
      %v1423 = vshll.u32 %v1422, 16
      %v1424 = vadd.s32 %v1423, %v1421
      %v1425 = vsel %vm304, %v849, 2147483647
      %v1426 = vand.u32 %v1425, 65535
      %v1427 = vshra.s32 %v1425, 16
      %v1428 = vcvt.s32.f32 %v1426
      %v1429 = vcvt.s32.f32 %v1427
      %1430 = vmin.xlane.f32.xlu0 %v1429
      %v1431 = vpop.xlane.xlu0 %1430
      %vm1432 = vcmp.eq.f32.partialorder %v1429, %v1431
      %v1433 = vsel %vm1432, %v1428, inf
      %1434 = vmin.xlane.f32.xlu0 %v1433
      %v1435 = vpop.xlane.xlu0 %1434
      %v1436 = vcvt.f32.s32 %v1435
      %v1437 = vcvt.f32.s32 %v1431
      %v1438 = vshll.u32 %v1437, 16
      %v1439 = vadd.s32 %v1438, %v1436
      %v1440 = vsel %vm304, %v850, 2147483647
      %v1441 = vand.u32 %v1440, 65535
      %v1442 = vshra.s32 %v1440, 16
      %v1443 = vcvt.s32.f32 %v1441
      %v1444 = vcvt.s32.f32 %v1442
      %1445 = vmin.xlane.f32.xlu0 %v1444
      %v1446 = vpop.xlane.xlu0 %1445
      %vm1447 = vcmp.eq.f32.partialorder %v1444, %v1446
      %v1448 = vsel %vm1447, %v1443, inf
      %1449 = vmin.xlane.f32.xlu0 %v1448
      %v1450 = vpop.xlane.xlu0 %1449
      %v1451 = vcvt.f32.s32 %v1450
      %v1452 = vcvt.f32.s32 %v1446
      %v1453 = vshll.u32 %v1452, 16
      %v1454 = vadd.s32 %v1453, %v1451
      %v1455 = vsel %vm304, %v851, 2147483647
      %v1456 = vand.u32 %v1455, 65535
      %v1457 = vshra.s32 %v1455, 16
      %v1458 = vcvt.s32.f32 %v1456
      %v1459 = vcvt.s32.f32 %v1457
      %1460 = vmin.xlane.f32.xlu0 %v1459
      %v1461 = vpop.xlane.xlu0 %1460
      %vm1462 = vcmp.eq.f32.partialorder %v1459, %v1461
      %v1463 = vsel %vm1462, %v1458, inf
      %1464 = vmin.xlane.f32.xlu0 %v1463
      %v1465 = vpop.xlane.xlu0 %1464
      %v1466 = vcvt.f32.s32 %v1465
      %v1467 = vcvt.f32.s32 %v1461
      %v1468 = vshll.u32 %v1467, 16
      %v1469 = vadd.s32 %v1468, %v1466
      %v1470 = vsel %vm304, %v852, 2147483647
      %v1471 = vand.u32 %v1470, 65535
      %v1472 = vshra.s32 %v1470, 16
      %v1473 = vcvt.s32.f32 %v1471
      %v1474 = vcvt.s32.f32 %v1472
      %1475 = vmin.xlane.f32.xlu0 %v1474
      %v1476 = vpop.xlane.xlu0 %1475
      %vm1477 = vcmp.eq.f32.partialorder %v1474, %v1476
      %v1478 = vsel %vm1477, %v1473, inf
      %1479 = vmin.xlane.f32.xlu0 %v1478
      %v1480 = vpop.xlane.xlu0 %1479
      %v1481 = vcvt.f32.s32 %v1480
      %v1482 = vcvt.f32.s32 %v1476
      %v1483 = vshll.u32 %v1482, 16
      %v1484 = vadd.s32 %v1483, %v1481
      %v1485 = vsel %vm304, %v853, 2147483647
      %v1486 = vand.u32 %v1485, 65535
      %v1487 = vshra.s32 %v1485, 16
      %v1488 = vcvt.s32.f32 %v1486
      %v1489 = vcvt.s32.f32 %v1487
      %1490 = vmin.xlane.f32.xlu0 %v1489
      %v1491 = vpop.xlane.xlu0 %1490
      %vm1492 = vcmp.eq.f32.partialorder %v1489, %v1491
      %v1493 = vsel %vm1492, %v1488, inf
      %1494 = vmin.xlane.f32.xlu0 %v1493
      %v1495 = vpop.xlane.xlu0 %1494
      %v1496 = vcvt.f32.s32 %v1495
      %v1497 = vcvt.f32.s32 %v1491
      %v1498 = vshll.u32 %v1497, 16
      %v1499 = vadd.s32 %v1498, %v1496
      %v1500 = vsel %vm304, %v854, 2147483647
      %v1501 = vand.u32 %v1500, 65535
      %v1502 = vshra.s32 %v1500, 16
      %v1503 = vcvt.s32.f32 %v1501
      %v1504 = vcvt.s32.f32 %v1502
      %1505 = vmin.xlane.f32.xlu0 %v1504
      %v1506 = vpop.xlane.xlu0 %1505
      %vm1507 = vcmp.eq.f32.partialorder %v1504, %v1506
      %v1508 = vsel %vm1507, %v1503, inf
      %1509 = vmin.xlane.f32.xlu0 %v1508
      %v1510 = vpop.xlane.xlu0 %1509
      %v1511 = vcvt.f32.s32 %v1510
      %v1512 = vcvt.f32.s32 %v1506
      %v1513 = vshll.u32 %v1512, 16
      %v1514 = vadd.s32 %v1513, %v1511
      %v1515 = vsel %vm304, %v855, 2147483647
      %v1516 = vand.u32 %v1515, 65535
      %v1517 = vshra.s32 %v1515, 16
      %v1518 = vcvt.s32.f32 %v1516
      %v1519 = vcvt.s32.f32 %v1517
      %1520 = vmin.xlane.f32.xlu0 %v1519
      %v1521 = vpop.xlane.xlu0 %1520
      %vm1522 = vcmp.eq.f32.partialorder %v1519, %v1521
      %v1523 = vsel %vm1522, %v1518, inf
      %1524 = vmin.xlane.f32.xlu0 %v1523
      %v1525 = vpop.xlane.xlu0 %1524
      %v1526 = vcvt.f32.s32 %v1525
      %v1527 = vcvt.f32.s32 %v1521
      %v1528 = vshll.u32 %v1527, 16
      %v1529 = vadd.s32 %v1528, %v1526
      %v1530 = vsel %vm304, %v856, 2147483647
      %v1531 = vand.u32 %v1530, 65535
      %v1532 = vshra.s32 %v1530, 16
      %v1533 = vcvt.s32.f32 %v1531
      %v1534 = vcvt.s32.f32 %v1532
      %1535 = vmin.xlane.f32.xlu0 %v1534
      %v1536 = vpop.xlane.xlu0 %1535
      %vm1537 = vcmp.eq.f32.partialorder %v1534, %v1536
      %v1538 = vsel %vm1537, %v1533, inf
      %1539 = vmin.xlane.f32.xlu0 %v1538
      %v1540 = vpop.xlane.xlu0 %1539
      %v1541 = vcvt.f32.s32 %v1540
      %v1542 = vcvt.f32.s32 %v1536
      %v1543 = vshll.u32 %v1542, 16
      %v1544 = vadd.s32 %v1543, %v1541
      %v1545 = vsel %vm304, %v857, 2147483647
      %v1546 = vand.u32 %v1545, 65535
      %v1547 = vshra.s32 %v1545, 16
      %v1548 = vcvt.s32.f32 %v1546
      %v1549 = vcvt.s32.f32 %v1547
      %1550 = vmin.xlane.f32.xlu0 %v1549
      %v1551 = vpop.xlane.xlu0 %1550
      %vm1552 = vcmp.eq.f32.partialorder %v1549, %v1551
      %v1553 = vsel %vm1552, %v1548, inf
      %1554 = vmin.xlane.f32.xlu0 %v1553
      %v1555 = vpop.xlane.xlu0 %1554
      %v1556 = vcvt.f32.s32 %v1555
      %v1557 = vcvt.f32.s32 %v1551
      %v1558 = vshll.u32 %v1557, 16
      %v1559 = vadd.s32 %v1558, %v1556
      %v1560 = vsel %vm304, %v858, 2147483647
      %v1561 = vand.u32 %v1560, 65535
      %v1562 = vshra.s32 %v1560, 16
      %v1563 = vcvt.s32.f32 %v1561
      %v1564 = vcvt.s32.f32 %v1562
      %1565 = vmin.xlane.f32.xlu0 %v1564
      %v1566 = vpop.xlane.xlu0 %1565
      %vm1567 = vcmp.eq.f32.partialorder %v1564, %v1566
      %v1568 = vsel %vm1567, %v1563, inf
      %1569 = vmin.xlane.f32.xlu0 %v1568
      %v1570 = vpop.xlane.xlu0 %1569
      %v1571 = vcvt.f32.s32 %v1570
      %v1572 = vcvt.f32.s32 %v1566
      %v1573 = vshll.u32 %v1572, 16
      %v1574 = vadd.s32 %v1573, %v1571
      %v1575 = vsel %vm304, %v859, 2147483647
      %v1576 = vand.u32 %v1575, 65535
      %v1577 = vshra.s32 %v1575, 16
      %v1578 = vcvt.s32.f32 %v1576
      %v1579 = vcvt.s32.f32 %v1577
      %1580 = vmin.xlane.f32.xlu0 %v1579
      %v1581 = vpop.xlane.xlu0 %1580
      %vm1582 = vcmp.eq.f32.partialorder %v1579, %v1581
      %v1583 = vsel %vm1582, %v1578, inf
      %1584 = vmin.xlane.f32.xlu0 %v1583
      %v1585 = vpop.xlane.xlu0 %1584
      %v1586 = vcvt.f32.s32 %v1585
      %v1587 = vcvt.f32.s32 %v1581
      %v1588 = vshll.u32 %v1587, 16
      %v1589 = vadd.s32 %v1588, %v1586
      %v1590 = vsel %vm304, %v860, 2147483647
      %v1591 = vand.u32 %v1590, 65535
      %v1592 = vshra.s32 %v1590, 16
      %v1593 = vcvt.s32.f32 %v1591
      %v1594 = vcvt.s32.f32 %v1592
      %1595 = vmin.xlane.f32.xlu0 %v1594
      %v1596 = vpop.xlane.xlu0 %1595
      %vm1597 = vcmp.eq.f32.partialorder %v1594, %v1596
      %v1598 = vsel %vm1597, %v1593, inf
      %1599 = vmin.xlane.f32.xlu0 %v1598
      %v1600 = vpop.xlane.xlu0 %1599
      %v1601 = vcvt.f32.s32 %v1600
      %v1602 = vcvt.f32.s32 %v1596
      %v1603 = vshll.u32 %v1602, 16
      %v1604 = vadd.s32 %v1603, %v1601
      %v1605 = vsel %vm304, %v861, 2147483647
      %v1606 = vand.u32 %v1605, 65535
      %v1607 = vshra.s32 %v1605, 16
      %v1608 = vcvt.s32.f32 %v1606
      %v1609 = vcvt.s32.f32 %v1607
      %1610 = vmin.xlane.f32.xlu0 %v1609
      %v1611 = vpop.xlane.xlu0 %1610
      %vm1612 = vcmp.eq.f32.partialorder %v1609, %v1611
      %v1613 = vsel %vm1612, %v1608, inf
      %1614 = vmin.xlane.f32.xlu0 %v1613
      %v1615 = vpop.xlane.xlu0 %1614
      %v1616 = vcvt.f32.s32 %v1615
      %v1617 = vcvt.f32.s32 %v1611
      %v1618 = vshll.u32 %v1617, 16
      %v1619 = vadd.s32 %v1618, %v1616
      %v1620 = vsel %vm304, %v862, 2147483647
      %v1621 = vand.u32 %v1620, 65535
      %v1622 = vshra.s32 %v1620, 16
      %v1623 = vcvt.s32.f32 %v1621
      %v1624 = vcvt.s32.f32 %v1622
      %1625 = vmin.xlane.f32.xlu0 %v1624
      %v1626 = vpop.xlane.xlu0 %1625
      %vm1627 = vcmp.eq.f32.partialorder %v1624, %v1626
      %v1628 = vsel %vm1627, %v1623, inf
      %1629 = vmin.xlane.f32.xlu0 %v1628
      %v1630 = vpop.xlane.xlu0 %1629
      %v1631 = vcvt.f32.s32 %v1630
      %v1632 = vcvt.f32.s32 %v1626
      %v1633 = vshll.u32 %v1632, 16
      %v1634 = vadd.s32 %v1633, %v1631
      %v1635 = vsel %vm304, %v863, 2147483647
      %v1636 = vand.u32 %v1635, 65535
      %v1637 = vshra.s32 %v1635, 16
      %v1638 = vcvt.s32.f32 %v1636
      %v1639 = vcvt.s32.f32 %v1637
      %1640 = vmin.xlane.f32.xlu0 %v1639
      %v1641 = vpop.xlane.xlu0 %1640
      %vm1642 = vcmp.eq.f32.partialorder %v1639, %v1641
      %v1643 = vsel %vm1642, %v1638, inf
      %1644 = vmin.xlane.f32.xlu0 %v1643
      %v1645 = vpop.xlane.xlu0 %1644
      %v1646 = vcvt.f32.s32 %v1645
      %v1647 = vcvt.f32.s32 %v1641
      %v1648 = vshll.u32 %v1647, 16
      %v1649 = vadd.s32 %v1648, %v1646
      %v1650 = vsel %vm304, %v864, 2147483647
      %v1651 = vand.u32 %v1650, 65535
      %v1652 = vshra.s32 %v1650, 16
      %v1653 = vcvt.s32.f32 %v1651
      %v1654 = vcvt.s32.f32 %v1652
      %1655 = vmin.xlane.f32.xlu0 %v1654
      %v1656 = vpop.xlane.xlu0 %1655
      %vm1657 = vcmp.eq.f32.partialorder %v1654, %v1656
      %v1658 = vsel %vm1657, %v1653, inf
      %1659 = vmin.xlane.f32.xlu0 %v1658
      %v1660 = vpop.xlane.xlu0 %1659
      %v1661 = vcvt.f32.s32 %v1660
      %v1662 = vcvt.f32.s32 %v1656
      %v1663 = vshll.u32 %v1662, 16
      %v1664 = vadd.s32 %v1663, %v1661
      %v1665 = vsel %vm304, %v865, 2147483647
      %v1666 = vand.u32 %v1665, 65535
      %v1667 = vshra.s32 %v1665, 16
      %v1668 = vcvt.s32.f32 %v1666
      %v1669 = vcvt.s32.f32 %v1667
      %1670 = vmin.xlane.f32.xlu0 %v1669
      %v1671 = vpop.xlane.xlu0 %1670
      %vm1672 = vcmp.eq.f32.partialorder %v1669, %v1671
      %v1673 = vsel %vm1672, %v1668, inf
      %1674 = vmin.xlane.f32.xlu0 %v1673
      %v1675 = vpop.xlane.xlu0 %1674
      %v1676 = vcvt.f32.s32 %v1675
      %v1677 = vcvt.f32.s32 %v1671
      %v1678 = vshll.u32 %v1677, 16
      %v1679 = vadd.s32 %v1678, %v1676
      %v1680 = vsel %vm304, %v866, 2147483647
      %v1681 = vand.u32 %v1680, 65535
      %v1682 = vshra.s32 %v1680, 16
      %v1683 = vcvt.s32.f32 %v1681
      %v1684 = vcvt.s32.f32 %v1682
      %1685 = vmin.xlane.f32.xlu0 %v1684
      %v1686 = vpop.xlane.xlu0 %1685
      %vm1687 = vcmp.eq.f32.partialorder %v1684, %v1686
      %v1688 = vsel %vm1687, %v1683, inf
      %1689 = vmin.xlane.f32.xlu0 %v1688
      %v1690 = vpop.xlane.xlu0 %1689
      %v1691 = vcvt.f32.s32 %v1690
      %v1692 = vcvt.f32.s32 %v1686
      %v1693 = vshll.u32 %v1692, 16
      %v1694 = vadd.s32 %v1693, %v1691
      %v1695 = vsel %vm304, %v867, 2147483647
      %v1696 = vand.u32 %v1695, 65535
      %v1697 = vshra.s32 %v1695, 16
      %v1698 = vcvt.s32.f32 %v1696
      %v1699 = vcvt.s32.f32 %v1697
      %1700 = vmin.xlane.f32.xlu0 %v1699
      %v1701 = vpop.xlane.xlu0 %1700
      %vm1702 = vcmp.eq.f32.partialorder %v1699, %v1701
      %v1703 = vsel %vm1702, %v1698, inf
      %1704 = vmin.xlane.f32.xlu0 %v1703
      %v1705 = vpop.xlane.xlu0 %1704
      %v1706 = vcvt.f32.s32 %v1705
      %v1707 = vcvt.f32.s32 %v1701
      %v1708 = vshll.u32 %v1707, 16
      %v1709 = vadd.s32 %v1708, %v1706
      %v1710 = vsel %vm304, %v868, 2147483647
      %v1711 = vand.u32 %v1710, 65535
      %v1712 = vshra.s32 %v1710, 16
      %v1713 = vcvt.s32.f32 %v1711
      %v1714 = vcvt.s32.f32 %v1712
      %1715 = vmin.xlane.f32.xlu0 %v1714
      %v1716 = vpop.xlane.xlu0 %1715
      %vm1717 = vcmp.eq.f32.partialorder %v1714, %v1716
      %v1718 = vsel %vm1717, %v1713, inf
      %1719 = vmin.xlane.f32.xlu0 %v1718
      %v1720 = vpop.xlane.xlu0 %1719
      %v1721 = vcvt.f32.s32 %v1720
      %v1722 = vcvt.f32.s32 %v1716
      %v1723 = vshll.u32 %v1722, 16
      %v1724 = vadd.s32 %v1723, %v1721
      %v1725 = vsel %vm304, %v869, 2147483647
      %v1726 = vand.u32 %v1725, 65535
      %v1727 = vshra.s32 %v1725, 16
      %v1728 = vcvt.s32.f32 %v1726
      %v1729 = vcvt.s32.f32 %v1727
      %1730 = vmin.xlane.f32.xlu0 %v1729
      %v1731 = vpop.xlane.xlu0 %1730
      %vm1732 = vcmp.eq.f32.partialorder %v1729, %v1731
      %v1733 = vsel %vm1732, %v1728, inf
      %1734 = vmin.xlane.f32.xlu0 %v1733
      %v1735 = vpop.xlane.xlu0 %1734
      %v1736 = vcvt.f32.s32 %v1735
      %v1737 = vcvt.f32.s32 %v1731
      %v1738 = vshll.u32 %v1737, 16
      %v1739 = vadd.s32 %v1738, %v1736
      %v1740 = vsel %vm304, %v870, 2147483647
      %v1741 = vand.u32 %v1740, 65535
      %v1742 = vshra.s32 %v1740, 16
      %v1743 = vcvt.s32.f32 %v1741
      %v1744 = vcvt.s32.f32 %v1742
      %1745 = vmin.xlane.f32.xlu0 %v1744
      %v1746 = vpop.xlane.xlu0 %1745
      %vm1747 = vcmp.eq.f32.partialorder %v1744, %v1746
      %v1748 = vsel %vm1747, %v1743, inf
      %1749 = vmin.xlane.f32.xlu0 %v1748
      %v1750 = vpop.xlane.xlu0 %1749
      %v1751 = vcvt.f32.s32 %v1750
      %v1752 = vcvt.f32.s32 %v1746
      %v1753 = vshll.u32 %v1752, 16
      %v1754 = vadd.s32 %v1753, %v1751
      %v1755 = vsel %vm304, %v871, 2147483647
      %v1756 = vand.u32 %v1755, 65535
      %v1757 = vshra.s32 %v1755, 16
      %v1758 = vcvt.s32.f32 %v1756
      %v1759 = vcvt.s32.f32 %v1757
      %1760 = vmin.xlane.f32.xlu0 %v1759
      %v1761 = vpop.xlane.xlu0 %1760
      %vm1762 = vcmp.eq.f32.partialorder %v1759, %v1761
      %v1763 = vsel %vm1762, %v1758, inf
      %1764 = vmin.xlane.f32.xlu0 %v1763
      %v1765 = vpop.xlane.xlu0 %1764
      %v1766 = vcvt.f32.s32 %v1765
      %v1767 = vcvt.f32.s32 %v1761
      %v1768 = vshll.u32 %v1767, 16
      %v1769 = vadd.s32 %v1768, %v1766
      %v1770 = vsel %vm304, %v872, 2147483647
      %v1771 = vand.u32 %v1770, 65535
      %v1772 = vshra.s32 %v1770, 16
      %v1773 = vcvt.s32.f32 %v1771
      %v1774 = vcvt.s32.f32 %v1772
      %1775 = vmin.xlane.f32.xlu0 %v1774
      %v1776 = vpop.xlane.xlu0 %1775
      %vm1777 = vcmp.eq.f32.partialorder %v1774, %v1776
      %v1778 = vsel %vm1777, %v1773, inf
      %1779 = vmin.xlane.f32.xlu0 %v1778
      %v1780 = vpop.xlane.xlu0 %1779
      %v1781 = vcvt.f32.s32 %v1780
      %v1782 = vcvt.f32.s32 %v1776
      %v1783 = vshll.u32 %v1782, 16
      %v1784 = vadd.s32 %v1783, %v1781
      %v1785 = vsel %vm304, %v873, 2147483647
      %v1786 = vand.u32 %v1785, 65535
      %v1787 = vshra.s32 %v1785, 16
      %v1788 = vcvt.s32.f32 %v1786
      %v1789 = vcvt.s32.f32 %v1787
      %1790 = vmin.xlane.f32.xlu0 %v1789
      %v1791 = vpop.xlane.xlu0 %1790
      %vm1792 = vcmp.eq.f32.partialorder %v1789, %v1791
      %v1793 = vsel %vm1792, %v1788, inf
      %1794 = vmin.xlane.f32.xlu0 %v1793
      %v1795 = vpop.xlane.xlu0 %1794
      %v1796 = vcvt.f32.s32 %v1795
      %v1797 = vcvt.f32.s32 %v1791
      %v1798 = vshll.u32 %v1797, 16
      %v1799 = vadd.s32 %v1798, %v1796
      %v1800 = vsel %vm304, %v874, 2147483647
      %v1801 = vand.u32 %v1800, 65535
      %v1802 = vshra.s32 %v1800, 16
      %v1803 = vcvt.s32.f32 %v1801
      %v1804 = vcvt.s32.f32 %v1802
      %1805 = vmin.xlane.f32.xlu0 %v1804
      %v1806 = vpop.xlane.xlu0 %1805
      %vm1807 = vcmp.eq.f32.partialorder %v1804, %v1806
      %v1808 = vsel %vm1807, %v1803, inf
      %1809 = vmin.xlane.f32.xlu0 %v1808
      %v1810 = vpop.xlane.xlu0 %1809
      %v1811 = vcvt.f32.s32 %v1810
      %v1812 = vcvt.f32.s32 %v1806
      %v1813 = vshll.u32 %v1812, 16
      %v1814 = vadd.s32 %v1813, %v1811
      %v1815 = vsel %vm304, %v875, 2147483647
      %v1816 = vand.u32 %v1815, 65535
      %v1817 = vshra.s32 %v1815, 16
      %v1818 = vcvt.s32.f32 %v1816
      %v1819 = vcvt.s32.f32 %v1817
      %1820 = vmin.xlane.f32.xlu0 %v1819
      %v1821 = vpop.xlane.xlu0 %1820
      %vm1822 = vcmp.eq.f32.partialorder %v1819, %v1821
      %v1823 = vsel %vm1822, %v1818, inf
      %1824 = vmin.xlane.f32.xlu0 %v1823
      %v1825 = vpop.xlane.xlu0 %1824
      %v1826 = vcvt.f32.s32 %v1825
      %v1827 = vcvt.f32.s32 %v1821
      %v1828 = vshll.u32 %v1827, 16
      %v1829 = vadd.s32 %v1828, %v1826
      %v1830 = vsel %vm304, %v876, 2147483647
      %v1831 = vand.u32 %v1830, 65535
      %v1832 = vshra.s32 %v1830, 16
      %v1833 = vcvt.s32.f32 %v1831
      %v1834 = vcvt.s32.f32 %v1832
      %1835 = vmin.xlane.f32.xlu0 %v1834
      %v1836 = vpop.xlane.xlu0 %1835
      %vm1837 = vcmp.eq.f32.partialorder %v1834, %v1836
      %v1838 = vsel %vm1837, %v1833, inf
      %1839 = vmin.xlane.f32.xlu0 %v1838
      %v1840 = vpop.xlane.xlu0 %1839
      %v1841 = vcvt.f32.s32 %v1840
      %v1842 = vcvt.f32.s32 %v1836
      %v1843 = vshll.u32 %v1842, 16
      %v1844 = vadd.s32 %v1843, %v1841
      %v1845 = vsel %vm304, %v877, 2147483647
      %v1846 = vand.u32 %v1845, 65535
      %v1847 = vshra.s32 %v1845, 16
      %v1848 = vcvt.s32.f32 %v1846
      %v1849 = vcvt.s32.f32 %v1847
      %1850 = vmin.xlane.f32.xlu0 %v1849
      %v1851 = vpop.xlane.xlu0 %1850
      %vm1852 = vcmp.eq.f32.partialorder %v1849, %v1851
      %v1853 = vsel %vm1852, %v1848, inf
      %1854 = vmin.xlane.f32.xlu0 %v1853
      %v1855 = vpop.xlane.xlu0 %1854
      %v1856 = vcvt.f32.s32 %v1855
      %v1857 = vcvt.f32.s32 %v1851
      %v1858 = vshll.u32 %v1857, 16
      %v1859 = vadd.s32 %v1858, %v1856
      %v1860 = vsel %vm304, %v878, 2147483647
      %v1861 = vand.u32 %v1860, 65535
      %v1862 = vshra.s32 %v1860, 16
      %v1863 = vcvt.s32.f32 %v1861
      %v1864 = vcvt.s32.f32 %v1862
      %1865 = vmin.xlane.f32.xlu0 %v1864
      %v1866 = vpop.xlane.xlu0 %1865
      %vm1867 = vcmp.eq.f32.partialorder %v1864, %v1866
      %v1868 = vsel %vm1867, %v1863, inf
      %1869 = vmin.xlane.f32.xlu0 %v1868
      %v1870 = vpop.xlane.xlu0 %1869
      %v1871 = vcvt.f32.s32 %v1870
      %v1872 = vcvt.f32.s32 %v1866
      %v1873 = vshll.u32 %v1872, 16
      %v1874 = vadd.s32 %v1873, %v1871
      %v1875 = vsel %vm304, %v879, 2147483647
      %v1876 = vand.u32 %v1875, 65535
      %v1877 = vshra.s32 %v1875, 16
      %v1878 = vcvt.s32.f32 %v1876
      %v1879 = vcvt.s32.f32 %v1877
      %1880 = vmin.xlane.f32.xlu0 %v1879
      %v1881 = vpop.xlane.xlu0 %1880
      %vm1882 = vcmp.eq.f32.partialorder %v1879, %v1881
      %v1883 = vsel %vm1882, %v1878, inf
      %1884 = vmin.xlane.f32.xlu0 %v1883
      %v1885 = vpop.xlane.xlu0 %1884
      %v1886 = vcvt.f32.s32 %v1885
      %v1887 = vcvt.f32.s32 %v1881
      %v1888 = vshll.u32 %v1887, 16
      %v1889 = vadd.s32 %v1888, %v1886
      %v1890 = vsel %vm304, %v880, 2147483647
      %v1891 = vand.u32 %v1890, 65535
      %v1892 = vshra.s32 %v1890, 16
      %v1893 = vcvt.s32.f32 %v1891
      %v1894 = vcvt.s32.f32 %v1892
      %1895 = vmin.xlane.f32.xlu0 %v1894
      %v1896 = vpop.xlane.xlu0 %1895
      %vm1897 = vcmp.eq.f32.partialorder %v1894, %v1896
      %v1898 = vsel %vm1897, %v1893, inf
      %1899 = vmin.xlane.f32.xlu0 %v1898
      %v1900 = vpop.xlane.xlu0 %1899
      %v1901 = vcvt.f32.s32 %v1900
      %v1902 = vcvt.f32.s32 %v1896
      %v1903 = vshll.u32 %v1902, 16
      %v1904 = vadd.s32 %v1903, %v1901
      %v1905 = vsel %vm304, %v881, 2147483647
      %v1906 = vand.u32 %v1905, 65535
      %v1907 = vshra.s32 %v1905, 16
      %v1908 = vcvt.s32.f32 %v1906
      %v1909 = vcvt.s32.f32 %v1907
      %1910 = vmin.xlane.f32.xlu0 %v1909
      %v1911 = vpop.xlane.xlu0 %1910
      %vm1912 = vcmp.eq.f32.partialorder %v1909, %v1911
      %v1913 = vsel %vm1912, %v1908, inf
      %1914 = vmin.xlane.f32.xlu0 %v1913
      %v1915 = vpop.xlane.xlu0 %1914
      %v1916 = vcvt.f32.s32 %v1915
      %v1917 = vcvt.f32.s32 %v1911
      %v1918 = vshll.u32 %v1917, 16
      %v1919 = vadd.s32 %v1918, %v1916
      %v1920 = vsel %vm304, %v882, 2147483647
      %v1921 = vand.u32 %v1920, 65535
      %v1922 = vshra.s32 %v1920, 16
      %v1923 = vcvt.s32.f32 %v1921
      %v1924 = vcvt.s32.f32 %v1922
      %1925 = vmin.xlane.f32.xlu0 %v1924
      %v1926 = vpop.xlane.xlu0 %1925
      %vm1927 = vcmp.eq.f32.partialorder %v1924, %v1926
      %v1928 = vsel %vm1927, %v1923, inf
      %1929 = vmin.xlane.f32.xlu0 %v1928
      %v1930 = vpop.xlane.xlu0 %1929
      %v1931 = vcvt.f32.s32 %v1930
      %v1932 = vcvt.f32.s32 %v1926
      %v1933 = vshll.u32 %v1932, 16
      %v1934 = vadd.s32 %v1933, %v1931
      %v1935 = vsel %vm304, %v883, 2147483647
      %v1936 = vand.u32 %v1935, 65535
      %v1937 = vshra.s32 %v1935, 16
      %v1938 = vcvt.s32.f32 %v1936
      %v1939 = vcvt.s32.f32 %v1937
      %1940 = vmin.xlane.f32.xlu0 %v1939
      %v1941 = vpop.xlane.xlu0 %1940
      %vm1942 = vcmp.eq.f32.partialorder %v1939, %v1941
      %v1943 = vsel %vm1942, %v1938, inf
      %1944 = vmin.xlane.f32.xlu0 %v1943
      %v1945 = vpop.xlane.xlu0 %1944
      %v1946 = vcvt.f32.s32 %v1945
      %v1947 = vcvt.f32.s32 %v1941
      %v1948 = vshll.u32 %v1947, 16
      %v1949 = vadd.s32 %v1948, %v1946
      %v1950 = vsel %vm304, %v884, 2147483647
      %v1951 = vand.u32 %v1950, 65535
      %v1952 = vshra.s32 %v1950, 16
      %v1953 = vcvt.s32.f32 %v1951
      %v1954 = vcvt.s32.f32 %v1952
      %1955 = vmin.xlane.f32.xlu0 %v1954
      %v1956 = vpop.xlane.xlu0 %1955
      %vm1957 = vcmp.eq.f32.partialorder %v1954, %v1956
      %v1958 = vsel %vm1957, %v1953, inf
      %1959 = vmin.xlane.f32.xlu0 %v1958
      %v1960 = vpop.xlane.xlu0 %1959
      %v1961 = vcvt.f32.s32 %v1960
      %v1962 = vcvt.f32.s32 %v1956
      %v1963 = vshll.u32 %v1962, 16
      %v1964 = vadd.s32 %v1963, %v1961
      %v1965 = vsel %vm304, %v885, 2147483647
      %v1966 = vand.u32 %v1965, 65535
      %v1967 = vshra.s32 %v1965, 16
      %v1968 = vcvt.s32.f32 %v1966
      %v1969 = vcvt.s32.f32 %v1967
      %1970 = vmin.xlane.f32.xlu0 %v1969
      %v1971 = vpop.xlane.xlu0 %1970
      %vm1972 = vcmp.eq.f32.partialorder %v1969, %v1971
      %v1973 = vsel %vm1972, %v1968, inf
      %1974 = vmin.xlane.f32.xlu0 %v1973
      %v1975 = vpop.xlane.xlu0 %1974
      %v1976 = vcvt.f32.s32 %v1975
      %v1977 = vcvt.f32.s32 %v1971
      %v1978 = vshll.u32 %v1977, 16
      %v1979 = vadd.s32 %v1978, %v1976
      %v1980 = vsel %vm304, %v886, 2147483647
      %v1981 = vand.u32 %v1980, 65535
      %v1982 = vshra.s32 %v1980, 16
      %v1983 = vcvt.s32.f32 %v1981
      %v1984 = vcvt.s32.f32 %v1982
      %1985 = vmin.xlane.f32.xlu0 %v1984
      %v1986 = vpop.xlane.xlu0 %1985
      %vm1987 = vcmp.eq.f32.partialorder %v1984, %v1986
      %v1988 = vsel %vm1987, %v1983, inf
      %1989 = vmin.xlane.f32.xlu0 %v1988
      %v1990 = vpop.xlane.xlu0 %1989
      %v1991 = vcvt.f32.s32 %v1990
      %v1992 = vcvt.f32.s32 %v1986
      %v1993 = vshll.u32 %v1992, 16
      %v1994 = vadd.s32 %v1993, %v1991
      %v1995 = vsel %vm304, %v887, 2147483647
      %v1996 = vand.u32 %v1995, 65535
      %v1997 = vshra.s32 %v1995, 16
      %v1998 = vcvt.s32.f32 %v1996
      %v1999 = vcvt.s32.f32 %v1997
      %2000 = vmin.xlane.f32.xlu0 %v1999
      %v2001 = vpop.xlane.xlu0 %2000
      %vm2002 = vcmp.eq.f32.partialorder %v1999, %v2001
      %v2003 = vsel %vm2002, %v1998, inf
      %2004 = vmin.xlane.f32.xlu0 %v2003
      %v2005 = vpop.xlane.xlu0 %2004
      %v2006 = vcvt.f32.s32 %v2005
      %v2007 = vcvt.f32.s32 %v2001
      %v2008 = vshll.u32 %v2007, 16
      %v2009 = vadd.s32 %v2008, %v2006
      %v2010 = vsel %vm304, %v888, 2147483647
      %v2011 = vand.u32 %v2010, 65535
      %v2012 = vshra.s32 %v2010, 16
      %v2013 = vcvt.s32.f32 %v2011
      %v2014 = vcvt.s32.f32 %v2012
      %2015 = vmin.xlane.f32.xlu0 %v2014
      %v2016 = vpop.xlane.xlu0 %2015
      %vm2017 = vcmp.eq.f32.partialorder %v2014, %v2016
      %v2018 = vsel %vm2017, %v2013, inf
      %2019 = vmin.xlane.f32.xlu0 %v2018
      %v2020 = vpop.xlane.xlu0 %2019
      %v2021 = vcvt.f32.s32 %v2020
      %v2022 = vcvt.f32.s32 %v2016
      %v2023 = vshll.u32 %v2022, 16
      %v2024 = vadd.s32 %v2023, %v2021
      %v2025 = vsel %vm304, %v889, 2147483647
      %v2026 = vand.u32 %v2025, 65535
      %v2027 = vshra.s32 %v2025, 16
      %v2028 = vcvt.s32.f32 %v2026
      %v2029 = vcvt.s32.f32 %v2027
      %2030 = vmin.xlane.f32.xlu0 %v2029
      %v2031 = vpop.xlane.xlu0 %2030
      %vm2032 = vcmp.eq.f32.partialorder %v2029, %v2031
      %v2033 = vsel %vm2032, %v2028, inf
      %2034 = vmin.xlane.f32.xlu0 %v2033
      %v2035 = vpop.xlane.xlu0 %2034
      %v2036 = vcvt.f32.s32 %v2035
      %v2037 = vcvt.f32.s32 %v2031
      %v2038 = vshll.u32 %v2037, 16
      %v2039 = vadd.s32 %v2038, %v2036
      %v2040 = vsel %vm304, %v890, 2147483647
      %v2041 = vand.u32 %v2040, 65535
      %v2042 = vshra.s32 %v2040, 16
      %v2043 = vcvt.s32.f32 %v2041
      %v2044 = vcvt.s32.f32 %v2042
      %2045 = vmin.xlane.f32.xlu0 %v2044
      %v2046 = vpop.xlane.xlu0 %2045
      %vm2047 = vcmp.eq.f32.partialorder %v2044, %v2046
      %v2048 = vsel %vm2047, %v2043, inf
      %2049 = vmin.xlane.f32.xlu0 %v2048
      %v2050 = vpop.xlane.xlu0 %2049
      %v2051 = vcvt.f32.s32 %v2050
      %v2052 = vcvt.f32.s32 %v2046
      %v2053 = vshll.u32 %v2052, 16
      %v2054 = vadd.s32 %v2053, %v2051
      %v2055 = vsel %vm304, %v891, 2147483647
      %v2056 = vand.u32 %v2055, 65535
      %v2057 = vshra.s32 %v2055, 16
      %v2058 = vcvt.s32.f32 %v2056
      %v2059 = vcvt.s32.f32 %v2057
      %2060 = vmin.xlane.f32.xlu0 %v2059
      %v2061 = vpop.xlane.xlu0 %2060
      %vm2062 = vcmp.eq.f32.partialorder %v2059, %v2061
      %v2063 = vsel %vm2062, %v2058, inf
      %2064 = vmin.xlane.f32.xlu0 %v2063
      %v2065 = vpop.xlane.xlu0 %2064
      %v2066 = vcvt.f32.s32 %v2065
      %v2067 = vcvt.f32.s32 %v2061
      %v2068 = vshll.u32 %v2067, 16
      %v2069 = vadd.s32 %v2068, %v2066
      %v2070 = vsel %vm304, %v892, 2147483647
      %v2071 = vand.u32 %v2070, 65535
      %v2072 = vshra.s32 %v2070, 16
      %v2073 = vcvt.s32.f32 %v2071
      %v2074 = vcvt.s32.f32 %v2072
      %2075 = vmin.xlane.f32.xlu0 %v2074
      %v2076 = vpop.xlane.xlu0 %2075
      %vm2077 = vcmp.eq.f32.partialorder %v2074, %v2076
      %v2078 = vsel %vm2077, %v2073, inf
      %2079 = vmin.xlane.f32.xlu0 %v2078
      %v2080 = vpop.xlane.xlu0 %2079
      %v2081 = vcvt.f32.s32 %v2080
      %v2082 = vcvt.f32.s32 %v2076
      %v2083 = vshll.u32 %v2082, 16
      %v2084 = vadd.s32 %v2083, %v2081
      %v2085 = vsel %vm304, %v893, 2147483647
      %v2086 = vand.u32 %v2085, 65535
      %v2087 = vshra.s32 %v2085, 16
      %v2088 = vcvt.s32.f32 %v2086
      %v2089 = vcvt.s32.f32 %v2087
      %2090 = vmin.xlane.f32.xlu0 %v2089
      %v2091 = vpop.xlane.xlu0 %2090
      %vm2092 = vcmp.eq.f32.partialorder %v2089, %v2091
      %v2093 = vsel %vm2092, %v2088, inf
      %2094 = vmin.xlane.f32.xlu0 %v2093
      %v2095 = vpop.xlane.xlu0 %2094
      %v2096 = vcvt.f32.s32 %v2095
      %v2097 = vcvt.f32.s32 %v2091
      %v2098 = vshll.u32 %v2097, 16
      %v2099 = vadd.s32 %v2098, %v2096
      %v2100 = vsel %vm304, %v894, 2147483647
      %v2101 = vand.u32 %v2100, 65535
      %v2102 = vshra.s32 %v2100, 16
      %v2103 = vcvt.s32.f32 %v2101
      %v2104 = vcvt.s32.f32 %v2102
      %2105 = vmin.xlane.f32.xlu0 %v2104
      %v2106 = vpop.xlane.xlu0 %2105
      %vm2107 = vcmp.eq.f32.partialorder %v2104, %v2106
      %v2108 = vsel %vm2107, %v2103, inf
      %2109 = vmin.xlane.f32.xlu0 %v2108
      %v2110 = vpop.xlane.xlu0 %2109
      %v2111 = vcvt.f32.s32 %v2110
      %v2112 = vcvt.f32.s32 %v2106
      %v2113 = vshll.u32 %v2112, 16
      %v2114 = vadd.s32 %v2113, %v2111
      %v2115 = vsel %vm304, %v895, 2147483647
      %v2116 = vand.u32 %v2115, 65535
      %v2117 = vshra.s32 %v2115, 16
      %v2118 = vcvt.s32.f32 %v2116
      %v2119 = vcvt.s32.f32 %v2117
      %2120 = vmin.xlane.f32.xlu0 %v2119
      %v2121 = vpop.xlane.xlu0 %2120
      %vm2122 = vcmp.eq.f32.partialorder %v2119, %v2121
      %v2123 = vsel %vm2122, %v2118, inf
      %2124 = vmin.xlane.f32.xlu0 %v2123
      %v2125 = vpop.xlane.xlu0 %2124
      %v2126 = vcvt.f32.s32 %v2125
      %v2127 = vcvt.f32.s32 %v2121
      %v2128 = vshll.u32 %v2127, 16
      %v2129 = vadd.s32 %v2128, %v2126
      %v2130 = vsel %vm304, %v896, 2147483647
      %v2131 = vand.u32 %v2130, 65535
      %v2132 = vshra.s32 %v2130, 16
      %v2133 = vcvt.s32.f32 %v2131
      %v2134 = vcvt.s32.f32 %v2132
      %2135 = vmin.xlane.f32.xlu0 %v2134
      %v2136 = vpop.xlane.xlu0 %2135
      %vm2137 = vcmp.eq.f32.partialorder %v2134, %v2136
      %v2138 = vsel %vm2137, %v2133, inf
      %2139 = vmin.xlane.f32.xlu0 %v2138
      %v2140 = vpop.xlane.xlu0 %2139
      %v2141 = vcvt.f32.s32 %v2140
      %v2142 = vcvt.f32.s32 %v2136
      %v2143 = vshll.u32 %v2142, 16
      %v2144 = vadd.s32 %v2143, %v2141
      %v2145 = vsel %vm304, %v897, 2147483647
      %v2146 = vand.u32 %v2145, 65535
      %v2147 = vshra.s32 %v2145, 16
      %v2148 = vcvt.s32.f32 %v2146
      %v2149 = vcvt.s32.f32 %v2147
      %2150 = vmin.xlane.f32.xlu0 %v2149
      %v2151 = vpop.xlane.xlu0 %2150
      %vm2152 = vcmp.eq.f32.partialorder %v2149, %v2151
      %v2153 = vsel %vm2152, %v2148, inf
      %2154 = vmin.xlane.f32.xlu0 %v2153
      %v2155 = vpop.xlane.xlu0 %2154
      %v2156 = vcvt.f32.s32 %v2155
      %v2157 = vcvt.f32.s32 %v2151
      %v2158 = vshll.u32 %v2157, 16
      %v2159 = vadd.s32 %v2158, %v2156
      %v2160 = vsel %vm304, %v898, 2147483647
      %v2161 = vand.u32 %v2160, 65535
      %v2162 = vshra.s32 %v2160, 16
      %v2163 = vcvt.s32.f32 %v2161
      %v2164 = vcvt.s32.f32 %v2162
      %2165 = vmin.xlane.f32.xlu0 %v2164
      %v2166 = vpop.xlane.xlu0 %2165
      %vm2167 = vcmp.eq.f32.partialorder %v2164, %v2166
      %v2168 = vsel %vm2167, %v2163, inf
      %2169 = vmin.xlane.f32.xlu0 %v2168
      %v2170 = vpop.xlane.xlu0 %2169
      %v2171 = vcvt.f32.s32 %v2170
      %v2172 = vcvt.f32.s32 %v2166
      %v2173 = vshll.u32 %v2172, 16
      %v2174 = vadd.s32 %v2173, %v2171
      %v2175 = vsel %vm304, %v899, 2147483647
      %v2176 = vand.u32 %v2175, 65535
      %v2177 = vshra.s32 %v2175, 16
      %v2178 = vcvt.s32.f32 %v2176
      %v2179 = vcvt.s32.f32 %v2177
      %2180 = vmin.xlane.f32.xlu0 %v2179
      %v2181 = vpop.xlane.xlu0 %2180
      %vm2182 = vcmp.eq.f32.partialorder %v2179, %v2181
      %v2183 = vsel %vm2182, %v2178, inf
      %2184 = vmin.xlane.f32.xlu0 %v2183
      %v2185 = vpop.xlane.xlu0 %2184
      %v2186 = vcvt.f32.s32 %v2185
      %v2187 = vcvt.f32.s32 %v2181
      %v2188 = vshll.u32 %v2187, 16
      %v2189 = vadd.s32 %v2188, %v2186
      %v2190 = vsel %vm304, %v900, 2147483647
      %v2191 = vand.u32 %v2190, 65535
      %v2192 = vshra.s32 %v2190, 16
      %v2193 = vcvt.s32.f32 %v2191
      %v2194 = vcvt.s32.f32 %v2192
      %2195 = vmin.xlane.f32.xlu0 %v2194
      %v2196 = vpop.xlane.xlu0 %2195
      %vm2197 = vcmp.eq.f32.partialorder %v2194, %v2196
      %v2198 = vsel %vm2197, %v2193, inf
      %2199 = vmin.xlane.f32.xlu0 %v2198
      %v2200 = vpop.xlane.xlu0 %2199
      %v2201 = vcvt.f32.s32 %v2200
      %v2202 = vcvt.f32.s32 %v2196
      %v2203 = vshll.u32 %v2202, 16
      %v2204 = vadd.s32 %v2203, %v2201
      %v2205 = vsel %vm304, %v901, 2147483647
      %v2206 = vand.u32 %v2205, 65535
      %v2207 = vshra.s32 %v2205, 16
      %v2208 = vcvt.s32.f32 %v2206
      %v2209 = vcvt.s32.f32 %v2207
      %2210 = vmin.xlane.f32.xlu0 %v2209
      %v2211 = vpop.xlane.xlu0 %2210
      %vm2212 = vcmp.eq.f32.partialorder %v2209, %v2211
      %v2213 = vsel %vm2212, %v2208, inf
      %2214 = vmin.xlane.f32.xlu0 %v2213
      %v2215 = vpop.xlane.xlu0 %2214
      %v2216 = vcvt.f32.s32 %v2215
      %v2217 = vcvt.f32.s32 %v2211
      %v2218 = vshll.u32 %v2217, 16
      %v2219 = vadd.s32 %v2218, %v2216
      %v2220 = vsel %vm304, %v902, 2147483647
      %v2221 = vand.u32 %v2220, 65535
      %v2222 = vshra.s32 %v2220, 16
      %v2223 = vcvt.s32.f32 %v2221
      %v2224 = vcvt.s32.f32 %v2222
      %2225 = vmin.xlane.f32.xlu0 %v2224
      %v2226 = vpop.xlane.xlu0 %2225
      %vm2227 = vcmp.eq.f32.partialorder %v2224, %v2226
      %v2228 = vsel %vm2227, %v2223, inf
      %2229 = vmin.xlane.f32.xlu0 %v2228
      %v2230 = vpop.xlane.xlu0 %2229
      %v2231 = vcvt.f32.s32 %v2230
      %v2232 = vcvt.f32.s32 %v2226
      %v2233 = vshll.u32 %v2232, 16
      %v2234 = vadd.s32 %v2233, %v2231
      %v2235 = vsel %vm304, %v903, 2147483647
      %v2236 = vand.u32 %v2235, 65535
      %v2237 = vshra.s32 %v2235, 16
      %v2238 = vcvt.s32.f32 %v2236
      %v2239 = vcvt.s32.f32 %v2237
      %2240 = vmin.xlane.f32.xlu0 %v2239
      %v2241 = vpop.xlane.xlu0 %2240
      %vm2242 = vcmp.eq.f32.partialorder %v2239, %v2241
      %v2243 = vsel %vm2242, %v2238, inf
      %2244 = vmin.xlane.f32.xlu0 %v2243
      %v2245 = vpop.xlane.xlu0 %2244
      %v2246 = vcvt.f32.s32 %v2245
      %v2247 = vcvt.f32.s32 %v2241
      %v2248 = vshll.u32 %v2247, 16
      %v2249 = vadd.s32 %v2248, %v2246
      %v2250 = vsel %vm304, %v904, 2147483647
      %v2251 = vand.u32 %v2250, 65535
      %v2252 = vshra.s32 %v2250, 16
      %v2253 = vcvt.s32.f32 %v2251
      %v2254 = vcvt.s32.f32 %v2252
      %2255 = vmin.xlane.f32.xlu0 %v2254
      %v2256 = vpop.xlane.xlu0 %2255
      %vm2257 = vcmp.eq.f32.partialorder %v2254, %v2256
      %v2258 = vsel %vm2257, %v2253, inf
      %2259 = vmin.xlane.f32.xlu0 %v2258
      %v2260 = vpop.xlane.xlu0 %2259
      %v2261 = vcvt.f32.s32 %v2260
      %v2262 = vcvt.f32.s32 %v2256
      %v2263 = vshll.u32 %v2262, 16
      %v2264 = vadd.s32 %v2263, %v2261
      %v2265 = vsel %vm304, %v905, 2147483647
      %v2266 = vand.u32 %v2265, 65535
      %v2267 = vshra.s32 %v2265, 16
      %v2268 = vcvt.s32.f32 %v2266
      %v2269 = vcvt.s32.f32 %v2267
      %2270 = vmin.xlane.f32.xlu0 %v2269
      %v2271 = vpop.xlane.xlu0 %2270
      %vm2272 = vcmp.eq.f32.partialorder %v2269, %v2271
      %v2273 = vsel %vm2272, %v2268, inf
      %2274 = vmin.xlane.f32.xlu0 %v2273
      %v2275 = vpop.xlane.xlu0 %2274
      %v2276 = vcvt.f32.s32 %v2275
      %v2277 = vcvt.f32.s32 %v2271
      %v2278 = vshll.u32 %v2277, 16
      %v2279 = vadd.s32 %v2278, %v2276
      %v2280 = vsel %vm304, %v906, 2147483647
      %v2281 = vand.u32 %v2280, 65535
      %v2282 = vshra.s32 %v2280, 16
      %v2283 = vcvt.s32.f32 %v2281
      %v2284 = vcvt.s32.f32 %v2282
      %2285 = vmin.xlane.f32.xlu0 %v2284
      %v2286 = vpop.xlane.xlu0 %2285
      %vm2287 = vcmp.eq.f32.partialorder %v2284, %v2286
      %v2288 = vsel %vm2287, %v2283, inf
      %2289 = vmin.xlane.f32.xlu0 %v2288
      %v2290 = vpop.xlane.xlu0 %2289
      %v2291 = vcvt.f32.s32 %v2290
      %v2292 = vcvt.f32.s32 %v2286
      %v2293 = vshll.u32 %v2292, 16
      %v2294 = vadd.s32 %v2293, %v2291
      %v2295 = vsel %vm304, %v907, 2147483647
      %v2296 = vand.u32 %v2295, 65535
      %v2297 = vshra.s32 %v2295, 16
      %v2298 = vcvt.s32.f32 %v2296
      %v2299 = vcvt.s32.f32 %v2297
      %2300 = vmin.xlane.f32.xlu0 %v2299
      %v2301 = vpop.xlane.xlu0 %2300
      %vm2302 = vcmp.eq.f32.partialorder %v2299, %v2301
      %v2303 = vsel %vm2302, %v2298, inf
      %2304 = vmin.xlane.f32.xlu0 %v2303
      %v2305 = vpop.xlane.xlu0 %2304
      %v2306 = vcvt.f32.s32 %v2305
      %v2307 = vcvt.f32.s32 %v2301
      %v2308 = vshll.u32 %v2307, 16
      %v2309 = vadd.s32 %v2308, %v2306
      %v2310 = vsel %vm304, %v908, 2147483647
      %v2311 = vand.u32 %v2310, 65535
      %v2312 = vshra.s32 %v2310, 16
      %v2313 = vcvt.s32.f32 %v2311
      %v2314 = vcvt.s32.f32 %v2312
      %2315 = vmin.xlane.f32.xlu0 %v2314
      %v2316 = vpop.xlane.xlu0 %2315
      %vm2317 = vcmp.eq.f32.partialorder %v2314, %v2316
      %v2318 = vsel %vm2317, %v2313, inf
      %2319 = vmin.xlane.f32.xlu0 %v2318
      %v2320 = vpop.xlane.xlu0 %2319
      %v2321 = vcvt.f32.s32 %v2320
      %v2322 = vcvt.f32.s32 %v2316
      %v2323 = vshll.u32 %v2322, 16
      %v2324 = vadd.s32 %v2323, %v2321
      %v2325 = vsel %vm304, %v909, 2147483647
      %v2326 = vand.u32 %v2325, 65535
      %v2327 = vshra.s32 %v2325, 16
      %v2328 = vcvt.s32.f32 %v2326
      %v2329 = vcvt.s32.f32 %v2327
      %2330 = vmin.xlane.f32.xlu0 %v2329
      %v2331 = vpop.xlane.xlu0 %2330
      %vm2332 = vcmp.eq.f32.partialorder %v2329, %v2331
      %v2333 = vsel %vm2332, %v2328, inf
      %2334 = vmin.xlane.f32.xlu0 %v2333
      %v2335 = vpop.xlane.xlu0 %2334
      %v2336 = vcvt.f32.s32 %v2335
      %v2337 = vcvt.f32.s32 %v2331
      %v2338 = vshll.u32 %v2337, 16
      %v2339 = vadd.s32 %v2338, %v2336
      %v2340 = vsel %vm304, %v910, 2147483647
      %v2341 = vand.u32 %v2340, 65535
      %v2342 = vshra.s32 %v2340, 16
      %v2343 = vcvt.s32.f32 %v2341
      %v2344 = vcvt.s32.f32 %v2342
      %2345 = vmin.xlane.f32.xlu0 %v2344
      %v2346 = vpop.xlane.xlu0 %2345
      %vm2347 = vcmp.eq.f32.partialorder %v2344, %v2346
      %v2348 = vsel %vm2347, %v2343, inf
      %2349 = vmin.xlane.f32.xlu0 %v2348
      %v2350 = vpop.xlane.xlu0 %2349
      %v2351 = vcvt.f32.s32 %v2350
      %v2352 = vcvt.f32.s32 %v2346
      %v2353 = vshll.u32 %v2352, 16
      %v2354 = vadd.s32 %v2353, %v2351
      %v2355 = vsel %vm304, %v911, 2147483647
      %v2356 = vand.u32 %v2355, 65535
      %v2357 = vshra.s32 %v2355, 16
      %v2358 = vcvt.s32.f32 %v2356
      %v2359 = vcvt.s32.f32 %v2357
      %2360 = vmin.xlane.f32.xlu0 %v2359
      %v2361 = vpop.xlane.xlu0 %2360
      %vm2362 = vcmp.eq.f32.partialorder %v2359, %v2361
      %v2363 = vsel %vm2362, %v2358, inf
      %2364 = vmin.xlane.f32.xlu0 %v2363
      %v2365 = vpop.xlane.xlu0 %2364
      %v2366 = vcvt.f32.s32 %v2365
      %v2367 = vcvt.f32.s32 %v2361
      %v2368 = vshll.u32 %v2367, 16
      %v2369 = vadd.s32 %v2368, %v2366
      %v2370 = vsel %vm304, %v912, 2147483647
      %v2371 = vand.u32 %v2370, 65535
      %v2372 = vshra.s32 %v2370, 16
      %v2373 = vcvt.s32.f32 %v2371
      %v2374 = vcvt.s32.f32 %v2372
      %2375 = vmin.xlane.f32.xlu0 %v2374
      %v2376 = vpop.xlane.xlu0 %2375
      %vm2377 = vcmp.eq.f32.partialorder %v2374, %v2376
      %v2378 = vsel %vm2377, %v2373, inf
      %2379 = vmin.xlane.f32.xlu0 %v2378
      %v2380 = vpop.xlane.xlu0 %2379
      %v2381 = vcvt.f32.s32 %v2380
      %v2382 = vcvt.f32.s32 %v2376
      %v2383 = vshll.u32 %v2382, 16
      %v2384 = vadd.s32 %v2383, %v2381
      %v2385 = vsel %vm304, %v913, 2147483647
      %v2386 = vand.u32 %v2385, 65535
      %v2387 = vshra.s32 %v2385, 16
      %v2388 = vcvt.s32.f32 %v2386
      %v2389 = vcvt.s32.f32 %v2387
      %2390 = vmin.xlane.f32.xlu0 %v2389
      %v2391 = vpop.xlane.xlu0 %2390
      %vm2392 = vcmp.eq.f32.partialorder %v2389, %v2391
      %v2393 = vsel %vm2392, %v2388, inf
      %2394 = vmin.xlane.f32.xlu0 %v2393
      %v2395 = vpop.xlane.xlu0 %2394
      %v2396 = vcvt.f32.s32 %v2395
      %v2397 = vcvt.f32.s32 %v2391
      %v2398 = vshll.u32 %v2397, 16
      %v2399 = vadd.s32 %v2398, %v2396
      %v2400 = vsel %vm304, %v914, 2147483647
      %v2401 = vand.u32 %v2400, 65535
      %v2402 = vshra.s32 %v2400, 16
      %v2403 = vcvt.s32.f32 %v2401
      %v2404 = vcvt.s32.f32 %v2402
      %2405 = vmin.xlane.f32.xlu0 %v2404
      %v2406 = vpop.xlane.xlu0 %2405
      %vm2407 = vcmp.eq.f32.partialorder %v2404, %v2406
      %v2408 = vsel %vm2407, %v2403, inf
      %2409 = vmin.xlane.f32.xlu0 %v2408
      %v2410 = vpop.xlane.xlu0 %2409
      %v2411 = vcvt.f32.s32 %v2410
      %v2412 = vcvt.f32.s32 %v2406
      %v2413 = vshll.u32 %v2412, 16
      %v2414 = vadd.s32 %v2413, %v2411
      %v2415 = vsel %vm304, %v915, 2147483647
      %v2416 = vand.u32 %v2415, 65535
      %v2417 = vshra.s32 %v2415, 16
      %v2418 = vcvt.s32.f32 %v2416
      %v2419 = vcvt.s32.f32 %v2417
      %2420 = vmin.xlane.f32.xlu0 %v2419
      %v2421 = vpop.xlane.xlu0 %2420
      %vm2422 = vcmp.eq.f32.partialorder %v2419, %v2421
      %v2423 = vsel %vm2422, %v2418, inf
      %2424 = vmin.xlane.f32.xlu0 %v2423
      %v2425 = vpop.xlane.xlu0 %2424
      %v2426 = vcvt.f32.s32 %v2425
      %v2427 = vcvt.f32.s32 %v2421
      %v2428 = vshll.u32 %v2427, 16
      %v2429 = vadd.s32 %v2428, %v2426
      %v2430 = vsel %vm304, %v916, 2147483647
      %v2431 = vand.u32 %v2430, 65535
      %v2432 = vshra.s32 %v2430, 16
      %v2433 = vcvt.s32.f32 %v2431
      %v2434 = vcvt.s32.f32 %v2432
      %2435 = vmin.xlane.f32.xlu0 %v2434
      %v2436 = vpop.xlane.xlu0 %2435
      %vm2437 = vcmp.eq.f32.partialorder %v2434, %v2436
      %v2438 = vsel %vm2437, %v2433, inf
      %2439 = vmin.xlane.f32.xlu0 %v2438
      %v2440 = vpop.xlane.xlu0 %2439
      %v2441 = vcvt.f32.s32 %v2440
      %v2442 = vcvt.f32.s32 %v2436
      %v2443 = vshll.u32 %v2442, 16
      %v2444 = vadd.s32 %v2443, %v2441
      %v2445 = vsel %vm304, %v917, 2147483647
      %v2446 = vand.u32 %v2445, 65535
      %v2447 = vshra.s32 %v2445, 16
      %v2448 = vcvt.s32.f32 %v2446
      %v2449 = vcvt.s32.f32 %v2447
      %2450 = vmin.xlane.f32.xlu0 %v2449
      %v2451 = vpop.xlane.xlu0 %2450
      %vm2452 = vcmp.eq.f32.partialorder %v2449, %v2451
      %v2453 = vsel %vm2452, %v2448, inf
      %2454 = vmin.xlane.f32.xlu0 %v2453
      %v2455 = vpop.xlane.xlu0 %2454
      %v2456 = vcvt.f32.s32 %v2455
      %v2457 = vcvt.f32.s32 %v2451
      %v2458 = vshll.u32 %v2457, 16
      %v2459 = vadd.s32 %v2458, %v2456
      %v2460 = vsel %vm304, %v918, 2147483647
      %v2461 = vand.u32 %v2460, 65535
      %v2462 = vshra.s32 %v2460, 16
      %v2463 = vcvt.s32.f32 %v2461
      %v2464 = vcvt.s32.f32 %v2462
      %2465 = vmin.xlane.f32.xlu0 %v2464
      %v2466 = vpop.xlane.xlu0 %2465
      %vm2467 = vcmp.eq.f32.partialorder %v2464, %v2466
      %v2468 = vsel %vm2467, %v2463, inf
      %2469 = vmin.xlane.f32.xlu0 %v2468
      %v2470 = vpop.xlane.xlu0 %2469
      %v2471 = vcvt.f32.s32 %v2470
      %v2472 = vcvt.f32.s32 %v2466
      %v2473 = vshll.u32 %v2472, 16
      %v2474 = vadd.s32 %v2473, %v2471
      %v2475 = vsel %vm304, %v919, 2147483647
      %v2476 = vand.u32 %v2475, 65535
      %v2477 = vshra.s32 %v2475, 16
      %v2478 = vcvt.s32.f32 %v2476
      %v2479 = vcvt.s32.f32 %v2477
      %2480 = vmin.xlane.f32.xlu0 %v2479
      %v2481 = vpop.xlane.xlu0 %2480
      %vm2482 = vcmp.eq.f32.partialorder %v2479, %v2481
      %v2483 = vsel %vm2482, %v2478, inf
      %2484 = vmin.xlane.f32.xlu0 %v2483
      %v2485 = vpop.xlane.xlu0 %2484
      %v2486 = vcvt.f32.s32 %v2485
      %v2487 = vcvt.f32.s32 %v2481
      %v2488 = vshll.u32 %v2487, 16
      %v2489 = vadd.s32 %v2488, %v2486
      %v2490 = vsel %vm304, %v920, 2147483647
      %v2491 = vand.u32 %v2490, 65535
      %v2492 = vshra.s32 %v2490, 16
      %v2493 = vcvt.s32.f32 %v2491
      %v2494 = vcvt.s32.f32 %v2492
      %2495 = vmin.xlane.f32.xlu0 %v2494
      %v2496 = vpop.xlane.xlu0 %2495
      %vm2497 = vcmp.eq.f32.partialorder %v2494, %v2496
      %v2498 = vsel %vm2497, %v2493, inf
      %2499 = vmin.xlane.f32.xlu0 %v2498
      %v2500 = vpop.xlane.xlu0 %2499
      %v2501 = vcvt.f32.s32 %v2500
      %v2502 = vcvt.f32.s32 %v2496
      %v2503 = vshll.u32 %v2502, 16
      %v2504 = vadd.s32 %v2503, %v2501
      %v2505 = vsel %vm304, %v921, 2147483647
      %v2506 = vand.u32 %v2505, 65535
      %v2507 = vshra.s32 %v2505, 16
      %v2508 = vcvt.s32.f32 %v2506
      %v2509 = vcvt.s32.f32 %v2507
      %2510 = vmin.xlane.f32.xlu0 %v2509
      %v2511 = vpop.xlane.xlu0 %2510
      %vm2512 = vcmp.eq.f32.partialorder %v2509, %v2511
      %v2513 = vsel %vm2512, %v2508, inf
      %2514 = vmin.xlane.f32.xlu0 %v2513
      %v2515 = vpop.xlane.xlu0 %2514
      %v2516 = vcvt.f32.s32 %v2515
      %v2517 = vcvt.f32.s32 %v2511
      %v2518 = vshll.u32 %v2517, 16
      %v2519 = vadd.s32 %v2518, %v2516
      %v2520 = vsel %vm304, %v922, 2147483647
      %v2521 = vand.u32 %v2520, 65535
      %v2522 = vshra.s32 %v2520, 16
      %v2523 = vcvt.s32.f32 %v2521
      %v2524 = vcvt.s32.f32 %v2522
      %2525 = vmin.xlane.f32.xlu0 %v2524
      %v2526 = vpop.xlane.xlu0 %2525
      %vm2527 = vcmp.eq.f32.partialorder %v2524, %v2526
      %v2528 = vsel %vm2527, %v2523, inf
      %2529 = vmin.xlane.f32.xlu0 %v2528
      %v2530 = vpop.xlane.xlu0 %2529
      %v2531 = vcvt.f32.s32 %v2530
      %v2532 = vcvt.f32.s32 %v2526
      %v2533 = vshll.u32 %v2532, 16
      %v2534 = vadd.s32 %v2533, %v2531
      %v2535 = vsel %vm304, %v923, 2147483647
      %v2536 = vand.u32 %v2535, 65535
      %v2537 = vshra.s32 %v2535, 16
      %v2538 = vcvt.s32.f32 %v2536
      %v2539 = vcvt.s32.f32 %v2537
      %2540 = vmin.xlane.f32.xlu0 %v2539
      %v2541 = vpop.xlane.xlu0 %2540
      %vm2542 = vcmp.eq.f32.partialorder %v2539, %v2541
      %v2543 = vsel %vm2542, %v2538, inf
      %2544 = vmin.xlane.f32.xlu0 %v2543
      %v2545 = vpop.xlane.xlu0 %2544
      %v2546 = vcvt.f32.s32 %v2545
      %v2547 = vcvt.f32.s32 %v2541
      %v2548 = vshll.u32 %v2547, 16
      %v2549 = vadd.s32 %v2548, %v2546
      %v2550 = vsel %vm304, %v924, 2147483647
      %v2551 = vand.u32 %v2550, 65535
      %v2552 = vshra.s32 %v2550, 16
      %v2553 = vcvt.s32.f32 %v2551
      %v2554 = vcvt.s32.f32 %v2552
      %2555 = vmin.xlane.f32.xlu0 %v2554
      %v2556 = vpop.xlane.xlu0 %2555
      %vm2557 = vcmp.eq.f32.partialorder %v2554, %v2556
      %v2558 = vsel %vm2557, %v2553, inf
      %2559 = vmin.xlane.f32.xlu0 %v2558
      %v2560 = vpop.xlane.xlu0 %2559
      %v2561 = vcvt.f32.s32 %v2560
      %v2562 = vcvt.f32.s32 %v2556
      %v2563 = vshll.u32 %v2562, 16
      %v2564 = vadd.s32 %v2563, %v2561
      %v2565 = vsel %vm304, %v925, 2147483647
      %v2566 = vand.u32 %v2565, 65535
      %v2567 = vshra.s32 %v2565, 16
      %v2568 = vcvt.s32.f32 %v2566
      %v2569 = vcvt.s32.f32 %v2567
      %2570 = vmin.xlane.f32.xlu0 %v2569
      %v2571 = vpop.xlane.xlu0 %2570
      %vm2572 = vcmp.eq.f32.partialorder %v2569, %v2571
      %v2573 = vsel %vm2572, %v2568, inf
      %2574 = vmin.xlane.f32.xlu0 %v2573
      %v2575 = vpop.xlane.xlu0 %2574
      %v2576 = vcvt.f32.s32 %v2575
      %v2577 = vcvt.f32.s32 %v2571
      %v2578 = vshll.u32 %v2577, 16
      %v2579 = vadd.s32 %v2578, %v2576
      %v2580 = vsel %vm304, %v926, 2147483647
      %v2581 = vand.u32 %v2580, 65535
      %v2582 = vshra.s32 %v2580, 16
      %v2583 = vcvt.s32.f32 %v2581
      %v2584 = vcvt.s32.f32 %v2582
      %2585 = vmin.xlane.f32.xlu0 %v2584
      %v2586 = vpop.xlane.xlu0 %2585
      %vm2587 = vcmp.eq.f32.partialorder %v2584, %v2586
      %v2588 = vsel %vm2587, %v2583, inf
      %2589 = vmin.xlane.f32.xlu0 %v2588
      %v2590 = vpop.xlane.xlu0 %2589
      %v2591 = vcvt.f32.s32 %v2590
      %v2592 = vcvt.f32.s32 %v2586
      %v2593 = vshll.u32 %v2592, 16
      %v2594 = vadd.s32 %v2593, %v2591
      %v2595 = vsel %vm304, %v927, 2147483647
      %v2596 = vand.u32 %v2595, 65535
      %v2597 = vshra.s32 %v2595, 16
      %v2598 = vcvt.s32.f32 %v2596
      %v2599 = vcvt.s32.f32 %v2597
      %2600 = vmin.xlane.f32.xlu0 %v2599
      %v2601 = vpop.xlane.xlu0 %2600
      %vm2602 = vcmp.eq.f32.partialorder %v2599, %v2601
      %v2603 = vsel %vm2602, %v2598, inf
      %2604 = vmin.xlane.f32.xlu0 %v2603
      %v2605 = vpop.xlane.xlu0 %2604
      %v2606 = vcvt.f32.s32 %v2605
      %v2607 = vcvt.f32.s32 %v2601
      %v2608 = vshll.u32 %v2607, 16
      %v2609 = vadd.s32 %v2608, %v2606
      %v2610 = vsel %vm304, %v928, 2147483647
      %v2611 = vand.u32 %v2610, 65535
      %v2612 = vshra.s32 %v2610, 16
      %v2613 = vcvt.s32.f32 %v2611
      %v2614 = vcvt.s32.f32 %v2612
      %2615 = vmin.xlane.f32.xlu0 %v2614
      %v2616 = vpop.xlane.xlu0 %2615
      %vm2617 = vcmp.eq.f32.partialorder %v2614, %v2616
      %v2618 = vsel %vm2617, %v2613, inf
      %2619 = vmin.xlane.f32.xlu0 %v2618
      %v2620 = vpop.xlane.xlu0 %2619
      %v2621 = vcvt.f32.s32 %v2620
      %v2622 = vcvt.f32.s32 %v2616
      %v2623 = vshll.u32 %v2622, 16
      %v2624 = vadd.s32 %v2623, %v2621
      %v2625 = vsel %vm304, %v929, 2147483647
      %v2626 = vand.u32 %v2625, 65535
      %v2627 = vshra.s32 %v2625, 16
      %v2628 = vcvt.s32.f32 %v2626
      %v2629 = vcvt.s32.f32 %v2627
      %2630 = vmin.xlane.f32.xlu0 %v2629
      %v2631 = vpop.xlane.xlu0 %2630
      %vm2632 = vcmp.eq.f32.partialorder %v2629, %v2631
      %v2633 = vsel %vm2632, %v2628, inf
      %2634 = vmin.xlane.f32.xlu0 %v2633
      %v2635 = vpop.xlane.xlu0 %2634
      %v2636 = vcvt.f32.s32 %v2635
      %v2637 = vcvt.f32.s32 %v2631
      %v2638 = vshll.u32 %v2637, 16
      %v2639 = vadd.s32 %v2638, %v2636
      %v2640 = vsel %vm304, %v930, 2147483647
      %v2641 = vand.u32 %v2640, 65535
      %v2642 = vshra.s32 %v2640, 16
      %v2643 = vcvt.s32.f32 %v2641
      %v2644 = vcvt.s32.f32 %v2642
      %2645 = vmin.xlane.f32.xlu0 %v2644
      %v2646 = vpop.xlane.xlu0 %2645
      %vm2647 = vcmp.eq.f32.partialorder %v2644, %v2646
      %v2648 = vsel %vm2647, %v2643, inf
      %2649 = vmin.xlane.f32.xlu0 %v2648
      %v2650 = vpop.xlane.xlu0 %2649
      %v2651 = vcvt.f32.s32 %v2650
      %v2652 = vcvt.f32.s32 %v2646
      %v2653 = vshll.u32 %v2652, 16
      %v2654 = vadd.s32 %v2653, %v2651
      %v2655 = vsel %vm304, %v931, 2147483647
      %v2656 = vand.u32 %v2655, 65535
      %v2657 = vshra.s32 %v2655, 16
      %v2658 = vcvt.s32.f32 %v2656
      %v2659 = vcvt.s32.f32 %v2657
      %2660 = vmin.xlane.f32.xlu0 %v2659
      %v2661 = vpop.xlane.xlu0 %2660
      %vm2662 = vcmp.eq.f32.partialorder %v2659, %v2661
      %v2663 = vsel %vm2662, %v2658, inf
      %2664 = vmin.xlane.f32.xlu0 %v2663
      %v2665 = vpop.xlane.xlu0 %2664
      %v2666 = vcvt.f32.s32 %v2665
      %v2667 = vcvt.f32.s32 %v2661
      %v2668 = vshll.u32 %v2667, 16
      %v2669 = vadd.s32 %v2668, %v2666
      %v2670 = vsel %vm304, %v932, 2147483647
      %v2671 = vand.u32 %v2670, 65535
      %v2672 = vshra.s32 %v2670, 16
      %v2673 = vcvt.s32.f32 %v2671
      %v2674 = vcvt.s32.f32 %v2672
      %2675 = vmin.xlane.f32.xlu0 %v2674
      %v2676 = vpop.xlane.xlu0 %2675
      %vm2677 = vcmp.eq.f32.partialorder %v2674, %v2676
      %v2678 = vsel %vm2677, %v2673, inf
      %2679 = vmin.xlane.f32.xlu0 %v2678
      %v2680 = vpop.xlane.xlu0 %2679
      %v2681 = vcvt.f32.s32 %v2680
      %v2682 = vcvt.f32.s32 %v2676
      %v2683 = vshll.u32 %v2682, 16
      %v2684 = vadd.s32 %v2683, %v2681
      %v2685 = vsel %vm304, %v933, 2147483647
      %v2686 = vand.u32 %v2685, 65535
      %v2687 = vshra.s32 %v2685, 16
      %v2688 = vcvt.s32.f32 %v2686
      %v2689 = vcvt.s32.f32 %v2687
      %2690 = vmin.xlane.f32.xlu0 %v2689
      %v2691 = vpop.xlane.xlu0 %2690
      %vm2692 = vcmp.eq.f32.partialorder %v2689, %v2691
      %v2693 = vsel %vm2692, %v2688, inf
      %2694 = vmin.xlane.f32.xlu0 %v2693
      %v2695 = vpop.xlane.xlu0 %2694
      %v2696 = vcvt.f32.s32 %v2695
      %v2697 = vcvt.f32.s32 %v2691
      %v2698 = vshll.u32 %v2697, 16
      %v2699 = vadd.s32 %v2698, %v2696
      %v2700 = vsel %vm304, %v934, 2147483647
      %v2701 = vand.u32 %v2700, 65535
      %v2702 = vshra.s32 %v2700, 16
      %v2703 = vcvt.s32.f32 %v2701
      %v2704 = vcvt.s32.f32 %v2702
      %2705 = vmin.xlane.f32.xlu0 %v2704
      %v2706 = vpop.xlane.xlu0 %2705
      %vm2707 = vcmp.eq.f32.partialorder %v2704, %v2706
      %v2708 = vsel %vm2707, %v2703, inf
      %2709 = vmin.xlane.f32.xlu0 %v2708
      %v2710 = vpop.xlane.xlu0 %2709
      %v2711 = vcvt.f32.s32 %v2710
      %v2712 = vcvt.f32.s32 %v2706
      %v2713 = vshll.u32 %v2712, 16
      %v2714 = vadd.s32 %v2713, %v2711
      %v2715 = vsel %vm304, %v935, 2147483647
      %v2716 = vand.u32 %v2715, 65535
      %v2717 = vshra.s32 %v2715, 16
      %v2718 = vcvt.s32.f32 %v2716
      %v2719 = vcvt.s32.f32 %v2717
      %2720 = vmin.xlane.f32.xlu0 %v2719
      %v2721 = vpop.xlane.xlu0 %2720
      %vm2722 = vcmp.eq.f32.partialorder %v2719, %v2721
      %v2723 = vsel %vm2722, %v2718, inf
      %2724 = vmin.xlane.f32.xlu0 %v2723
      %v2725 = vpop.xlane.xlu0 %2724
      %v2726 = vcvt.f32.s32 %v2725
      %v2727 = vcvt.f32.s32 %v2721
      %v2728 = vshll.u32 %v2727, 16
      %v2729 = vadd.s32 %v2728, %v2726
      %v2730 = vsel %vm304, %v936, 2147483647
      %v2731 = vand.u32 %v2730, 65535
      %v2732 = vshra.s32 %v2730, 16
      %v2733 = vcvt.s32.f32 %v2731
      %v2734 = vcvt.s32.f32 %v2732
      %2735 = vmin.xlane.f32.xlu0 %v2734
      %v2736 = vpop.xlane.xlu0 %2735
      %vm2737 = vcmp.eq.f32.partialorder %v2734, %v2736
      %v2738 = vsel %vm2737, %v2733, inf
      %2739 = vmin.xlane.f32.xlu0 %v2738
      %v2740 = vpop.xlane.xlu0 %2739
      %v2741 = vcvt.f32.s32 %v2740
      %v2742 = vcvt.f32.s32 %v2736
      %v2743 = vshll.u32 %v2742, 16
      %v2744 = vadd.s32 %v2743, %v2741
      %v2745 = vsel %vm304, %v937, 2147483647
      %v2746 = vand.u32 %v2745, 65535
      %v2747 = vshra.s32 %v2745, 16
      %v2748 = vcvt.s32.f32 %v2746
      %v2749 = vcvt.s32.f32 %v2747
      %2750 = vmin.xlane.f32.xlu0 %v2749
      %v2751 = vpop.xlane.xlu0 %2750
      %vm2752 = vcmp.eq.f32.partialorder %v2749, %v2751
      %v2753 = vsel %vm2752, %v2748, inf
      %2754 = vmin.xlane.f32.xlu0 %v2753
      %v2755 = vpop.xlane.xlu0 %2754
      %v2756 = vcvt.f32.s32 %v2755
      %v2757 = vcvt.f32.s32 %v2751
      %v2758 = vshll.u32 %v2757, 16
      %v2759 = vadd.s32 %v2758, %v2756
      %v2760 = vsel %vm304, %v938, 2147483647
      %v2761 = vand.u32 %v2760, 65535
      %v2762 = vshra.s32 %v2760, 16
      %v2763 = vcvt.s32.f32 %v2761
      %v2764 = vcvt.s32.f32 %v2762
      %2765 = vmin.xlane.f32.xlu0 %v2764
      %v2766 = vpop.xlane.xlu0 %2765
      %vm2767 = vcmp.eq.f32.partialorder %v2764, %v2766
      %v2768 = vsel %vm2767, %v2763, inf
      %2769 = vmin.xlane.f32.xlu0 %v2768
      %v2770 = vpop.xlane.xlu0 %2769
      %v2771 = vcvt.f32.s32 %v2770
      %v2772 = vcvt.f32.s32 %v2766
      %v2773 = vshll.u32 %v2772, 16
      %v2774 = vadd.s32 %v2773, %v2771
      %v2775 = vsel %vm304, %v939, 2147483647
      %v2776 = vand.u32 %v2775, 65535
      %v2777 = vshra.s32 %v2775, 16
      %v2778 = vcvt.s32.f32 %v2776
      %v2779 = vcvt.s32.f32 %v2777
      %2780 = vmin.xlane.f32.xlu0 %v2779
      %v2781 = vpop.xlane.xlu0 %2780
      %vm2782 = vcmp.eq.f32.partialorder %v2779, %v2781
      %v2783 = vsel %vm2782, %v2778, inf
      %2784 = vmin.xlane.f32.xlu0 %v2783
      %v2785 = vpop.xlane.xlu0 %2784
      %v2786 = vcvt.f32.s32 %v2785
      %v2787 = vcvt.f32.s32 %v2781
      %v2788 = vshll.u32 %v2787, 16
      %v2789 = vadd.s32 %v2788, %v2786
      %v2790 = vsel %vm304, %v940, 2147483647
      %v2791 = vand.u32 %v2790, 65535
      %v2792 = vshra.s32 %v2790, 16
      %v2793 = vcvt.s32.f32 %v2791
      %v2794 = vcvt.s32.f32 %v2792
      %2795 = vmin.xlane.f32.xlu0 %v2794
      %v2796 = vpop.xlane.xlu0 %2795
      %vm2797 = vcmp.eq.f32.partialorder %v2794, %v2796
      %v2798 = vsel %vm2797, %v2793, inf
      %2799 = vmin.xlane.f32.xlu0 %v2798
      %v2800 = vpop.xlane.xlu0 %2799
      %v2801 = vcvt.f32.s32 %v2800
      %v2802 = vcvt.f32.s32 %v2796
      %v2803 = vshll.u32 %v2802, 16
      %v2804 = vadd.s32 %v2803, %v2801
      %v2805 = vsel %vm304, %v941, 2147483647
      %v2806 = vand.u32 %v2805, 65535
      %v2807 = vshra.s32 %v2805, 16
      %v2808 = vcvt.s32.f32 %v2806
      %v2809 = vcvt.s32.f32 %v2807
      %2810 = vmin.xlane.f32.xlu0 %v2809
      %v2811 = vpop.xlane.xlu0 %2810
      %vm2812 = vcmp.eq.f32.partialorder %v2809, %v2811
      %v2813 = vsel %vm2812, %v2808, inf
      %2814 = vmin.xlane.f32.xlu0 %v2813
      %v2815 = vpop.xlane.xlu0 %2814
      %v2816 = vcvt.f32.s32 %v2815
      %v2817 = vcvt.f32.s32 %v2811
      %v2818 = vshll.u32 %v2817, 16
      %v2819 = vadd.s32 %v2818, %v2816
      %v2820 = vsel %vm304, %v942, 2147483647
      %v2821 = vand.u32 %v2820, 65535
      %v2822 = vshra.s32 %v2820, 16
      %v2823 = vcvt.s32.f32 %v2821
      %v2824 = vcvt.s32.f32 %v2822
      %2825 = vmin.xlane.f32.xlu0 %v2824
      %v2826 = vpop.xlane.xlu0 %2825
      %vm2827 = vcmp.eq.f32.partialorder %v2824, %v2826
      %v2828 = vsel %vm2827, %v2823, inf
      %2829 = vmin.xlane.f32.xlu0 %v2828
      %v2830 = vpop.xlane.xlu0 %2829
      %v2831 = vcvt.f32.s32 %v2830
      %v2832 = vcvt.f32.s32 %v2826
      %v2833 = vshll.u32 %v2832, 16
      %v2834 = vadd.s32 %v2833, %v2831
      %v2835 = vsel %vm304, %v943, 2147483647
      %v2836 = vand.u32 %v2835, 65535
      %v2837 = vshra.s32 %v2835, 16
      %v2838 = vcvt.s32.f32 %v2836
      %v2839 = vcvt.s32.f32 %v2837
      %2840 = vmin.xlane.f32.xlu0 %v2839
      %v2841 = vpop.xlane.xlu0 %2840
      %vm2842 = vcmp.eq.f32.partialorder %v2839, %v2841
      %v2843 = vsel %vm2842, %v2838, inf
      %2844 = vmin.xlane.f32.xlu0 %v2843
      %v2845 = vpop.xlane.xlu0 %2844
      %v2846 = vcvt.f32.s32 %v2845
      %v2847 = vcvt.f32.s32 %v2841
      %v2848 = vshll.u32 %v2847, 16
      %v2849 = vadd.s32 %v2848, %v2846
      %v2850 = vsel %vm304, %v944, 2147483647
      %v2851 = vand.u32 %v2850, 65535
      %v2852 = vshra.s32 %v2850, 16
      %v2853 = vcvt.s32.f32 %v2851
      %v2854 = vcvt.s32.f32 %v2852
      %2855 = vmin.xlane.f32.xlu0 %v2854
      %v2856 = vpop.xlane.xlu0 %2855
      %vm2857 = vcmp.eq.f32.partialorder %v2854, %v2856
      %v2858 = vsel %vm2857, %v2853, inf
      %2859 = vmin.xlane.f32.xlu0 %v2858
      %v2860 = vpop.xlane.xlu0 %2859
      %v2861 = vcvt.f32.s32 %v2860
      %v2862 = vcvt.f32.s32 %v2856
      %v2863 = vshll.u32 %v2862, 16
      %v2864 = vadd.s32 %v2863, %v2861
      %p2865 = scmp.eq.s32.totalorder %s19, 0
      // Predicated region
      $region29: #{tpu_custom_call.1} parent=27 // pred_check
        %p2866 = pneg %p2865
      $region30: #{tpu_custom_call.1} parent=27 // pred_check_branch
        %2868 = sbr.rel (%p2866) target = $region32
      $region31: #{tpu_custom_call.1} parent=27 // pred_region
        %vm2869 = vcmask 7168
        %2870 = vst.msk [vmem:[#allocation2] sm:$0xff] %vm2869, %v307
        %2871 = vst.msk [vmem:[#allocation2 + $0x8] sm:$0xff] %vm2869, %v310
        %2872 = vst.msk [vmem:[#allocation2 + $0x10] sm:$0xff] %vm2869, %v313
        %2873 = vst.msk [vmem:[#allocation2 + $0x18] sm:$0xff] %vm2869, %v316
        %2874 = vst.msk [vmem:[#allocation2 + $0x20] sm:$0xff] %vm2869, %v319
        %2875 = vst.msk [vmem:[#allocation2 + $0x28] sm:$0xff] %vm2869, %v322
        %2876 = vst.msk [vmem:[#allocation2 + $0x30] sm:$0xff] %vm2869, %v325
        %2877 = vst.msk [vmem:[#allocation2 + $0x38] sm:$0xff] %vm2869, %v328
        %2878 = vst.msk [vmem:[#allocation2 + $0x40] sm:$0xff] %vm2869, %v331
        %2879 = vst.msk [vmem:[#allocation2 + $0x48] sm:$0xff] %vm2869, %v334
        %2880 = vst.msk [vmem:[#allocation2 + $0x50] sm:$0xff] %vm2869, %v337
        %2881 = vst.msk [vmem:[#allocation2 + $0x58] sm:$0xff] %vm2869, %v340
        %2882 = vst.msk [vmem:[#allocation2 + $0x60] sm:$0xff] %vm2869, %v343
        %2883 = vst.msk [vmem:[#allocation2 + $0x68] sm:$0xff] %vm2869, %v346
        %2884 = vst.msk [vmem:[#allocation2 + $0x70] sm:$0xff] %vm2869, %v349
        %2885 = vst.msk [vmem:[#allocation2 + $0x78] sm:$0xff] %vm2869, %v352
        %2886 = vst.msk [vmem:[#allocation2 + $0x80] sm:$0xff] %vm2869, %v355
        %2887 = vst.msk [vmem:[#allocation2 + $0x88] sm:$0xff] %vm2869, %v358
        %2888 = vst.msk [vmem:[#allocation2 + $0x90] sm:$0xff] %vm2869, %v361
        %2889 = vst.msk [vmem:[#allocation2 + $0x98] sm:$0xff] %vm2869, %v364
        %2890 = vst.msk [vmem:[#allocation2 + $0xa0] sm:$0xff] %vm2869, %v367
        %2891 = vst.msk [vmem:[#allocation2 + $0xa8] sm:$0xff] %vm2869, %v370
        %2892 = vst.msk [vmem:[#allocation2 + $0xb0] sm:$0xff] %vm2869, %v373
        %2893 = vst.msk [vmem:[#allocation2 + $0xb8] sm:$0xff] %vm2869, %v376
        %2894 = vst.msk [vmem:[#allocation2 + $0xc0] sm:$0xff] %vm2869, %v379
        %2895 = vst.msk [vmem:[#allocation2 + $0xc8] sm:$0xff] %vm2869, %v382
        %2896 = vst.msk [vmem:[#allocation2 + $0xd0] sm:$0xff] %vm2869, %v385
        %2897 = vst.msk [vmem:[#allocation2 + $0xd8] sm:$0xff] %vm2869, %v388
        %2898 = vst.msk [vmem:[#allocation2 + $0xe0] sm:$0xff] %vm2869, %v391
        %2899 = vst.msk [vmem:[#allocation2 + $0xe8] sm:$0xff] %vm2869, %v394
        %2900 = vst.msk [vmem:[#allocation2 + $0xf0] sm:$0xff] %vm2869, %v397
        %2901 = vst.msk [vmem:[#allocation2 + $0xf8] sm:$0xff] %vm2869, %v400
        %2902 = vst.msk [vmem:[#allocation2 + $0x100] sm:$0xff] %vm2869, %v403
        %2903 = vst.msk [vmem:[#allocation2 + $0x108] sm:$0xff] %vm2869, %v406
        %2904 = vst.msk [vmem:[#allocation2 + $0x110] sm:$0xff] %vm2869, %v409
        %2905 = vst.msk [vmem:[#allocation2 + $0x118] sm:$0xff] %vm2869, %v412
        %2906 = vst.msk [vmem:[#allocation2 + $0x120] sm:$0xff] %vm2869, %v415
        %2907 = vst.msk [vmem:[#allocation2 + $0x128] sm:$0xff] %vm2869, %v418
        %2908 = vst.msk [vmem:[#allocation2 + $0x130] sm:$0xff] %vm2869, %v421
        %2909 = vst.msk [vmem:[#allocation2 + $0x138] sm:$0xff] %vm2869, %v424
        %2910 = vst.msk [vmem:[#allocation2 + $0x140] sm:$0xff] %vm2869, %v427
        %2911 = vst.msk [vmem:[#allocation2 + $0x148] sm:$0xff] %vm2869, %v430
        %2912 = vst.msk [vmem:[#allocation2 + $0x150] sm:$0xff] %vm2869, %v433
        %2913 = vst.msk [vmem:[#allocation2 + $0x158] sm:$0xff] %vm2869, %v436
        %2914 = vst.msk [vmem:[#allocation2 + $0x160] sm:$0xff] %vm2869, %v439
        %2915 = vst.msk [vmem:[#allocation2 + $0x168] sm:$0xff] %vm2869, %v442
        %2916 = vst.msk [vmem:[#allocation2 + $0x170] sm:$0xff] %vm2869, %v445
        %2917 = vst.msk [vmem:[#allocation2 + $0x178] sm:$0xff] %vm2869, %v448
        %2918 = vst.msk [vmem:[#allocation2 + $0x180] sm:$0xff] %vm2869, %v451
        %2919 = vst.msk [vmem:[#allocation2 + $0x188] sm:$0xff] %vm2869, %v454
        %2920 = vst.msk [vmem:[#allocation2 + $0x190] sm:$0xff] %vm2869, %v457
        %2921 = vst.msk [vmem:[#allocation2 + $0x198] sm:$0xff] %vm2869, %v460
        %2922 = vst.msk [vmem:[#allocation2 + $0x1a0] sm:$0xff] %vm2869, %v463
        %2923 = vst.msk [vmem:[#allocation2 + $0x1a8] sm:$0xff] %vm2869, %v466
        %2924 = vst.msk [vmem:[#allocation2 + $0x1b0] sm:$0xff] %vm2869, %v469
        %2925 = vst.msk [vmem:[#allocation2 + $0x1b8] sm:$0xff] %vm2869, %v472
        %2926 = vst.msk [vmem:[#allocation2 + $0x1c0] sm:$0xff] %vm2869, %v475
        %2927 = vst.msk [vmem:[#allocation2 + $0x1c8] sm:$0xff] %vm2869, %v478
        %2928 = vst.msk [vmem:[#allocation2 + $0x1d0] sm:$0xff] %vm2869, %v481
        %2929 = vst.msk [vmem:[#allocation2 + $0x1d8] sm:$0xff] %vm2869, %v484
        %2930 = vst.msk [vmem:[#allocation2 + $0x1e0] sm:$0xff] %vm2869, %v487
        %2931 = vst.msk [vmem:[#allocation2 + $0x1e8] sm:$0xff] %vm2869, %v490
        %2932 = vst.msk [vmem:[#allocation2 + $0x1f0] sm:$0xff] %vm2869, %v493
        %2933 = vst.msk [vmem:[#allocation2 + $0x1f8] sm:$0xff] %vm2869, %v496
        %2934 = vst.msk [vmem:[#allocation2 + $0x200] sm:$0xff] %vm2869, %v499
        %2935 = vst.msk [vmem:[#allocation2 + $0x208] sm:$0xff] %vm2869, %v502
        %2936 = vst.msk [vmem:[#allocation2 + $0x210] sm:$0xff] %vm2869, %v505
        %2937 = vst.msk [vmem:[#allocation2 + $0x218] sm:$0xff] %vm2869, %v508
        %2938 = vst.msk [vmem:[#allocation2 + $0x220] sm:$0xff] %vm2869, %v511
        %2939 = vst.msk [vmem:[#allocation2 + $0x228] sm:$0xff] %vm2869, %v514
        %2940 = vst.msk [vmem:[#allocation2 + $0x230] sm:$0xff] %vm2869, %v517
        %2941 = vst.msk [vmem:[#allocation2 + $0x238] sm:$0xff] %vm2869, %v520
        %2942 = vst.msk [vmem:[#allocation2 + $0x240] sm:$0xff] %vm2869, %v523
        %2943 = vst.msk [vmem:[#allocation2 + $0x248] sm:$0xff] %vm2869, %v526
        %2944 = vst.msk [vmem:[#allocation2 + $0x250] sm:$0xff] %vm2869, %v529
        %2945 = vst.msk [vmem:[#allocation2 + $0x258] sm:$0xff] %vm2869, %v532
        %2946 = vst.msk [vmem:[#allocation2 + $0x260] sm:$0xff] %vm2869, %v535
        %2947 = vst.msk [vmem:[#allocation2 + $0x268] sm:$0xff] %vm2869, %v538
        %2948 = vst.msk [vmem:[#allocation2 + $0x270] sm:$0xff] %vm2869, %v541
        %2949 = vst.msk [vmem:[#allocation2 + $0x278] sm:$0xff] %vm2869, %v544
        %2950 = vst.msk [vmem:[#allocation2 + $0x280] sm:$0xff] %vm2869, %v547
        %2951 = vst.msk [vmem:[#allocation2 + $0x288] sm:$0xff] %vm2869, %v550
        %2952 = vst.msk [vmem:[#allocation2 + $0x290] sm:$0xff] %vm2869, %v553
        %2953 = vst.msk [vmem:[#allocation2 + $0x298] sm:$0xff] %vm2869, %v556
        %2954 = vst.msk [vmem:[#allocation2 + $0x2a0] sm:$0xff] %vm2869, %v559
        %2955 = vst.msk [vmem:[#allocation2 + $0x2a8] sm:$0xff] %vm2869, %v562
        %2956 = vst.msk [vmem:[#allocation2 + $0x2b0] sm:$0xff] %vm2869, %v565
        %2957 = vst.msk [vmem:[#allocation2 + $0x2b8] sm:$0xff] %vm2869, %v568
        %2958 = vst.msk [vmem:[#allocation2 + $0x2c0] sm:$0xff] %vm2869, %v571
        %2959 = vst.msk [vmem:[#allocation2 + $0x2c8] sm:$0xff] %vm2869, %v574
        %2960 = vst.msk [vmem:[#allocation2 + $0x2d0] sm:$0xff] %vm2869, %v577
        %2961 = vst.msk [vmem:[#allocation2 + $0x2d8] sm:$0xff] %vm2869, %v580
        %2962 = vst.msk [vmem:[#allocation2 + $0x2e0] sm:$0xff] %vm2869, %v583
        %2963 = vst.msk [vmem:[#allocation2 + $0x2e8] sm:$0xff] %vm2869, %v586
        %2964 = vst.msk [vmem:[#allocation2 + $0x2f0] sm:$0xff] %vm2869, %v589
        %2965 = vst.msk [vmem:[#allocation2 + $0x2f8] sm:$0xff] %vm2869, %v592
        %2966 = vst.msk [vmem:[#allocation2 + $0x300] sm:$0xff] %vm2869, %v595
        %2967 = vst.msk [vmem:[#allocation2 + $0x308] sm:$0xff] %vm2869, %v598
        %2968 = vst.msk [vmem:[#allocation2 + $0x310] sm:$0xff] %vm2869, %v601
        %2969 = vst.msk [vmem:[#allocation2 + $0x318] sm:$0xff] %vm2869, %v604
        %2970 = vst.msk [vmem:[#allocation2 + $0x320] sm:$0xff] %vm2869, %v607
        %2971 = vst.msk [vmem:[#allocation2 + $0x328] sm:$0xff] %vm2869, %v610
        %2972 = vst.msk [vmem:[#allocation2 + $0x330] sm:$0xff] %vm2869, %v613
        %2973 = vst.msk [vmem:[#allocation2 + $0x338] sm:$0xff] %vm2869, %v616
        %2974 = vst.msk [vmem:[#allocation2 + $0x340] sm:$0xff] %vm2869, %v619
        %2975 = vst.msk [vmem:[#allocation2 + $0x348] sm:$0xff] %vm2869, %v622
        %2976 = vst.msk [vmem:[#allocation2 + $0x350] sm:$0xff] %vm2869, %v625
        %2977 = vst.msk [vmem:[#allocation2 + $0x358] sm:$0xff] %vm2869, %v628
        %2978 = vst.msk [vmem:[#allocation2 + $0x360] sm:$0xff] %vm2869, %v631
        %2979 = vst.msk [vmem:[#allocation2 + $0x368] sm:$0xff] %vm2869, %v634
        %2980 = vst.msk [vmem:[#allocation2 + $0x370] sm:$0xff] %vm2869, %v637
        %2981 = vst.msk [vmem:[#allocation2 + $0x378] sm:$0xff] %vm2869, %v640
        %2982 = vst.msk [vmem:[#allocation2 + $0x380] sm:$0xff] %vm2869, %v643
        %2983 = vst.msk [vmem:[#allocation2 + $0x388] sm:$0xff] %vm2869, %v646
        %2984 = vst.msk [vmem:[#allocation2 + $0x390] sm:$0xff] %vm2869, %v649
        %2985 = vst.msk [vmem:[#allocation2 + $0x398] sm:$0xff] %vm2869, %v652
        %2986 = vst.msk [vmem:[#allocation2 + $0x3a0] sm:$0xff] %vm2869, %v655
        %2987 = vst.msk [vmem:[#allocation2 + $0x3a8] sm:$0xff] %vm2869, %v658
        %2988 = vst.msk [vmem:[#allocation2 + $0x3b0] sm:$0xff] %vm2869, %v661
        %2989 = vst.msk [vmem:[#allocation2 + $0x3b8] sm:$0xff] %vm2869, %v664
        %2990 = vst.msk [vmem:[#allocation2 + $0x3c0] sm:$0xff] %vm2869, %v667
        %2991 = vst.msk [vmem:[#allocation2 + $0x3c8] sm:$0xff] %vm2869, %v670
        %2992 = vst.msk [vmem:[#allocation2 + $0x3d0] sm:$0xff] %vm2869, %v673
        %2993 = vst.msk [vmem:[#allocation2 + $0x3d8] sm:$0xff] %vm2869, %v676
        %2994 = vst.msk [vmem:[#allocation2 + $0x3e0] sm:$0xff] %vm2869, %v679
        %2995 = vst.msk [vmem:[#allocation2 + $0x3e8] sm:$0xff] %vm2869, %v682
        %2996 = vst.msk [vmem:[#allocation2 + $0x3f0] sm:$0xff] %vm2869, %v685
        %2997 = vst.msk [vmem:[#allocation2 + $0x3f8] sm:$0xff] %vm2869, %v688
        %2998 = vst.msk [vmem:[#allocation3] sm:$0xff] %vm2869, %v959
        %2999 = vst.msk [vmem:[#allocation3 + $0x8] sm:$0xff] %vm2869, %v974
        %3000 = vst.msk [vmem:[#allocation3 + $0x10] sm:$0xff] %vm2869, %v989
        %3001 = vst.msk [vmem:[#allocation3 + $0x18] sm:$0xff] %vm2869, %v1004
        %3002 = vst.msk [vmem:[#allocation3 + $0x20] sm:$0xff] %vm2869, %v1019
        %3003 = vst.msk [vmem:[#allocation3 + $0x28] sm:$0xff] %vm2869, %v1034
        %3004 = vst.msk [vmem:[#allocation3 + $0x30] sm:$0xff] %vm2869, %v1049
        %3005 = vst.msk [vmem:[#allocation3 + $0x38] sm:$0xff] %vm2869, %v1064
        %3006 = vst.msk [vmem:[#allocation3 + $0x40] sm:$0xff] %vm2869, %v1079
        %3007 = vst.msk [vmem:[#allocation3 + $0x48] sm:$0xff] %vm2869, %v1094
        %3008 = vst.msk [vmem:[#allocation3 + $0x50] sm:$0xff] %vm2869, %v1109
        %3009 = vst.msk [vmem:[#allocation3 + $0x58] sm:$0xff] %vm2869, %v1124
        %3010 = vst.msk [vmem:[#allocation3 + $0x60] sm:$0xff] %vm2869, %v1139
        %3011 = vst.msk [vmem:[#allocation3 + $0x68] sm:$0xff] %vm2869, %v1154
        %3012 = vst.msk [vmem:[#allocation3 + $0x70] sm:$0xff] %vm2869, %v1169
        %3013 = vst.msk [vmem:[#allocation3 + $0x78] sm:$0xff] %vm2869, %v1184
        %3014 = vst.msk [vmem:[#allocation3 + $0x80] sm:$0xff] %vm2869, %v1199
        %3015 = vst.msk [vmem:[#allocation3 + $0x88] sm:$0xff] %vm2869, %v1214
        %3016 = vst.msk [vmem:[#allocation3 + $0x90] sm:$0xff] %vm2869, %v1229
        %3017 = vst.msk [vmem:[#allocation3 + $0x98] sm:$0xff] %vm2869, %v1244
        %3018 = vst.msk [vmem:[#allocation3 + $0xa0] sm:$0xff] %vm2869, %v1259
        %3019 = vst.msk [vmem:[#allocation3 + $0xa8] sm:$0xff] %vm2869, %v1274
        %3020 = vst.msk [vmem:[#allocation3 + $0xb0] sm:$0xff] %vm2869, %v1289
        %3021 = vst.msk [vmem:[#allocation3 + $0xb8] sm:$0xff] %vm2869, %v1304
        %3022 = vst.msk [vmem:[#allocation3 + $0xc0] sm:$0xff] %vm2869, %v1319
        %3023 = vst.msk [vmem:[#allocation3 + $0xc8] sm:$0xff] %vm2869, %v1334
        %3024 = vst.msk [vmem:[#allocation3 + $0xd0] sm:$0xff] %vm2869, %v1349
        %3025 = vst.msk [vmem:[#allocation3 + $0xd8] sm:$0xff] %vm2869, %v1364
        %3026 = vst.msk [vmem:[#allocation3 + $0xe0] sm:$0xff] %vm2869, %v1379
        %3027 = vst.msk [vmem:[#allocation3 + $0xe8] sm:$0xff] %vm2869, %v1394
        %3028 = vst.msk [vmem:[#allocation3 + $0xf0] sm:$0xff] %vm2869, %v1409
        %3029 = vst.msk [vmem:[#allocation3 + $0xf8] sm:$0xff] %vm2869, %v1424
        %3030 = vst.msk [vmem:[#allocation3 + $0x100] sm:$0xff] %vm2869, %v1439
        %3031 = vst.msk [vmem:[#allocation3 + $0x108] sm:$0xff] %vm2869, %v1454
        %3032 = vst.msk [vmem:[#allocation3 + $0x110] sm:$0xff] %vm2869, %v1469
        %3033 = vst.msk [vmem:[#allocation3 + $0x118] sm:$0xff] %vm2869, %v1484
        %3034 = vst.msk [vmem:[#allocation3 + $0x120] sm:$0xff] %vm2869, %v1499
        %3035 = vst.msk [vmem:[#allocation3 + $0x128] sm:$0xff] %vm2869, %v1514
        %3036 = vst.msk [vmem:[#allocation3 + $0x130] sm:$0xff] %vm2869, %v1529
        %3037 = vst.msk [vmem:[#allocation3 + $0x138] sm:$0xff] %vm2869, %v1544
        %3038 = vst.msk [vmem:[#allocation3 + $0x140] sm:$0xff] %vm2869, %v1559
        %3039 = vst.msk [vmem:[#allocation3 + $0x148] sm:$0xff] %vm2869, %v1574
        %3040 = vst.msk [vmem:[#allocation3 + $0x150] sm:$0xff] %vm2869, %v1589
        %3041 = vst.msk [vmem:[#allocation3 + $0x158] sm:$0xff] %vm2869, %v1604
        %3042 = vst.msk [vmem:[#allocation3 + $0x160] sm:$0xff] %vm2869, %v1619
        %3043 = vst.msk [vmem:[#allocation3 + $0x168] sm:$0xff] %vm2869, %v1634
        %3044 = vst.msk [vmem:[#allocation3 + $0x170] sm:$0xff] %vm2869, %v1649
        %3045 = vst.msk [vmem:[#allocation3 + $0x178] sm:$0xff] %vm2869, %v1664
        %3046 = vst.msk [vmem:[#allocation3 + $0x180] sm:$0xff] %vm2869, %v1679
        %3047 = vst.msk [vmem:[#allocation3 + $0x188] sm:$0xff] %vm2869, %v1694
        %3048 = vst.msk [vmem:[#allocation3 + $0x190] sm:$0xff] %vm2869, %v1709
        %3049 = vst.msk [vmem:[#allocation3 + $0x198] sm:$0xff] %vm2869, %v1724
        %3050 = vst.msk [vmem:[#allocation3 + $0x1a0] sm:$0xff] %vm2869, %v1739
        %3051 = vst.msk [vmem:[#allocation3 + $0x1a8] sm:$0xff] %vm2869, %v1754
        %3052 = vst.msk [vmem:[#allocation3 + $0x1b0] sm:$0xff] %vm2869, %v1769
        %3053 = vst.msk [vmem:[#allocation3 + $0x1b8] sm:$0xff] %vm2869, %v1784
        %3054 = vst.msk [vmem:[#allocation3 + $0x1c0] sm:$0xff] %vm2869, %v1799
        %3055 = vst.msk [vmem:[#allocation3 + $0x1c8] sm:$0xff] %vm2869, %v1814
        %3056 = vst.msk [vmem:[#allocation3 + $0x1d0] sm:$0xff] %vm2869, %v1829
        %3057 = vst.msk [vmem:[#allocation3 + $0x1d8] sm:$0xff] %vm2869, %v1844
        %3058 = vst.msk [vmem:[#allocation3 + $0x1e0] sm:$0xff] %vm2869, %v1859
        %3059 = vst.msk [vmem:[#allocation3 + $0x1e8] sm:$0xff] %vm2869, %v1874
        %3060 = vst.msk [vmem:[#allocation3 + $0x1f0] sm:$0xff] %vm2869, %v1889
        %3061 = vst.msk [vmem:[#allocation3 + $0x1f8] sm:$0xff] %vm2869, %v1904
        %3062 = vst.msk [vmem:[#allocation3 + $0x200] sm:$0xff] %vm2869, %v1919
        %3063 = vst.msk [vmem:[#allocation3 + $0x208] sm:$0xff] %vm2869, %v1934
        %3064 = vst.msk [vmem:[#allocation3 + $0x210] sm:$0xff] %vm2869, %v1949
        %3065 = vst.msk [vmem:[#allocation3 + $0x218] sm:$0xff] %vm2869, %v1964
        %3066 = vst.msk [vmem:[#allocation3 + $0x220] sm:$0xff] %vm2869, %v1979
        %3067 = vst.msk [vmem:[#allocation3 + $0x228] sm:$0xff] %vm2869, %v1994
        %3068 = vst.msk [vmem:[#allocation3 + $0x230] sm:$0xff] %vm2869, %v2009
        %3069 = vst.msk [vmem:[#allocation3 + $0x238] sm:$0xff] %vm2869, %v2024
        %3070 = vst.msk [vmem:[#allocation3 + $0x240] sm:$0xff] %vm2869, %v2039
        %3071 = vst.msk [vmem:[#allocation3 + $0x248] sm:$0xff] %vm2869, %v2054
        %3072 = vst.msk [vmem:[#allocation3 + $0x250] sm:$0xff] %vm2869, %v2069
        %3073 = vst.msk [vmem:[#allocation3 + $0x258] sm:$0xff] %vm2869, %v2084
        %3074 = vst.msk [vmem:[#allocation3 + $0x260] sm:$0xff] %vm2869, %v2099
        %3075 = vst.msk [vmem:[#allocation3 + $0x268] sm:$0xff] %vm2869, %v2114
        %3076 = vst.msk [vmem:[#allocation3 + $0x270] sm:$0xff] %vm2869, %v2129
        %3077 = vst.msk [vmem:[#allocation3 + $0x278] sm:$0xff] %vm2869, %v2144
        %3078 = vst.msk [vmem:[#allocation3 + $0x280] sm:$0xff] %vm2869, %v2159
        %3079 = vst.msk [vmem:[#allocation3 + $0x288] sm:$0xff] %vm2869, %v2174
        %3080 = vst.msk [vmem:[#allocation3 + $0x290] sm:$0xff] %vm2869, %v2189
        %3081 = vst.msk [vmem:[#allocation3 + $0x298] sm:$0xff] %vm2869, %v2204
        %3082 = vst.msk [vmem:[#allocation3 + $0x2a0] sm:$0xff] %vm2869, %v2219
        %3083 = vst.msk [vmem:[#allocation3 + $0x2a8] sm:$0xff] %vm2869, %v2234
        %3084 = vst.msk [vmem:[#allocation3 + $0x2b0] sm:$0xff] %vm2869, %v2249
        %3085 = vst.msk [vmem:[#allocation3 + $0x2b8] sm:$0xff] %vm2869, %v2264
        %3086 = vst.msk [vmem:[#allocation3 + $0x2c0] sm:$0xff] %vm2869, %v2279
        %3087 = vst.msk [vmem:[#allocation3 + $0x2c8] sm:$0xff] %vm2869, %v2294
        %3088 = vst.msk [vmem:[#allocation3 + $0x2d0] sm:$0xff] %vm2869, %v2309
        %3089 = vst.msk [vmem:[#allocation3 + $0x2d8] sm:$0xff] %vm2869, %v2324
        %3090 = vst.msk [vmem:[#allocation3 + $0x2e0] sm:$0xff] %vm2869, %v2339
        %3091 = vst.msk [vmem:[#allocation3 + $0x2e8] sm:$0xff] %vm2869, %v2354
        %3092 = vst.msk [vmem:[#allocation3 + $0x2f0] sm:$0xff] %vm2869, %v2369
        %3093 = vst.msk [vmem:[#allocation3 + $0x2f8] sm:$0xff] %vm2869, %v2384
        %3094 = vst.msk [vmem:[#allocation3 + $0x300] sm:$0xff] %vm2869, %v2399
        %3095 = vst.msk [vmem:[#allocation3 + $0x308] sm:$0xff] %vm2869, %v2414
        %3096 = vst.msk [vmem:[#allocation3 + $0x310] sm:$0xff] %vm2869, %v2429
        %3097 = vst.msk [vmem:[#allocation3 + $0x318] sm:$0xff] %vm2869, %v2444
        %3098 = vst.msk [vmem:[#allocation3 + $0x320] sm:$0xff] %vm2869, %v2459
        %3099 = vst.msk [vmem:[#allocation3 + $0x328] sm:$0xff] %vm2869, %v2474
        %3100 = vst.msk [vmem:[#allocation3 + $0x330] sm:$0xff] %vm2869, %v2489
        %3101 = vst.msk [vmem:[#allocation3 + $0x338] sm:$0xff] %vm2869, %v2504
        %3102 = vst.msk [vmem:[#allocation3 + $0x340] sm:$0xff] %vm2869, %v2519
        %3103 = vst.msk [vmem:[#allocation3 + $0x348] sm:$0xff] %vm2869, %v2534
        %3104 = vst.msk [vmem:[#allocation3 + $0x350] sm:$0xff] %vm2869, %v2549
        %3105 = vst.msk [vmem:[#allocation3 + $0x358] sm:$0xff] %vm2869, %v2564
        %3106 = vst.msk [vmem:[#allocation3 + $0x360] sm:$0xff] %vm2869, %v2579
        %3107 = vst.msk [vmem:[#allocation3 + $0x368] sm:$0xff] %vm2869, %v2594
        %3108 = vst.msk [vmem:[#allocation3 + $0x370] sm:$0xff] %vm2869, %v2609
        %3109 = vst.msk [vmem:[#allocation3 + $0x378] sm:$0xff] %vm2869, %v2624
        %3110 = vst.msk [vmem:[#allocation3 + $0x380] sm:$0xff] %vm2869, %v2639
        %3111 = vst.msk [vmem:[#allocation3 + $0x388] sm:$0xff] %vm2869, %v2654
        %3112 = vst.msk [vmem:[#allocation3 + $0x390] sm:$0xff] %vm2869, %v2669
        %3113 = vst.msk [vmem:[#allocation3 + $0x398] sm:$0xff] %vm2869, %v2684
        %3114 = vst.msk [vmem:[#allocation3 + $0x3a0] sm:$0xff] %vm2869, %v2699
        %3115 = vst.msk [vmem:[#allocation3 + $0x3a8] sm:$0xff] %vm2869, %v2714
        %3116 = vst.msk [vmem:[#allocation3 + $0x3b0] sm:$0xff] %vm2869, %v2729
        %3117 = vst.msk [vmem:[#allocation3 + $0x3b8] sm:$0xff] %vm2869, %v2744
        %3118 = vst.msk [vmem:[#allocation3 + $0x3c0] sm:$0xff] %vm2869, %v2759
        %3119 = vst.msk [vmem:[#allocation3 + $0x3c8] sm:$0xff] %vm2869, %v2774
        %3120 = vst.msk [vmem:[#allocation3 + $0x3d0] sm:$0xff] %vm2869, %v2789
        %3121 = vst.msk [vmem:[#allocation3 + $0x3d8] sm:$0xff] %vm2869, %v2804
        %3122 = vst.msk [vmem:[#allocation3 + $0x3e0] sm:$0xff] %vm2869, %v2819
        %3123 = vst.msk [vmem:[#allocation3 + $0x3e8] sm:$0xff] %vm2869, %v2834
        %3124 = vst.msk [vmem:[#allocation3 + $0x3f0] sm:$0xff] %vm2869, %v2849
        %3125 = vst.msk [vmem:[#allocation3 + $0x3f8] sm:$0xff] %vm2869, %v2864
      $region32: #{tpu_custom_call.1} parent=27 // pred_fallthru
        _
      %p3126 = scmp.gt.s32.totalorder %s19, 0
      // Predicated region
      $region33: #{tpu_custom_call.1} parent=27 // pred_check
        %p3127 = pneg %p3126
      $region34: #{tpu_custom_call.1} parent=27 // pred_check_branch
        %3129 = sbr.rel (%p3127) target = $region36
      $region35: #{tpu_custom_call.1} parent=27 // pred_region
        %v3130 = vld [vmem:[#allocation2] sm:$0xff]
        %v3131 = vld [vmem:[#allocation2 + $0x8] sm:$0xff]
        %v3132 = vld [vmem:[#allocation2 + $0x10] sm:$0xff]
        %v3133 = vld [vmem:[#allocation2 + $0x18] sm:$0xff]
        %v3134 = vld [vmem:[#allocation2 + $0x20] sm:$0xff]
        %v3135 = vld [vmem:[#allocation2 + $0x28] sm:$0xff]
        %v3136 = vld [vmem:[#allocation2 + $0x30] sm:$0xff]
        %v3137 = vld [vmem:[#allocation2 + $0x38] sm:$0xff]
        %v3138 = vld [vmem:[#allocation2 + $0x40] sm:$0xff]
        %v3139 = vld [vmem:[#allocation2 + $0x48] sm:$0xff]
        %v3140 = vld [vmem:[#allocation2 + $0x50] sm:$0xff]
        %v3141 = vld [vmem:[#allocation2 + $0x58] sm:$0xff]
        %v3142 = vld [vmem:[#allocation2 + $0x60] sm:$0xff]
        %v3143 = vld [vmem:[#allocation2 + $0x68] sm:$0xff]
        %v3144 = vld [vmem:[#allocation2 + $0x70] sm:$0xff]
        %v3145 = vld [vmem:[#allocation2 + $0x78] sm:$0xff]
        %v3146 = vld [vmem:[#allocation2 + $0x80] sm:$0xff]
        %v3147 = vld [vmem:[#allocation2 + $0x88] sm:$0xff]
        %v3148 = vld [vmem:[#allocation2 + $0x90] sm:$0xff]
        %v3149 = vld [vmem:[#allocation2 + $0x98] sm:$0xff]
        %v3150 = vld [vmem:[#allocation2 + $0xa0] sm:$0xff]
        %v3151 = vld [vmem:[#allocation2 + $0xa8] sm:$0xff]
        %v3152 = vld [vmem:[#allocation2 + $0xb0] sm:$0xff]
        %v3153 = vld [vmem:[#allocation2 + $0xb8] sm:$0xff]
        %v3154 = vld [vmem:[#allocation2 + $0xc0] sm:$0xff]
        %v3155 = vld [vmem:[#allocation2 + $0xc8] sm:$0xff]
        %v3156 = vld [vmem:[#allocation2 + $0xd0] sm:$0xff]
        %v3157 = vld [vmem:[#allocation2 + $0xd8] sm:$0xff]
        %v3158 = vld [vmem:[#allocation2 + $0xe0] sm:$0xff]
        %v3159 = vld [vmem:[#allocation2 + $0xe8] sm:$0xff]
        %v3160 = vld [vmem:[#allocation2 + $0xf0] sm:$0xff]
        %v3161 = vld [vmem:[#allocation2 + $0xf8] sm:$0xff]
        %v3162 = vld [vmem:[#allocation2 + $0x100] sm:$0xff]
        %v3163 = vld [vmem:[#allocation2 + $0x108] sm:$0xff]
        %v3164 = vld [vmem:[#allocation2 + $0x110] sm:$0xff]
        %v3165 = vld [vmem:[#allocation2 + $0x118] sm:$0xff]
        %v3166 = vld [vmem:[#allocation2 + $0x120] sm:$0xff]
        %v3167 = vld [vmem:[#allocation2 + $0x128] sm:$0xff]
        %v3168 = vld [vmem:[#allocation2 + $0x130] sm:$0xff]
        %v3169 = vld [vmem:[#allocation2 + $0x138] sm:$0xff]
        %v3170 = vld [vmem:[#allocation2 + $0x140] sm:$0xff]
        %v3171 = vld [vmem:[#allocation2 + $0x148] sm:$0xff]
        %v3172 = vld [vmem:[#allocation2 + $0x150] sm:$0xff]
        %v3173 = vld [vmem:[#allocation2 + $0x158] sm:$0xff]
        %v3174 = vld [vmem:[#allocation2 + $0x160] sm:$0xff]
        %v3175 = vld [vmem:[#allocation2 + $0x168] sm:$0xff]
        %v3176 = vld [vmem:[#allocation2 + $0x170] sm:$0xff]
        %v3177 = vld [vmem:[#allocation2 + $0x178] sm:$0xff]
        %v3178 = vld [vmem:[#allocation2 + $0x180] sm:$0xff]
        %v3179 = vld [vmem:[#allocation2 + $0x188] sm:$0xff]
        %v3180 = vld [vmem:[#allocation2 + $0x190] sm:$0xff]
        %v3181 = vld [vmem:[#allocation2 + $0x198] sm:$0xff]
        %v3182 = vld [vmem:[#allocation2 + $0x1a0] sm:$0xff]
        %v3183 = vld [vmem:[#allocation2 + $0x1a8] sm:$0xff]
        %v3184 = vld [vmem:[#allocation2 + $0x1b0] sm:$0xff]
        %v3185 = vld [vmem:[#allocation2 + $0x1b8] sm:$0xff]
        %v3186 = vld [vmem:[#allocation2 + $0x1c0] sm:$0xff]
        %v3187 = vld [vmem:[#allocation2 + $0x1c8] sm:$0xff]
        %v3188 = vld [vmem:[#allocation2 + $0x1d0] sm:$0xff]
        %v3189 = vld [vmem:[#allocation2 + $0x1d8] sm:$0xff]
        %v3190 = vld [vmem:[#allocation2 + $0x1e0] sm:$0xff]
        %v3191 = vld [vmem:[#allocation2 + $0x1e8] sm:$0xff]
        %v3192 = vld [vmem:[#allocation2 + $0x1f0] sm:$0xff]
        %v3193 = vld [vmem:[#allocation2 + $0x1f8] sm:$0xff]
        %v3194 = vld [vmem:[#allocation2 + $0x200] sm:$0xff]
        %v3195 = vld [vmem:[#allocation2 + $0x208] sm:$0xff]
        %v3196 = vld [vmem:[#allocation2 + $0x210] sm:$0xff]
        %v3197 = vld [vmem:[#allocation2 + $0x218] sm:$0xff]
        %v3198 = vld [vmem:[#allocation2 + $0x220] sm:$0xff]
        %v3199 = vld [vmem:[#allocation2 + $0x228] sm:$0xff]
        %v3200 = vld [vmem:[#allocation2 + $0x230] sm:$0xff]
        %v3201 = vld [vmem:[#allocation2 + $0x238] sm:$0xff]
        %v3202 = vld [vmem:[#allocation2 + $0x240] sm:$0xff]
        %v3203 = vld [vmem:[#allocation2 + $0x248] sm:$0xff]
        %v3204 = vld [vmem:[#allocation2 + $0x250] sm:$0xff]
        %v3205 = vld [vmem:[#allocation2 + $0x258] sm:$0xff]
        %v3206 = vld [vmem:[#allocation2 + $0x260] sm:$0xff]
        %v3207 = vld [vmem:[#allocation2 + $0x268] sm:$0xff]
        %v3208 = vld [vmem:[#allocation2 + $0x270] sm:$0xff]
        %v3209 = vld [vmem:[#allocation2 + $0x278] sm:$0xff]
        %v3210 = vld [vmem:[#allocation2 + $0x280] sm:$0xff]
        %v3211 = vld [vmem:[#allocation2 + $0x288] sm:$0xff]
        %v3212 = vld [vmem:[#allocation2 + $0x290] sm:$0xff]
        %v3213 = vld [vmem:[#allocation2 + $0x298] sm:$0xff]
        %v3214 = vld [vmem:[#allocation2 + $0x2a0] sm:$0xff]
        %v3215 = vld [vmem:[#allocation2 + $0x2a8] sm:$0xff]
        %v3216 = vld [vmem:[#allocation2 + $0x2b0] sm:$0xff]
        %v3217 = vld [vmem:[#allocation2 + $0x2b8] sm:$0xff]
        %v3218 = vld [vmem:[#allocation2 + $0x2c0] sm:$0xff]
        %v3219 = vld [vmem:[#allocation2 + $0x2c8] sm:$0xff]
        %v3220 = vld [vmem:[#allocation2 + $0x2d0] sm:$0xff]
        %v3221 = vld [vmem:[#allocation2 + $0x2d8] sm:$0xff]
        %v3222 = vld [vmem:[#allocation2 + $0x2e0] sm:$0xff]
        %v3223 = vld [vmem:[#allocation2 + $0x2e8] sm:$0xff]
        %v3224 = vld [vmem:[#allocation2 + $0x2f0] sm:$0xff]
        %v3225 = vld [vmem:[#allocation2 + $0x2f8] sm:$0xff]
        %v3226 = vld [vmem:[#allocation2 + $0x300] sm:$0xff]
        %v3227 = vld [vmem:[#allocation2 + $0x308] sm:$0xff]
        %v3228 = vld [vmem:[#allocation2 + $0x310] sm:$0xff]
        %v3229 = vld [vmem:[#allocation2 + $0x318] sm:$0xff]
        %v3230 = vld [vmem:[#allocation2 + $0x320] sm:$0xff]
        %v3231 = vld [vmem:[#allocation2 + $0x328] sm:$0xff]
        %v3232 = vld [vmem:[#allocation2 + $0x330] sm:$0xff]
        %v3233 = vld [vmem:[#allocation2 + $0x338] sm:$0xff]
        %v3234 = vld [vmem:[#allocation2 + $0x340] sm:$0xff]
        %v3235 = vld [vmem:[#allocation2 + $0x348] sm:$0xff]
        %v3236 = vld [vmem:[#allocation2 + $0x350] sm:$0xff]
        %v3237 = vld [vmem:[#allocation2 + $0x358] sm:$0xff]
        %v3238 = vld [vmem:[#allocation2 + $0x360] sm:$0xff]
        %v3239 = vld [vmem:[#allocation2 + $0x368] sm:$0xff]
        %v3240 = vld [vmem:[#allocation2 + $0x370] sm:$0xff]
        %v3241 = vld [vmem:[#allocation2 + $0x378] sm:$0xff]
        %v3242 = vld [vmem:[#allocation2 + $0x380] sm:$0xff]
        %v3243 = vld [vmem:[#allocation2 + $0x388] sm:$0xff]
        %v3244 = vld [vmem:[#allocation2 + $0x390] sm:$0xff]
        %v3245 = vld [vmem:[#allocation2 + $0x398] sm:$0xff]
        %v3246 = vld [vmem:[#allocation2 + $0x3a0] sm:$0xff]
        %v3247 = vld [vmem:[#allocation2 + $0x3a8] sm:$0xff]
        %v3248 = vld [vmem:[#allocation2 + $0x3b0] sm:$0xff]
        %v3249 = vld [vmem:[#allocation2 + $0x3b8] sm:$0xff]
        %v3250 = vld [vmem:[#allocation2 + $0x3c0] sm:$0xff]
        %v3251 = vld [vmem:[#allocation2 + $0x3c8] sm:$0xff]
        %v3252 = vld [vmem:[#allocation2 + $0x3d0] sm:$0xff]
        %v3253 = vld [vmem:[#allocation2 + $0x3d8] sm:$0xff]
        %v3254 = vld [vmem:[#allocation2 + $0x3e0] sm:$0xff]
        %v3255 = vld [vmem:[#allocation2 + $0x3e8] sm:$0xff]
        %v3256 = vld [vmem:[#allocation2 + $0x3f0] sm:$0xff]
        %v3257 = vld [vmem:[#allocation2 + $0x3f8] sm:$0xff]
        %v3258 = vld [vmem:[#allocation3] sm:$0xff]
        %v3259 = vld [vmem:[#allocation3 + $0x8] sm:$0xff]
        %v3260 = vld [vmem:[#allocation3 + $0x10] sm:$0xff]
        %v3261 = vld [vmem:[#allocation3 + $0x18] sm:$0xff]
        %v3262 = vld [vmem:[#allocation3 + $0x20] sm:$0xff]
        %v3263 = vld [vmem:[#allocation3 + $0x28] sm:$0xff]
        %v3264 = vld [vmem:[#allocation3 + $0x30] sm:$0xff]
        %v3265 = vld [vmem:[#allocation3 + $0x38] sm:$0xff]
        %v3266 = vld [vmem:[#allocation3 + $0x40] sm:$0xff]
        %v3267 = vld [vmem:[#allocation3 + $0x48] sm:$0xff]
        %v3268 = vld [vmem:[#allocation3 + $0x50] sm:$0xff]
        %v3269 = vld [vmem:[#allocation3 + $0x58] sm:$0xff]
        %v3270 = vld [vmem:[#allocation3 + $0x60] sm:$0xff]
        %v3271 = vld [vmem:[#allocation3 + $0x68] sm:$0xff]
        %v3272 = vld [vmem:[#allocation3 + $0x70] sm:$0xff]
        %v3273 = vld [vmem:[#allocation3 + $0x78] sm:$0xff]
        %v3274 = vld [vmem:[#allocation3 + $0x80] sm:$0xff]
        %v3275 = vld [vmem:[#allocation3 + $0x88] sm:$0xff]
        %v3276 = vld [vmem:[#allocation3 + $0x90] sm:$0xff]
        %v3277 = vld [vmem:[#allocation3 + $0x98] sm:$0xff]
        %v3278 = vld [vmem:[#allocation3 + $0xa0] sm:$0xff]
        %v3279 = vld [vmem:[#allocation3 + $0xa8] sm:$0xff]
        %v3280 = vld [vmem:[#allocation3 + $0xb0] sm:$0xff]
        %v3281 = vld [vmem:[#allocation3 + $0xb8] sm:$0xff]
        %v3282 = vld [vmem:[#allocation3 + $0xc0] sm:$0xff]
        %v3283 = vld [vmem:[#allocation3 + $0xc8] sm:$0xff]
        %v3284 = vld [vmem:[#allocation3 + $0xd0] sm:$0xff]
        %v3285 = vld [vmem:[#allocation3 + $0xd8] sm:$0xff]
        %v3286 = vld [vmem:[#allocation3 + $0xe0] sm:$0xff]
        %v3287 = vld [vmem:[#allocation3 + $0xe8] sm:$0xff]
        %v3288 = vld [vmem:[#allocation3 + $0xf0] sm:$0xff]
        %v3289 = vld [vmem:[#allocation3 + $0xf8] sm:$0xff]
        %v3290 = vld [vmem:[#allocation3 + $0x100] sm:$0xff]
        %v3291 = vld [vmem:[#allocation3 + $0x108] sm:$0xff]
        %v3292 = vld [vmem:[#allocation3 + $0x110] sm:$0xff]
        %v3293 = vld [vmem:[#allocation3 + $0x118] sm:$0xff]
        %v3294 = vld [vmem:[#allocation3 + $0x120] sm:$0xff]
        %v3295 = vld [vmem:[#allocation3 + $0x128] sm:$0xff]
        %v3296 = vld [vmem:[#allocation3 + $0x130] sm:$0xff]
        %v3297 = vld [vmem:[#allocation3 + $0x138] sm:$0xff]
        %v3298 = vld [vmem:[#allocation3 + $0x140] sm:$0xff]
        %v3299 = vld [vmem:[#allocation3 + $0x148] sm:$0xff]
        %v3300 = vld [vmem:[#allocation3 + $0x150] sm:$0xff]
        %v3301 = vld [vmem:[#allocation3 + $0x158] sm:$0xff]
        %v3302 = vld [vmem:[#allocation3 + $0x160] sm:$0xff]
        %v3303 = vld [vmem:[#allocation3 + $0x168] sm:$0xff]
        %v3304 = vld [vmem:[#allocation3 + $0x170] sm:$0xff]
        %v3305 = vld [vmem:[#allocation3 + $0x178] sm:$0xff]
        %v3306 = vld [vmem:[#allocation3 + $0x180] sm:$0xff]
        %v3307 = vld [vmem:[#allocation3 + $0x188] sm:$0xff]
        %v3308 = vld [vmem:[#allocation3 + $0x190] sm:$0xff]
        %v3309 = vld [vmem:[#allocation3 + $0x198] sm:$0xff]
        %v3310 = vld [vmem:[#allocation3 + $0x1a0] sm:$0xff]
        %v3311 = vld [vmem:[#allocation3 + $0x1a8] sm:$0xff]
        %v3312 = vld [vmem:[#allocation3 + $0x1b0] sm:$0xff]
        %v3313 = vld [vmem:[#allocation3 + $0x1b8] sm:$0xff]
        %v3314 = vld [vmem:[#allocation3 + $0x1c0] sm:$0xff]
        %v3315 = vld [vmem:[#allocation3 + $0x1c8] sm:$0xff]
        %v3316 = vld [vmem:[#allocation3 + $0x1d0] sm:$0xff]
        %v3317 = vld [vmem:[#allocation3 + $0x1d8] sm:$0xff]
        %v3318 = vld [vmem:[#allocation3 + $0x1e0] sm:$0xff]
        %v3319 = vld [vmem:[#allocation3 + $0x1e8] sm:$0xff]
        %v3320 = vld [vmem:[#allocation3 + $0x1f0] sm:$0xff]
        %v3321 = vld [vmem:[#allocation3 + $0x1f8] sm:$0xff]
        %v3322 = vld [vmem:[#allocation3 + $0x200] sm:$0xff]
        %v3323 = vld [vmem:[#allocation3 + $0x208] sm:$0xff]
        %v3324 = vld [vmem:[#allocation3 + $0x210] sm:$0xff]
        %v3325 = vld [vmem:[#allocation3 + $0x218] sm:$0xff]
        %v3326 = vld [vmem:[#allocation3 + $0x220] sm:$0xff]
        %v3327 = vld [vmem:[#allocation3 + $0x228] sm:$0xff]
        %v3328 = vld [vmem:[#allocation3 + $0x230] sm:$0xff]
        %v3329 = vld [vmem:[#allocation3 + $0x238] sm:$0xff]
        %v3330 = vld [vmem:[#allocation3 + $0x240] sm:$0xff]
        %v3331 = vld [vmem:[#allocation3 + $0x248] sm:$0xff]
        %v3332 = vld [vmem:[#allocation3 + $0x250] sm:$0xff]
        %v3333 = vld [vmem:[#allocation3 + $0x258] sm:$0xff]
        %v3334 = vld [vmem:[#allocation3 + $0x260] sm:$0xff]
        %v3335 = vld [vmem:[#allocation3 + $0x268] sm:$0xff]
        %v3336 = vld [vmem:[#allocation3 + $0x270] sm:$0xff]
        %v3337 = vld [vmem:[#allocation3 + $0x278] sm:$0xff]
        %v3338 = vld [vmem:[#allocation3 + $0x280] sm:$0xff]
        %v3339 = vld [vmem:[#allocation3 + $0x288] sm:$0xff]
        %v3340 = vld [vmem:[#allocation3 + $0x290] sm:$0xff]
        %v3341 = vld [vmem:[#allocation3 + $0x298] sm:$0xff]
        %v3342 = vld [vmem:[#allocation3 + $0x2a0] sm:$0xff]
        %v3343 = vld [vmem:[#allocation3 + $0x2a8] sm:$0xff]
        %v3344 = vld [vmem:[#allocation3 + $0x2b0] sm:$0xff]
        %v3345 = vld [vmem:[#allocation3 + $0x2b8] sm:$0xff]
        %v3346 = vld [vmem:[#allocation3 + $0x2c0] sm:$0xff]
        %v3347 = vld [vmem:[#allocation3 + $0x2c8] sm:$0xff]
        %v3348 = vld [vmem:[#allocation3 + $0x2d0] sm:$0xff]
        %v3349 = vld [vmem:[#allocation3 + $0x2d8] sm:$0xff]
        %v3350 = vld [vmem:[#allocation3 + $0x2e0] sm:$0xff]
        %v3351 = vld [vmem:[#allocation3 + $0x2e8] sm:$0xff]
        %v3352 = vld [vmem:[#allocation3 + $0x2f0] sm:$0xff]
        %v3353 = vld [vmem:[#allocation3 + $0x2f8] sm:$0xff]
        %v3354 = vld [vmem:[#allocation3 + $0x300] sm:$0xff]
        %v3355 = vld [vmem:[#allocation3 + $0x308] sm:$0xff]
        %v3356 = vld [vmem:[#allocation3 + $0x310] sm:$0xff]
        %v3357 = vld [vmem:[#allocation3 + $0x318] sm:$0xff]
        %v3358 = vld [vmem:[#allocation3 + $0x320] sm:$0xff]
        %v3359 = vld [vmem:[#allocation3 + $0x328] sm:$0xff]
        %v3360 = vld [vmem:[#allocation3 + $0x330] sm:$0xff]
        %v3361 = vld [vmem:[#allocation3 + $0x338] sm:$0xff]
        %v3362 = vld [vmem:[#allocation3 + $0x340] sm:$0xff]
        %v3363 = vld [vmem:[#allocation3 + $0x348] sm:$0xff]
        %v3364 = vld [vmem:[#allocation3 + $0x350] sm:$0xff]
        %v3365 = vld [vmem:[#allocation3 + $0x358] sm:$0xff]
        %v3366 = vld [vmem:[#allocation3 + $0x360] sm:$0xff]
        %v3367 = vld [vmem:[#allocation3 + $0x368] sm:$0xff]
        %v3368 = vld [vmem:[#allocation3 + $0x370] sm:$0xff]
        %v3369 = vld [vmem:[#allocation3 + $0x378] sm:$0xff]
        %v3370 = vld [vmem:[#allocation3 + $0x380] sm:$0xff]
        %v3371 = vld [vmem:[#allocation3 + $0x388] sm:$0xff]
        %v3372 = vld [vmem:[#allocation3 + $0x390] sm:$0xff]
        %v3373 = vld [vmem:[#allocation3 + $0x398] sm:$0xff]
        %v3374 = vld [vmem:[#allocation3 + $0x3a0] sm:$0xff]
        %v3375 = vld [vmem:[#allocation3 + $0x3a8] sm:$0xff]
        %v3376 = vld [vmem:[#allocation3 + $0x3b0] sm:$0xff]
        %v3377 = vld [vmem:[#allocation3 + $0x3b8] sm:$0xff]
        %v3378 = vld [vmem:[#allocation3 + $0x3c0] sm:$0xff]
        %v3379 = vld [vmem:[#allocation3 + $0x3c8] sm:$0xff]
        %v3380 = vld [vmem:[#allocation3 + $0x3d0] sm:$0xff]
        %v3381 = vld [vmem:[#allocation3 + $0x3d8] sm:$0xff]
        %v3382 = vld [vmem:[#allocation3 + $0x3e0] sm:$0xff]
        %v3383 = vld [vmem:[#allocation3 + $0x3e8] sm:$0xff]
        %v3384 = vld [vmem:[#allocation3 + $0x3f0] sm:$0xff]
        %v3385 = vld [vmem:[#allocation3 + $0x3f8] sm:$0xff]
        %vm3386 = vcmp.gt.f32.partialorder %v307, %v3130
        %vm3387 = vcmp.gt.f32.partialorder %v310, %v3131
        %vm3388 = vcmp.gt.f32.partialorder %v313, %v3132
        %vm3389 = vcmp.gt.f32.partialorder %v316, %v3133
        %vm3390 = vcmp.gt.f32.partialorder %v319, %v3134
        %vm3391 = vcmp.gt.f32.partialorder %v322, %v3135
        %vm3392 = vcmp.gt.f32.partialorder %v325, %v3136
        %vm3393 = vcmp.gt.f32.partialorder %v328, %v3137
        %vm3394 = vcmp.gt.f32.partialorder %v331, %v3138
        %vm3395 = vcmp.gt.f32.partialorder %v334, %v3139
        %vm3396 = vcmp.gt.f32.partialorder %v337, %v3140
        %vm3397 = vcmp.gt.f32.partialorder %v340, %v3141
        %vm3398 = vcmp.gt.f32.partialorder %v343, %v3142
        %vm3399 = vcmp.gt.f32.partialorder %v346, %v3143
        %vm3400 = vcmp.gt.f32.partialorder %v349, %v3144
        %vm3401 = vcmp.gt.f32.partialorder %v352, %v3145
        %vm3402 = vcmp.gt.f32.partialorder %v355, %v3146
        %vm3403 = vcmp.gt.f32.partialorder %v358, %v3147
        %vm3404 = vcmp.gt.f32.partialorder %v361, %v3148
        %vm3405 = vcmp.gt.f32.partialorder %v364, %v3149
        %vm3406 = vcmp.gt.f32.partialorder %v367, %v3150
        %vm3407 = vcmp.gt.f32.partialorder %v370, %v3151
        %vm3408 = vcmp.gt.f32.partialorder %v373, %v3152
        %vm3409 = vcmp.gt.f32.partialorder %v376, %v3153
        %vm3410 = vcmp.gt.f32.partialorder %v379, %v3154
        %vm3411 = vcmp.gt.f32.partialorder %v382, %v3155
        %vm3412 = vcmp.gt.f32.partialorder %v385, %v3156
        %vm3413 = vcmp.gt.f32.partialorder %v388, %v3157
        %vm3414 = vcmp.gt.f32.partialorder %v391, %v3158
        %vm3415 = vcmp.gt.f32.partialorder %v394, %v3159
        %vm3416 = vcmp.gt.f32.partialorder %v397, %v3160
        %vm3417 = vcmp.gt.f32.partialorder %v400, %v3161
        %vm3418 = vcmp.gt.f32.partialorder %v403, %v3162
        %vm3419 = vcmp.gt.f32.partialorder %v406, %v3163
        %vm3420 = vcmp.gt.f32.partialorder %v409, %v3164
        %vm3421 = vcmp.gt.f32.partialorder %v412, %v3165
        %vm3422 = vcmp.gt.f32.partialorder %v415, %v3166
        %vm3423 = vcmp.gt.f32.partialorder %v418, %v3167
        %vm3424 = vcmp.gt.f32.partialorder %v421, %v3168
        %vm3425 = vcmp.gt.f32.partialorder %v424, %v3169
        %vm3426 = vcmp.gt.f32.partialorder %v427, %v3170
        %vm3427 = vcmp.gt.f32.partialorder %v430, %v3171
        %vm3428 = vcmp.gt.f32.partialorder %v433, %v3172
        %vm3429 = vcmp.gt.f32.partialorder %v436, %v3173
        %vm3430 = vcmp.gt.f32.partialorder %v439, %v3174
        %vm3431 = vcmp.gt.f32.partialorder %v442, %v3175
        %vm3432 = vcmp.gt.f32.partialorder %v445, %v3176
        %vm3433 = vcmp.gt.f32.partialorder %v448, %v3177
        %vm3434 = vcmp.gt.f32.partialorder %v451, %v3178
        %vm3435 = vcmp.gt.f32.partialorder %v454, %v3179
        %vm3436 = vcmp.gt.f32.partialorder %v457, %v3180
        %vm3437 = vcmp.gt.f32.partialorder %v460, %v3181
        %vm3438 = vcmp.gt.f32.partialorder %v463, %v3182
        %vm3439 = vcmp.gt.f32.partialorder %v466, %v3183
        %vm3440 = vcmp.gt.f32.partialorder %v469, %v3184
        %vm3441 = vcmp.gt.f32.partialorder %v472, %v3185
        %vm3442 = vcmp.gt.f32.partialorder %v475, %v3186
        %vm3443 = vcmp.gt.f32.partialorder %v478, %v3187
        %vm3444 = vcmp.gt.f32.partialorder %v481, %v3188
        %vm3445 = vcmp.gt.f32.partialorder %v484, %v3189
        %vm3446 = vcmp.gt.f32.partialorder %v487, %v3190
        %vm3447 = vcmp.gt.f32.partialorder %v490, %v3191
        %vm3448 = vcmp.gt.f32.partialorder %v493, %v3192
        %vm3449 = vcmp.gt.f32.partialorder %v496, %v3193
        %vm3450 = vcmp.gt.f32.partialorder %v499, %v3194
        %vm3451 = vcmp.gt.f32.partialorder %v502, %v3195
        %vm3452 = vcmp.gt.f32.partialorder %v505, %v3196
        %vm3453 = vcmp.gt.f32.partialorder %v508, %v3197
        %vm3454 = vcmp.gt.f32.partialorder %v511, %v3198
        %vm3455 = vcmp.gt.f32.partialorder %v514, %v3199
        %vm3456 = vcmp.gt.f32.partialorder %v517, %v3200
        %vm3457 = vcmp.gt.f32.partialorder %v520, %v3201
        %vm3458 = vcmp.gt.f32.partialorder %v523, %v3202
        %vm3459 = vcmp.gt.f32.partialorder %v526, %v3203
        %vm3460 = vcmp.gt.f32.partialorder %v529, %v3204
        %vm3461 = vcmp.gt.f32.partialorder %v532, %v3205
        %vm3462 = vcmp.gt.f32.partialorder %v535, %v3206
        %vm3463 = vcmp.gt.f32.partialorder %v538, %v3207
        %vm3464 = vcmp.gt.f32.partialorder %v541, %v3208
        %vm3465 = vcmp.gt.f32.partialorder %v544, %v3209
        %vm3466 = vcmp.gt.f32.partialorder %v547, %v3210
        %vm3467 = vcmp.gt.f32.partialorder %v550, %v3211
        %vm3468 = vcmp.gt.f32.partialorder %v553, %v3212
        %vm3469 = vcmp.gt.f32.partialorder %v556, %v3213
        %vm3470 = vcmp.gt.f32.partialorder %v559, %v3214
        %vm3471 = vcmp.gt.f32.partialorder %v562, %v3215
        %vm3472 = vcmp.gt.f32.partialorder %v565, %v3216
        %vm3473 = vcmp.gt.f32.partialorder %v568, %v3217
        %vm3474 = vcmp.gt.f32.partialorder %v571, %v3218
        %vm3475 = vcmp.gt.f32.partialorder %v574, %v3219
        %vm3476 = vcmp.gt.f32.partialorder %v577, %v3220
        %vm3477 = vcmp.gt.f32.partialorder %v580, %v3221
        %vm3478 = vcmp.gt.f32.partialorder %v583, %v3222
        %vm3479 = vcmp.gt.f32.partialorder %v586, %v3223
        %vm3480 = vcmp.gt.f32.partialorder %v589, %v3224
        %vm3481 = vcmp.gt.f32.partialorder %v592, %v3225
        %vm3482 = vcmp.gt.f32.partialorder %v595, %v3226
        %vm3483 = vcmp.gt.f32.partialorder %v598, %v3227
        %vm3484 = vcmp.gt.f32.partialorder %v601, %v3228
        %vm3485 = vcmp.gt.f32.partialorder %v604, %v3229
        %vm3486 = vcmp.gt.f32.partialorder %v607, %v3230
        %vm3487 = vcmp.gt.f32.partialorder %v610, %v3231
        %vm3488 = vcmp.gt.f32.partialorder %v613, %v3232
        %vm3489 = vcmp.gt.f32.partialorder %v616, %v3233
        %vm3490 = vcmp.gt.f32.partialorder %v619, %v3234
        %vm3491 = vcmp.gt.f32.partialorder %v622, %v3235
        %vm3492 = vcmp.gt.f32.partialorder %v625, %v3236
        %vm3493 = vcmp.gt.f32.partialorder %v628, %v3237
        %vm3494 = vcmp.gt.f32.partialorder %v631, %v3238
        %vm3495 = vcmp.gt.f32.partialorder %v634, %v3239
        %vm3496 = vcmp.gt.f32.partialorder %v637, %v3240
        %vm3497 = vcmp.gt.f32.partialorder %v640, %v3241
        %vm3498 = vcmp.gt.f32.partialorder %v643, %v3242
        %vm3499 = vcmp.gt.f32.partialorder %v646, %v3243
        %vm3500 = vcmp.gt.f32.partialorder %v649, %v3244
        %vm3501 = vcmp.gt.f32.partialorder %v652, %v3245
        %vm3502 = vcmp.gt.f32.partialorder %v655, %v3246
        %vm3503 = vcmp.gt.f32.partialorder %v658, %v3247
        %vm3504 = vcmp.gt.f32.partialorder %v661, %v3248
        %vm3505 = vcmp.gt.f32.partialorder %v664, %v3249
        %vm3506 = vcmp.gt.f32.partialorder %v667, %v3250
        %vm3507 = vcmp.gt.f32.partialorder %v670, %v3251
        %vm3508 = vcmp.gt.f32.partialorder %v673, %v3252
        %vm3509 = vcmp.gt.f32.partialorder %v676, %v3253
        %vm3510 = vcmp.gt.f32.partialorder %v679, %v3254
        %vm3511 = vcmp.gt.f32.partialorder %v682, %v3255
        %vm3512 = vcmp.gt.f32.partialorder %v685, %v3256
        %vm3513 = vcmp.gt.f32.partialorder %v688, %v3257
        %v3514 = vsel %vm3386, %v307, %v3130
        %v3515 = vsel %vm3387, %v310, %v3131
        %v3516 = vsel %vm3388, %v313, %v3132
        %v3517 = vsel %vm3389, %v316, %v3133
        %v3518 = vsel %vm3390, %v319, %v3134
        %v3519 = vsel %vm3391, %v322, %v3135
        %v3520 = vsel %vm3392, %v325, %v3136
        %v3521 = vsel %vm3393, %v328, %v3137
        %v3522 = vsel %vm3394, %v331, %v3138
        %v3523 = vsel %vm3395, %v334, %v3139
        %v3524 = vsel %vm3396, %v337, %v3140
        %v3525 = vsel %vm3397, %v340, %v3141
        %v3526 = vsel %vm3398, %v343, %v3142
        %v3527 = vsel %vm3399, %v346, %v3143
        %v3528 = vsel %vm3400, %v349, %v3144
        %v3529 = vsel %vm3401, %v352, %v3145
        %v3530 = vsel %vm3402, %v355, %v3146
        %v3531 = vsel %vm3403, %v358, %v3147
        %v3532 = vsel %vm3404, %v361, %v3148
        %v3533 = vsel %vm3405, %v364, %v3149
        %v3534 = vsel %vm3406, %v367, %v3150
        %v3535 = vsel %vm3407, %v370, %v3151
        %v3536 = vsel %vm3408, %v373, %v3152
        %v3537 = vsel %vm3409, %v376, %v3153
        %v3538 = vsel %vm3410, %v379, %v3154
        %v3539 = vsel %vm3411, %v382, %v3155
        %v3540 = vsel %vm3412, %v385, %v3156
        %v3541 = vsel %vm3413, %v388, %v3157
        %v3542 = vsel %vm3414, %v391, %v3158
        %v3543 = vsel %vm3415, %v394, %v3159
        %v3544 = vsel %vm3416, %v397, %v3160
        %v3545 = vsel %vm3417, %v400, %v3161
        %v3546 = vsel %vm3418, %v403, %v3162
        %v3547 = vsel %vm3419, %v406, %v3163
        %v3548 = vsel %vm3420, %v409, %v3164
        %v3549 = vsel %vm3421, %v412, %v3165
        %v3550 = vsel %vm3422, %v415, %v3166
        %v3551 = vsel %vm3423, %v418, %v3167
        %v3552 = vsel %vm3424, %v421, %v3168
        %v3553 = vsel %vm3425, %v424, %v3169
        %v3554 = vsel %vm3426, %v427, %v3170
        %v3555 = vsel %vm3427, %v430, %v3171
        %v3556 = vsel %vm3428, %v433, %v3172
        %v3557 = vsel %vm3429, %v436, %v3173
        %v3558 = vsel %vm3430, %v439, %v3174
        %v3559 = vsel %vm3431, %v442, %v3175
        %v3560 = vsel %vm3432, %v445, %v3176
        %v3561 = vsel %vm3433, %v448, %v3177
        %v3562 = vsel %vm3434, %v451, %v3178
        %v3563 = vsel %vm3435, %v454, %v3179
        %v3564 = vsel %vm3436, %v457, %v3180
        %v3565 = vsel %vm3437, %v460, %v3181
        %v3566 = vsel %vm3438, %v463, %v3182
        %v3567 = vsel %vm3439, %v466, %v3183
        %v3568 = vsel %vm3440, %v469, %v3184
        %v3569 = vsel %vm3441, %v472, %v3185
        %v3570 = vsel %vm3442, %v475, %v3186
        %v3571 = vsel %vm3443, %v478, %v3187
        %v3572 = vsel %vm3444, %v481, %v3188
        %v3573 = vsel %vm3445, %v484, %v3189
        %v3574 = vsel %vm3446, %v487, %v3190
        %v3575 = vsel %vm3447, %v490, %v3191
        %v3576 = vsel %vm3448, %v493, %v3192
        %v3577 = vsel %vm3449, %v496, %v3193
        %v3578 = vsel %vm3450, %v499, %v3194
        %v3579 = vsel %vm3451, %v502, %v3195
        %v3580 = vsel %vm3452, %v505, %v3196
        %v3581 = vsel %vm3453, %v508, %v3197
        %v3582 = vsel %vm3454, %v511, %v3198
        %v3583 = vsel %vm3455, %v514, %v3199
        %v3584 = vsel %vm3456, %v517, %v3200
        %v3585 = vsel %vm3457, %v520, %v3201
        %v3586 = vsel %vm3458, %v523, %v3202
        %v3587 = vsel %vm3459, %v526, %v3203
        %v3588 = vsel %vm3460, %v529, %v3204
        %v3589 = vsel %vm3461, %v532, %v3205
        %v3590 = vsel %vm3462, %v535, %v3206
        %v3591 = vsel %vm3463, %v538, %v3207
        %v3592 = vsel %vm3464, %v541, %v3208
        %v3593 = vsel %vm3465, %v544, %v3209
        %v3594 = vsel %vm3466, %v547, %v3210
        %v3595 = vsel %vm3467, %v550, %v3211
        %v3596 = vsel %vm3468, %v553, %v3212
        %v3597 = vsel %vm3469, %v556, %v3213
        %v3598 = vsel %vm3470, %v559, %v3214
        %v3599 = vsel %vm3471, %v562, %v3215
        %v3600 = vsel %vm3472, %v565, %v3216
        %v3601 = vsel %vm3473, %v568, %v3217
        %v3602 = vsel %vm3474, %v571, %v3218
        %v3603 = vsel %vm3475, %v574, %v3219
        %v3604 = vsel %vm3476, %v577, %v3220
        %v3605 = vsel %vm3477, %v580, %v3221
        %v3606 = vsel %vm3478, %v583, %v3222
        %v3607 = vsel %vm3479, %v586, %v3223
        %v3608 = vsel %vm3480, %v589, %v3224
        %v3609 = vsel %vm3481, %v592, %v3225
        %v3610 = vsel %vm3482, %v595, %v3226
        %v3611 = vsel %vm3483, %v598, %v3227
        %v3612 = vsel %vm3484, %v601, %v3228
        %v3613 = vsel %vm3485, %v604, %v3229
        %v3614 = vsel %vm3486, %v607, %v3230
        %v3615 = vsel %vm3487, %v610, %v3231
        %v3616 = vsel %vm3488, %v613, %v3232
        %v3617 = vsel %vm3489, %v616, %v3233
        %v3618 = vsel %vm3490, %v619, %v3234
        %v3619 = vsel %vm3491, %v622, %v3235
        %v3620 = vsel %vm3492, %v625, %v3236
        %v3621 = vsel %vm3493, %v628, %v3237
        %v3622 = vsel %vm3494, %v631, %v3238
        %v3623 = vsel %vm3495, %v634, %v3239
        %v3624 = vsel %vm3496, %v637, %v3240
        %v3625 = vsel %vm3497, %v640, %v3241
        %v3626 = vsel %vm3498, %v643, %v3242
        %v3627 = vsel %vm3499, %v646, %v3243
        %v3628 = vsel %vm3500, %v649, %v3244
        %v3629 = vsel %vm3501, %v652, %v3245
        %v3630 = vsel %vm3502, %v655, %v3246
        %v3631 = vsel %vm3503, %v658, %v3247
        %v3632 = vsel %vm3504, %v661, %v3248
        %v3633 = vsel %vm3505, %v664, %v3249
        %v3634 = vsel %vm3506, %v667, %v3250
        %v3635 = vsel %vm3507, %v670, %v3251
        %v3636 = vsel %vm3508, %v673, %v3252
        %v3637 = vsel %vm3509, %v676, %v3253
        %v3638 = vsel %vm3510, %v679, %v3254
        %v3639 = vsel %vm3511, %v682, %v3255
        %v3640 = vsel %vm3512, %v685, %v3256
        %v3641 = vsel %vm3513, %v688, %v3257
        %vm3642 = vcmask 7168
        %3643 = vst.msk [vmem:[#allocation2] sm:$0xff] %vm3642, %v3514
        %3644 = vst.msk [vmem:[#allocation2 + $0x8] sm:$0xff] %vm3642, %v3515
        %3645 = vst.msk [vmem:[#allocation2 + $0x10] sm:$0xff] %vm3642, %v3516
        %3646 = vst.msk [vmem:[#allocation2 + $0x18] sm:$0xff] %vm3642, %v3517
        %3647 = vst.msk [vmem:[#allocation2 + $0x20] sm:$0xff] %vm3642, %v3518
        %3648 = vst.msk [vmem:[#allocation2 + $0x28] sm:$0xff] %vm3642, %v3519
        %3649 = vst.msk [vmem:[#allocation2 + $0x30] sm:$0xff] %vm3642, %v3520
        %3650 = vst.msk [vmem:[#allocation2 + $0x38] sm:$0xff] %vm3642, %v3521
        %3651 = vst.msk [vmem:[#allocation2 + $0x40] sm:$0xff] %vm3642, %v3522
        %3652 = vst.msk [vmem:[#allocation2 + $0x48] sm:$0xff] %vm3642, %v3523
        %3653 = vst.msk [vmem:[#allocation2 + $0x50] sm:$0xff] %vm3642, %v3524
        %3654 = vst.msk [vmem:[#allocation2 + $0x58] sm:$0xff] %vm3642, %v3525
        %3655 = vst.msk [vmem:[#allocation2 + $0x60] sm:$0xff] %vm3642, %v3526
        %3656 = vst.msk [vmem:[#allocation2 + $0x68] sm:$0xff] %vm3642, %v3527
        %3657 = vst.msk [vmem:[#allocation2 + $0x70] sm:$0xff] %vm3642, %v3528
        %3658 = vst.msk [vmem:[#allocation2 + $0x78] sm:$0xff] %vm3642, %v3529
        %3659 = vst.msk [vmem:[#allocation2 + $0x80] sm:$0xff] %vm3642, %v3530
        %3660 = vst.msk [vmem:[#allocation2 + $0x88] sm:$0xff] %vm3642, %v3531
        %3661 = vst.msk [vmem:[#allocation2 + $0x90] sm:$0xff] %vm3642, %v3532
        %3662 = vst.msk [vmem:[#allocation2 + $0x98] sm:$0xff] %vm3642, %v3533
        %3663 = vst.msk [vmem:[#allocation2 + $0xa0] sm:$0xff] %vm3642, %v3534
        %3664 = vst.msk [vmem:[#allocation2 + $0xa8] sm:$0xff] %vm3642, %v3535
        %3665 = vst.msk [vmem:[#allocation2 + $0xb0] sm:$0xff] %vm3642, %v3536
        %3666 = vst.msk [vmem:[#allocation2 + $0xb8] sm:$0xff] %vm3642, %v3537
        %3667 = vst.msk [vmem:[#allocation2 + $0xc0] sm:$0xff] %vm3642, %v3538
        %3668 = vst.msk [vmem:[#allocation2 + $0xc8] sm:$0xff] %vm3642, %v3539
        %3669 = vst.msk [vmem:[#allocation2 + $0xd0] sm:$0xff] %vm3642, %v3540
        %3670 = vst.msk [vmem:[#allocation2 + $0xd8] sm:$0xff] %vm3642, %v3541
        %3671 = vst.msk [vmem:[#allocation2 + $0xe0] sm:$0xff] %vm3642, %v3542
        %3672 = vst.msk [vmem:[#allocation2 + $0xe8] sm:$0xff] %vm3642, %v3543
        %3673 = vst.msk [vmem:[#allocation2 + $0xf0] sm:$0xff] %vm3642, %v3544
        %3674 = vst.msk [vmem:[#allocation2 + $0xf8] sm:$0xff] %vm3642, %v3545
        %3675 = vst.msk [vmem:[#allocation2 + $0x100] sm:$0xff] %vm3642, %v3546
        %3676 = vst.msk [vmem:[#allocation2 + $0x108] sm:$0xff] %vm3642, %v3547
        %3677 = vst.msk [vmem:[#allocation2 + $0x110] sm:$0xff] %vm3642, %v3548
        %3678 = vst.msk [vmem:[#allocation2 + $0x118] sm:$0xff] %vm3642, %v3549
        %3679 = vst.msk [vmem:[#allocation2 + $0x120] sm:$0xff] %vm3642, %v3550
        %3680 = vst.msk [vmem:[#allocation2 + $0x128] sm:$0xff] %vm3642, %v3551
        %3681 = vst.msk [vmem:[#allocation2 + $0x130] sm:$0xff] %vm3642, %v3552
        %3682 = vst.msk [vmem:[#allocation2 + $0x138] sm:$0xff] %vm3642, %v3553
        %3683 = vst.msk [vmem:[#allocation2 + $0x140] sm:$0xff] %vm3642, %v3554
        %3684 = vst.msk [vmem:[#allocation2 + $0x148] sm:$0xff] %vm3642, %v3555
        %3685 = vst.msk [vmem:[#allocation2 + $0x150] sm:$0xff] %vm3642, %v3556
        %3686 = vst.msk [vmem:[#allocation2 + $0x158] sm:$0xff] %vm3642, %v3557
        %3687 = vst.msk [vmem:[#allocation2 + $0x160] sm:$0xff] %vm3642, %v3558
        %3688 = vst.msk [vmem:[#allocation2 + $0x168] sm:$0xff] %vm3642, %v3559
        %3689 = vst.msk [vmem:[#allocation2 + $0x170] sm:$0xff] %vm3642, %v3560
        %3690 = vst.msk [vmem:[#allocation2 + $0x178] sm:$0xff] %vm3642, %v3561
        %3691 = vst.msk [vmem:[#allocation2 + $0x180] sm:$0xff] %vm3642, %v3562
        %3692 = vst.msk [vmem:[#allocation2 + $0x188] sm:$0xff] %vm3642, %v3563
        %3693 = vst.msk [vmem:[#allocation2 + $0x190] sm:$0xff] %vm3642, %v3564
        %3694 = vst.msk [vmem:[#allocation2 + $0x198] sm:$0xff] %vm3642, %v3565
        %3695 = vst.msk [vmem:[#allocation2 + $0x1a0] sm:$0xff] %vm3642, %v3566
        %3696 = vst.msk [vmem:[#allocation2 + $0x1a8] sm:$0xff] %vm3642, %v3567
        %3697 = vst.msk [vmem:[#allocation2 + $0x1b0] sm:$0xff] %vm3642, %v3568
        %3698 = vst.msk [vmem:[#allocation2 + $0x1b8] sm:$0xff] %vm3642, %v3569
        %3699 = vst.msk [vmem:[#allocation2 + $0x1c0] sm:$0xff] %vm3642, %v3570
        %3700 = vst.msk [vmem:[#allocation2 + $0x1c8] sm:$0xff] %vm3642, %v3571
        %3701 = vst.msk [vmem:[#allocation2 + $0x1d0] sm:$0xff] %vm3642, %v3572
        %3702 = vst.msk [vmem:[#allocation2 + $0x1d8] sm:$0xff] %vm3642, %v3573
        %3703 = vst.msk [vmem:[#allocation2 + $0x1e0] sm:$0xff] %vm3642, %v3574
        %3704 = vst.msk [vmem:[#allocation2 + $0x1e8] sm:$0xff] %vm3642, %v3575
        %3705 = vst.msk [vmem:[#allocation2 + $0x1f0] sm:$0xff] %vm3642, %v3576
        %3706 = vst.msk [vmem:[#allocation2 + $0x1f8] sm:$0xff] %vm3642, %v3577
        %3707 = vst.msk [vmem:[#allocation2 + $0x200] sm:$0xff] %vm3642, %v3578
        %3708 = vst.msk [vmem:[#allocation2 + $0x208] sm:$0xff] %vm3642, %v3579
        %3709 = vst.msk [vmem:[#allocation2 + $0x210] sm:$0xff] %vm3642, %v3580
        %3710 = vst.msk [vmem:[#allocation2 + $0x218] sm:$0xff] %vm3642, %v3581
        %3711 = vst.msk [vmem:[#allocation2 + $0x220] sm:$0xff] %vm3642, %v3582
        %3712 = vst.msk [vmem:[#allocation2 + $0x228] sm:$0xff] %vm3642, %v3583
        %3713 = vst.msk [vmem:[#allocation2 + $0x230] sm:$0xff] %vm3642, %v3584
        %3714 = vst.msk [vmem:[#allocation2 + $0x238] sm:$0xff] %vm3642, %v3585
        %3715 = vst.msk [vmem:[#allocation2 + $0x240] sm:$0xff] %vm3642, %v3586
        %3716 = vst.msk [vmem:[#allocation2 + $0x248] sm:$0xff] %vm3642, %v3587
        %3717 = vst.msk [vmem:[#allocation2 + $0x250] sm:$0xff] %vm3642, %v3588
        %3718 = vst.msk [vmem:[#allocation2 + $0x258] sm:$0xff] %vm3642, %v3589
        %3719 = vst.msk [vmem:[#allocation2 + $0x260] sm:$0xff] %vm3642, %v3590
        %3720 = vst.msk [vmem:[#allocation2 + $0x268] sm:$0xff] %vm3642, %v3591
        %3721 = vst.msk [vmem:[#allocation2 + $0x270] sm:$0xff] %vm3642, %v3592
        %3722 = vst.msk [vmem:[#allocation2 + $0x278] sm:$0xff] %vm3642, %v3593
        %3723 = vst.msk [vmem:[#allocation2 + $0x280] sm:$0xff] %vm3642, %v3594
        %3724 = vst.msk [vmem:[#allocation2 + $0x288] sm:$0xff] %vm3642, %v3595
        %3725 = vst.msk [vmem:[#allocation2 + $0x290] sm:$0xff] %vm3642, %v3596
        %3726 = vst.msk [vmem:[#allocation2 + $0x298] sm:$0xff] %vm3642, %v3597
        %3727 = vst.msk [vmem:[#allocation2 + $0x2a0] sm:$0xff] %vm3642, %v3598
        %3728 = vst.msk [vmem:[#allocation2 + $0x2a8] sm:$0xff] %vm3642, %v3599
        %3729 = vst.msk [vmem:[#allocation2 + $0x2b0] sm:$0xff] %vm3642, %v3600
        %3730 = vst.msk [vmem:[#allocation2 + $0x2b8] sm:$0xff] %vm3642, %v3601
        %3731 = vst.msk [vmem:[#allocation2 + $0x2c0] sm:$0xff] %vm3642, %v3602
        %3732 = vst.msk [vmem:[#allocation2 + $0x2c8] sm:$0xff] %vm3642, %v3603
        %3733 = vst.msk [vmem:[#allocation2 + $0x2d0] sm:$0xff] %vm3642, %v3604
        %3734 = vst.msk [vmem:[#allocation2 + $0x2d8] sm:$0xff] %vm3642, %v3605
        %3735 = vst.msk [vmem:[#allocation2 + $0x2e0] sm:$0xff] %vm3642, %v3606
        %3736 = vst.msk [vmem:[#allocation2 + $0x2e8] sm:$0xff] %vm3642, %v3607
        %3737 = vst.msk [vmem:[#allocation2 + $0x2f0] sm:$0xff] %vm3642, %v3608
        %3738 = vst.msk [vmem:[#allocation2 + $0x2f8] sm:$0xff] %vm3642, %v3609
        %3739 = vst.msk [vmem:[#allocation2 + $0x300] sm:$0xff] %vm3642, %v3610
        %3740 = vst.msk [vmem:[#allocation2 + $0x308] sm:$0xff] %vm3642, %v3611
        %3741 = vst.msk [vmem:[#allocation2 + $0x310] sm:$0xff] %vm3642, %v3612
        %3742 = vst.msk [vmem:[#allocation2 + $0x318] sm:$0xff] %vm3642, %v3613
        %3743 = vst.msk [vmem:[#allocation2 + $0x320] sm:$0xff] %vm3642, %v3614
        %3744 = vst.msk [vmem:[#allocation2 + $0x328] sm:$0xff] %vm3642, %v3615
        %3745 = vst.msk [vmem:[#allocation2 + $0x330] sm:$0xff] %vm3642, %v3616
        %3746 = vst.msk [vmem:[#allocation2 + $0x338] sm:$0xff] %vm3642, %v3617
        %3747 = vst.msk [vmem:[#allocation2 + $0x340] sm:$0xff] %vm3642, %v3618
        %3748 = vst.msk [vmem:[#allocation2 + $0x348] sm:$0xff] %vm3642, %v3619
        %3749 = vst.msk [vmem:[#allocation2 + $0x350] sm:$0xff] %vm3642, %v3620
        %3750 = vst.msk [vmem:[#allocation2 + $0x358] sm:$0xff] %vm3642, %v3621
        %3751 = vst.msk [vmem:[#allocation2 + $0x360] sm:$0xff] %vm3642, %v3622
        %3752 = vst.msk [vmem:[#allocation2 + $0x368] sm:$0xff] %vm3642, %v3623
        %3753 = vst.msk [vmem:[#allocation2 + $0x370] sm:$0xff] %vm3642, %v3624
        %3754 = vst.msk [vmem:[#allocation2 + $0x378] sm:$0xff] %vm3642, %v3625
        %3755 = vst.msk [vmem:[#allocation2 + $0x380] sm:$0xff] %vm3642, %v3626
        %3756 = vst.msk [vmem:[#allocation2 + $0x388] sm:$0xff] %vm3642, %v3627
        %3757 = vst.msk [vmem:[#allocation2 + $0x390] sm:$0xff] %vm3642, %v3628
        %3758 = vst.msk [vmem:[#allocation2 + $0x398] sm:$0xff] %vm3642, %v3629
        %3759 = vst.msk [vmem:[#allocation2 + $0x3a0] sm:$0xff] %vm3642, %v3630
        %3760 = vst.msk [vmem:[#allocation2 + $0x3a8] sm:$0xff] %vm3642, %v3631
        %3761 = vst.msk [vmem:[#allocation2 + $0x3b0] sm:$0xff] %vm3642, %v3632
        %3762 = vst.msk [vmem:[#allocation2 + $0x3b8] sm:$0xff] %vm3642, %v3633
        %3763 = vst.msk [vmem:[#allocation2 + $0x3c0] sm:$0xff] %vm3642, %v3634
        %3764 = vst.msk [vmem:[#allocation2 + $0x3c8] sm:$0xff] %vm3642, %v3635
        %3765 = vst.msk [vmem:[#allocation2 + $0x3d0] sm:$0xff] %vm3642, %v3636
        %3766 = vst.msk [vmem:[#allocation2 + $0x3d8] sm:$0xff] %vm3642, %v3637
        %3767 = vst.msk [vmem:[#allocation2 + $0x3e0] sm:$0xff] %vm3642, %v3638
        %3768 = vst.msk [vmem:[#allocation2 + $0x3e8] sm:$0xff] %vm3642, %v3639
        %3769 = vst.msk [vmem:[#allocation2 + $0x3f0] sm:$0xff] %vm3642, %v3640
        %3770 = vst.msk [vmem:[#allocation2 + $0x3f8] sm:$0xff] %vm3642, %v3641
        %v3771 = vsel %vm3386, %v959, %v3258
        %v3772 = vsel %vm3387, %v974, %v3259
        %v3773 = vsel %vm3388, %v989, %v3260
        %v3774 = vsel %vm3389, %v1004, %v3261
        %v3775 = vsel %vm3390, %v1019, %v3262
        %v3776 = vsel %vm3391, %v1034, %v3263
        %v3777 = vsel %vm3392, %v1049, %v3264
        %v3778 = vsel %vm3393, %v1064, %v3265
        %v3779 = vsel %vm3394, %v1079, %v3266
        %v3780 = vsel %vm3395, %v1094, %v3267
        %v3781 = vsel %vm3396, %v1109, %v3268
        %v3782 = vsel %vm3397, %v1124, %v3269
        %v3783 = vsel %vm3398, %v1139, %v3270
        %v3784 = vsel %vm3399, %v1154, %v3271
        %v3785 = vsel %vm3400, %v1169, %v3272
        %v3786 = vsel %vm3401, %v1184, %v3273
        %v3787 = vsel %vm3402, %v1199, %v3274
        %v3788 = vsel %vm3403, %v1214, %v3275
        %v3789 = vsel %vm3404, %v1229, %v3276
        %v3790 = vsel %vm3405, %v1244, %v3277
        %v3791 = vsel %vm3406, %v1259, %v3278
        %v3792 = vsel %vm3407, %v1274, %v3279
        %v3793 = vsel %vm3408, %v1289, %v3280
        %v3794 = vsel %vm3409, %v1304, %v3281
        %v3795 = vsel %vm3410, %v1319, %v3282
        %v3796 = vsel %vm3411, %v1334, %v3283
        %v3797 = vsel %vm3412, %v1349, %v3284
        %v3798 = vsel %vm3413, %v1364, %v3285
        %v3799 = vsel %vm3414, %v1379, %v3286
        %v3800 = vsel %vm3415, %v1394, %v3287
        %v3801 = vsel %vm3416, %v1409, %v3288
        %v3802 = vsel %vm3417, %v1424, %v3289
        %v3803 = vsel %vm3418, %v1439, %v3290
        %v3804 = vsel %vm3419, %v1454, %v3291
        %v3805 = vsel %vm3420, %v1469, %v3292
        %v3806 = vsel %vm3421, %v1484, %v3293
        %v3807 = vsel %vm3422, %v1499, %v3294
        %v3808 = vsel %vm3423, %v1514, %v3295
        %v3809 = vsel %vm3424, %v1529, %v3296
        %v3810 = vsel %vm3425, %v1544, %v3297
        %v3811 = vsel %vm3426, %v1559, %v3298
        %v3812 = vsel %vm3427, %v1574, %v3299
        %v3813 = vsel %vm3428, %v1589, %v3300
        %v3814 = vsel %vm3429, %v1604, %v3301
        %v3815 = vsel %vm3430, %v1619, %v3302
        %v3816 = vsel %vm3431, %v1634, %v3303
        %v3817 = vsel %vm3432, %v1649, %v3304
        %v3818 = vsel %vm3433, %v1664, %v3305
        %v3819 = vsel %vm3434, %v1679, %v3306
        %v3820 = vsel %vm3435, %v1694, %v3307
        %v3821 = vsel %vm3436, %v1709, %v3308
        %v3822 = vsel %vm3437, %v1724, %v3309
        %v3823 = vsel %vm3438, %v1739, %v3310
        %v3824 = vsel %vm3439, %v1754, %v3311
        %v3825 = vsel %vm3440, %v1769, %v3312
        %v3826 = vsel %vm3441, %v1784, %v3313
        %v3827 = vsel %vm3442, %v1799, %v3314
        %v3828 = vsel %vm3443, %v1814, %v3315
        %v3829 = vsel %vm3444, %v1829, %v3316
        %v3830 = vsel %vm3445, %v1844, %v3317
        %v3831 = vsel %vm3446, %v1859, %v3318
        %v3832 = vsel %vm3447, %v1874, %v3319
        %v3833 = vsel %vm3448, %v1889, %v3320
        %v3834 = vsel %vm3449, %v1904, %v3321
        %v3835 = vsel %vm3450, %v1919, %v3322
        %v3836 = vsel %vm3451, %v1934, %v3323
        %v3837 = vsel %vm3452, %v1949, %v3324
        %v3838 = vsel %vm3453, %v1964, %v3325
        %v3839 = vsel %vm3454, %v1979, %v3326
        %v3840 = vsel %vm3455, %v1994, %v3327
        %v3841 = vsel %vm3456, %v2009, %v3328
        %v3842 = vsel %vm3457, %v2024, %v3329
        %v3843 = vsel %vm3458, %v2039, %v3330
        %v3844 = vsel %vm3459, %v2054, %v3331
        %v3845 = vsel %vm3460, %v2069, %v3332
        %v3846 = vsel %vm3461, %v2084, %v3333
        %v3847 = vsel %vm3462, %v2099, %v3334
        %v3848 = vsel %vm3463, %v2114, %v3335
        %v3849 = vsel %vm3464, %v2129, %v3336
        %v3850 = vsel %vm3465, %v2144, %v3337
        %v3851 = vsel %vm3466, %v2159, %v3338
        %v3852 = vsel %vm3467, %v2174, %v3339
        %v3853 = vsel %vm3468, %v2189, %v3340
        %v3854 = vsel %vm3469, %v2204, %v3341
        %v3855 = vsel %vm3470, %v2219, %v3342
        %v3856 = vsel %vm3471, %v2234, %v3343
        %v3857 = vsel %vm3472, %v2249, %v3344
        %v3858 = vsel %vm3473, %v2264, %v3345
        %v3859 = vsel %vm3474, %v2279, %v3346
        %v3860 = vsel %vm3475, %v2294, %v3347
        %v3861 = vsel %vm3476, %v2309, %v3348
        %v3862 = vsel %vm3477, %v2324, %v3349
        %v3863 = vsel %vm3478, %v2339, %v3350
        %v3864 = vsel %vm3479, %v2354, %v3351
        %v3865 = vsel %vm3480, %v2369, %v3352
        %v3866 = vsel %vm3481, %v2384, %v3353
        %v3867 = vsel %vm3482, %v2399, %v3354
        %v3868 = vsel %vm3483, %v2414, %v3355
        %v3869 = vsel %vm3484, %v2429, %v3356
        %v3870 = vsel %vm3485, %v2444, %v3357
        %v3871 = vsel %vm3486, %v2459, %v3358
        %v3872 = vsel %vm3487, %v2474, %v3359
        %v3873 = vsel %vm3488, %v2489, %v3360
        %v3874 = vsel %vm3489, %v2504, %v3361
        %v3875 = vsel %vm3490, %v2519, %v3362
        %v3876 = vsel %vm3491, %v2534, %v3363
        %v3877 = vsel %vm3492, %v2549, %v3364
        %v3878 = vsel %vm3493, %v2564, %v3365
        %v3879 = vsel %vm3494, %v2579, %v3366
        %v3880 = vsel %vm3495, %v2594, %v3367
        %v3881 = vsel %vm3496, %v2609, %v3368
        %v3882 = vsel %vm3497, %v2624, %v3369
        %v3883 = vsel %vm3498, %v2639, %v3370
        %v3884 = vsel %vm3499, %v2654, %v3371
        %v3885 = vsel %vm3500, %v2669, %v3372
        %v3886 = vsel %vm3501, %v2684, %v3373
        %v3887 = vsel %vm3502, %v2699, %v3374
        %v3888 = vsel %vm3503, %v2714, %v3375
        %v3889 = vsel %vm3504, %v2729, %v3376
        %v3890 = vsel %vm3505, %v2744, %v3377
        %v3891 = vsel %vm3506, %v2759, %v3378
        %v3892 = vsel %vm3507, %v2774, %v3379
        %v3893 = vsel %vm3508, %v2789, %v3380
        %v3894 = vsel %vm3509, %v2804, %v3381
        %v3895 = vsel %vm3510, %v2819, %v3382
        %v3896 = vsel %vm3511, %v2834, %v3383
        %v3897 = vsel %vm3512, %v2849, %v3384
        %v3898 = vsel %vm3513, %v2864, %v3385
        %3899 = vst.msk [vmem:[#allocation3] sm:$0xff] %vm3642, %v3771
        %3900 = vst.msk [vmem:[#allocation3 + $0x8] sm:$0xff] %vm3642, %v3772
        %3901 = vst.msk [vmem:[#allocation3 + $0x10] sm:$0xff] %vm3642, %v3773
        %3902 = vst.msk [vmem:[#allocation3 + $0x18] sm:$0xff] %vm3642, %v3774
        %3903 = vst.msk [vmem:[#allocation3 + $0x20] sm:$0xff] %vm3642, %v3775
        %3904 = vst.msk [vmem:[#allocation3 + $0x28] sm:$0xff] %vm3642, %v3776
        %3905 = vst.msk [vmem:[#allocation3 + $0x30] sm:$0xff] %vm3642, %v3777
        %3906 = vst.msk [vmem:[#allocation3 + $0x38] sm:$0xff] %vm3642, %v3778
        %3907 = vst.msk [vmem:[#allocation3 + $0x40] sm:$0xff] %vm3642, %v3779
        %3908 = vst.msk [vmem:[#allocation3 + $0x48] sm:$0xff] %vm3642, %v3780
        %3909 = vst.msk [vmem:[#allocation3 + $0x50] sm:$0xff] %vm3642, %v3781
        %3910 = vst.msk [vmem:[#allocation3 + $0x58] sm:$0xff] %vm3642, %v3782
        %3911 = vst.msk [vmem:[#allocation3 + $0x60] sm:$0xff] %vm3642, %v3783
        %3912 = vst.msk [vmem:[#allocation3 + $0x68] sm:$0xff] %vm3642, %v3784
        %3913 = vst.msk [vmem:[#allocation3 + $0x70] sm:$0xff] %vm3642, %v3785
        %3914 = vst.msk [vmem:[#allocation3 + $0x78] sm:$0xff] %vm3642, %v3786
        %3915 = vst.msk [vmem:[#allocation3 + $0x80] sm:$0xff] %vm3642, %v3787
        %3916 = vst.msk [vmem:[#allocation3 + $0x88] sm:$0xff] %vm3642, %v3788
        %3917 = vst.msk [vmem:[#allocation3 + $0x90] sm:$0xff] %vm3642, %v3789
        %3918 = vst.msk [vmem:[#allocation3 + $0x98] sm:$0xff] %vm3642, %v3790
        %3919 = vst.msk [vmem:[#allocation3 + $0xa0] sm:$0xff] %vm3642, %v3791
        %3920 = vst.msk [vmem:[#allocation3 + $0xa8] sm:$0xff] %vm3642, %v3792
        %3921 = vst.msk [vmem:[#allocation3 + $0xb0] sm:$0xff] %vm3642, %v3793
        %3922 = vst.msk [vmem:[#allocation3 + $0xb8] sm:$0xff] %vm3642, %v3794
        %3923 = vst.msk [vmem:[#allocation3 + $0xc0] sm:$0xff] %vm3642, %v3795
        %3924 = vst.msk [vmem:[#allocation3 + $0xc8] sm:$0xff] %vm3642, %v3796
        %3925 = vst.msk [vmem:[#allocation3 + $0xd0] sm:$0xff] %vm3642, %v3797
        %3926 = vst.msk [vmem:[#allocation3 + $0xd8] sm:$0xff] %vm3642, %v3798
        %3927 = vst.msk [vmem:[#allocation3 + $0xe0] sm:$0xff] %vm3642, %v3799
        %3928 = vst.msk [vmem:[#allocation3 + $0xe8] sm:$0xff] %vm3642, %v3800
        %3929 = vst.msk [vmem:[#allocation3 + $0xf0] sm:$0xff] %vm3642, %v3801
        %3930 = vst.msk [vmem:[#allocation3 + $0xf8] sm:$0xff] %vm3642, %v3802
        %3931 = vst.msk [vmem:[#allocation3 + $0x100] sm:$0xff] %vm3642, %v3803
        %3932 = vst.msk [vmem:[#allocation3 + $0x108] sm:$0xff] %vm3642, %v3804
        %3933 = vst.msk [vmem:[#allocation3 + $0x110] sm:$0xff] %vm3642, %v3805
        %3934 = vst.msk [vmem:[#allocation3 + $0x118] sm:$0xff] %vm3642, %v3806
        %3935 = vst.msk [vmem:[#allocation3 + $0x120] sm:$0xff] %vm3642, %v3807
        %3936 = vst.msk [vmem:[#allocation3 + $0x128] sm:$0xff] %vm3642, %v3808
        %3937 = vst.msk [vmem:[#allocation3 + $0x130] sm:$0xff] %vm3642, %v3809
        %3938 = vst.msk [vmem:[#allocation3 + $0x138] sm:$0xff] %vm3642, %v3810
        %3939 = vst.msk [vmem:[#allocation3 + $0x140] sm:$0xff] %vm3642, %v3811
        %3940 = vst.msk [vmem:[#allocation3 + $0x148] sm:$0xff] %vm3642, %v3812
        %3941 = vst.msk [vmem:[#allocation3 + $0x150] sm:$0xff] %vm3642, %v3813
        %3942 = vst.msk [vmem:[#allocation3 + $0x158] sm:$0xff] %vm3642, %v3814
        %3943 = vst.msk [vmem:[#allocation3 + $0x160] sm:$0xff] %vm3642, %v3815
        %3944 = vst.msk [vmem:[#allocation3 + $0x168] sm:$0xff] %vm3642, %v3816
        %3945 = vst.msk [vmem:[#allocation3 + $0x170] sm:$0xff] %vm3642, %v3817
        %3946 = vst.msk [vmem:[#allocation3 + $0x178] sm:$0xff] %vm3642, %v3818
        %3947 = vst.msk [vmem:[#allocation3 + $0x180] sm:$0xff] %vm3642, %v3819
        %3948 = vst.msk [vmem:[#allocation3 + $0x188] sm:$0xff] %vm3642, %v3820
        %3949 = vst.msk [vmem:[#allocation3 + $0x190] sm:$0xff] %vm3642, %v3821
        %3950 = vst.msk [vmem:[#allocation3 + $0x198] sm:$0xff] %vm3642, %v3822
        %3951 = vst.msk [vmem:[#allocation3 + $0x1a0] sm:$0xff] %vm3642, %v3823
        %3952 = vst.msk [vmem:[#allocation3 + $0x1a8] sm:$0xff] %vm3642, %v3824
        %3953 = vst.msk [vmem:[#allocation3 + $0x1b0] sm:$0xff] %vm3642, %v3825
        %3954 = vst.msk [vmem:[#allocation3 + $0x1b8] sm:$0xff] %vm3642, %v3826
        %3955 = vst.msk [vmem:[#allocation3 + $0x1c0] sm:$0xff] %vm3642, %v3827
        %3956 = vst.msk [vmem:[#allocation3 + $0x1c8] sm:$0xff] %vm3642, %v3828
        %3957 = vst.msk [vmem:[#allocation3 + $0x1d0] sm:$0xff] %vm3642, %v3829
        %3958 = vst.msk [vmem:[#allocation3 + $0x1d8] sm:$0xff] %vm3642, %v3830
        %3959 = vst.msk [vmem:[#allocation3 + $0x1e0] sm:$0xff] %vm3642, %v3831
        %3960 = vst.msk [vmem:[#allocation3 + $0x1e8] sm:$0xff] %vm3642, %v3832
        %3961 = vst.msk [vmem:[#allocation3 + $0x1f0] sm:$0xff] %vm3642, %v3833
        %3962 = vst.msk [vmem:[#allocation3 + $0x1f8] sm:$0xff] %vm3642, %v3834
        %3963 = vst.msk [vmem:[#allocation3 + $0x200] sm:$0xff] %vm3642, %v3835
        %3964 = vst.msk [vmem:[#allocation3 + $0x208] sm:$0xff] %vm3642, %v3836
        %3965 = vst.msk [vmem:[#allocation3 + $0x210] sm:$0xff] %vm3642, %v3837
        %3966 = vst.msk [vmem:[#allocation3 + $0x218] sm:$0xff] %vm3642, %v3838
        %3967 = vst.msk [vmem:[#allocation3 + $0x220] sm:$0xff] %vm3642, %v3839
        %3968 = vst.msk [vmem:[#allocation3 + $0x228] sm:$0xff] %vm3642, %v3840
        %3969 = vst.msk [vmem:[#allocation3 + $0x230] sm:$0xff] %vm3642, %v3841
        %3970 = vst.msk [vmem:[#allocation3 + $0x238] sm:$0xff] %vm3642, %v3842
        %3971 = vst.msk [vmem:[#allocation3 + $0x240] sm:$0xff] %vm3642, %v3843
        %3972 = vst.msk [vmem:[#allocation3 + $0x248] sm:$0xff] %vm3642, %v3844
        %3973 = vst.msk [vmem:[#allocation3 + $0x250] sm:$0xff] %vm3642, %v3845
        %3974 = vst.msk [vmem:[#allocation3 + $0x258] sm:$0xff] %vm3642, %v3846
        %3975 = vst.msk [vmem:[#allocation3 + $0x260] sm:$0xff] %vm3642, %v3847
        %3976 = vst.msk [vmem:[#allocation3 + $0x268] sm:$0xff] %vm3642, %v3848
        %3977 = vst.msk [vmem:[#allocation3 + $0x270] sm:$0xff] %vm3642, %v3849
        %3978 = vst.msk [vmem:[#allocation3 + $0x278] sm:$0xff] %vm3642, %v3850
        %3979 = vst.msk [vmem:[#allocation3 + $0x280] sm:$0xff] %vm3642, %v3851
        %3980 = vst.msk [vmem:[#allocation3 + $0x288] sm:$0xff] %vm3642, %v3852
        %3981 = vst.msk [vmem:[#allocation3 + $0x290] sm:$0xff] %vm3642, %v3853
        %3982 = vst.msk [vmem:[#allocation3 + $0x298] sm:$0xff] %vm3642, %v3854
        %3983 = vst.msk [vmem:[#allocation3 + $0x2a0] sm:$0xff] %vm3642, %v3855
        %3984 = vst.msk [vmem:[#allocation3 + $0x2a8] sm:$0xff] %vm3642, %v3856
        %3985 = vst.msk [vmem:[#allocation3 + $0x2b0] sm:$0xff] %vm3642, %v3857
        %3986 = vst.msk [vmem:[#allocation3 + $0x2b8] sm:$0xff] %vm3642, %v3858
        %3987 = vst.msk [vmem:[#allocation3 + $0x2c0] sm:$0xff] %vm3642, %v3859
        %3988 = vst.msk [vmem:[#allocation3 + $0x2c8] sm:$0xff] %vm3642, %v3860
        %3989 = vst.msk [vmem:[#allocation3 + $0x2d0] sm:$0xff] %vm3642, %v3861
        %3990 = vst.msk [vmem:[#allocation3 + $0x2d8] sm:$0xff] %vm3642, %v3862
        %3991 = vst.msk [vmem:[#allocation3 + $0x2e0] sm:$0xff] %vm3642, %v3863
        %3992 = vst.msk [vmem:[#allocation3 + $0x2e8] sm:$0xff] %vm3642, %v3864
        %3993 = vst.msk [vmem:[#allocation3 + $0x2f0] sm:$0xff] %vm3642, %v3865
        %3994 = vst.msk [vmem:[#allocation3 + $0x2f8] sm:$0xff] %vm3642, %v3866
        %3995 = vst.msk [vmem:[#allocation3 + $0x300] sm:$0xff] %vm3642, %v3867
        %3996 = vst.msk [vmem:[#allocation3 + $0x308] sm:$0xff] %vm3642, %v3868
        %3997 = vst.msk [vmem:[#allocation3 + $0x310] sm:$0xff] %vm3642, %v3869
        %3998 = vst.msk [vmem:[#allocation3 + $0x318] sm:$0xff] %vm3642, %v3870
        %3999 = vst.msk [vmem:[#allocation3 + $0x320] sm:$0xff] %vm3642, %v3871
        %4000 = vst.msk [vmem:[#allocation3 + $0x328] sm:$0xff] %vm3642, %v3872
        %4001 = vst.msk [vmem:[#allocation3 + $0x330] sm:$0xff] %vm3642, %v3873
        %4002 = vst.msk [vmem:[#allocation3 + $0x338] sm:$0xff] %vm3642, %v3874
        %4003 = vst.msk [vmem:[#allocation3 + $0x340] sm:$0xff] %vm3642, %v3875
        %4004 = vst.msk [vmem:[#allocation3 + $0x348] sm:$0xff] %vm3642, %v3876
        %4005 = vst.msk [vmem:[#allocation3 + $0x350] sm:$0xff] %vm3642, %v3877
        %4006 = vst.msk [vmem:[#allocation3 + $0x358] sm:$0xff] %vm3642, %v3878
        %4007 = vst.msk [vmem:[#allocation3 + $0x360] sm:$0xff] %vm3642, %v3879
        %4008 = vst.msk [vmem:[#allocation3 + $0x368] sm:$0xff] %vm3642, %v3880
        %4009 = vst.msk [vmem:[#allocation3 + $0x370] sm:$0xff] %vm3642, %v3881
        %4010 = vst.msk [vmem:[#allocation3 + $0x378] sm:$0xff] %vm3642, %v3882
        %4011 = vst.msk [vmem:[#allocation3 + $0x380] sm:$0xff] %vm3642, %v3883
        %4012 = vst.msk [vmem:[#allocation3 + $0x388] sm:$0xff] %vm3642, %v3884
        %4013 = vst.msk [vmem:[#allocation3 + $0x390] sm:$0xff] %vm3642, %v3885
        %4014 = vst.msk [vmem:[#allocation3 + $0x398] sm:$0xff] %vm3642, %v3886
        %4015 = vst.msk [vmem:[#allocation3 + $0x3a0] sm:$0xff] %vm3642, %v3887
        %4016 = vst.msk [vmem:[#allocation3 + $0x3a8] sm:$0xff] %vm3642, %v3888
        %4017 = vst.msk [vmem:[#allocation3 + $0x3b0] sm:$0xff] %vm3642, %v3889
        %4018 = vst.msk [vmem:[#allocation3 + $0x3b8] sm:$0xff] %vm3642, %v3890
        %4019 = vst.msk [vmem:[#allocation3 + $0x3c0] sm:$0xff] %vm3642, %v3891
        %4020 = vst.msk [vmem:[#allocation3 + $0x3c8] sm:$0xff] %vm3642, %v3892
        %4021 = vst.msk [vmem:[#allocation3 + $0x3d0] sm:$0xff] %vm3642, %v3893
        %4022 = vst.msk [vmem:[#allocation3 + $0x3d8] sm:$0xff] %vm3642, %v3894
        %4023 = vst.msk [vmem:[#allocation3 + $0x3e0] sm:$0xff] %vm3642, %v3895
        %4024 = vst.msk [vmem:[#allocation3 + $0x3e8] sm:$0xff] %vm3642, %v3896
        %4025 = vst.msk [vmem:[#allocation3 + $0x3f0] sm:$0xff] %vm3642, %v3897
        %4026 = vst.msk [vmem:[#allocation3 + $0x3f8] sm:$0xff] %vm3642, %v3898
      $region36: #{tpu_custom_call.1} parent=27 // pred_fallthru
        _
      // Predicated region
      $region37: #{tpu_custom_call.1} parent=27 // pred_check
        %p4027 = pneg %p2865
      $region38: #{tpu_custom_call.1} parent=27 // pred_check_branch
        %4029 = sbr.rel (%p4027) target = $region40
      $region39: #{tpu_custom_call.1} parent=27 // pred_region
        %s4030 = sld [smem:[#allocation4]]
        %v4031 = vld [vmem:[#allocation2] sm:$0xff]
        %v4032 = vld [vmem:[#allocation2 + $0x8] sm:$0xff]
        %v4033 = vld [vmem:[#allocation2 + $0x10] sm:$0xff]
        %v4034 = vld [vmem:[#allocation2 + $0x18] sm:$0xff]
        %v4035 = vld [vmem:[#allocation2 + $0x20] sm:$0xff]
        %v4036 = vld [vmem:[#allocation2 + $0x28] sm:$0xff]
        %v4037 = vld [vmem:[#allocation2 + $0x30] sm:$0xff]
        %v4038 = vld [vmem:[#allocation2 + $0x38] sm:$0xff]
        %v4039 = vld [vmem:[#allocation2 + $0x40] sm:$0xff]
        %v4040 = vld [vmem:[#allocation2 + $0x48] sm:$0xff]
        %v4041 = vld [vmem:[#allocation2 + $0x50] sm:$0xff]
        %v4042 = vld [vmem:[#allocation2 + $0x58] sm:$0xff]
        %v4043 = vld [vmem:[#allocation2 + $0x60] sm:$0xff]
        %v4044 = vld [vmem:[#allocation2 + $0x68] sm:$0xff]
        %v4045 = vld [vmem:[#allocation2 + $0x70] sm:$0xff]
        %v4046 = vld [vmem:[#allocation2 + $0x78] sm:$0xff]
        %v4047 = vld [vmem:[#allocation2 + $0x80] sm:$0xff]
        %v4048 = vld [vmem:[#allocation2 + $0x88] sm:$0xff]
        %v4049 = vld [vmem:[#allocation2 + $0x90] sm:$0xff]
        %v4050 = vld [vmem:[#allocation2 + $0x98] sm:$0xff]
        %v4051 = vld [vmem:[#allocation2 + $0xa0] sm:$0xff]
        %v4052 = vld [vmem:[#allocation2 + $0xa8] sm:$0xff]
        %v4053 = vld [vmem:[#allocation2 + $0xb0] sm:$0xff]
        %v4054 = vld [vmem:[#allocation2 + $0xb8] sm:$0xff]
        %v4055 = vld [vmem:[#allocation2 + $0xc0] sm:$0xff]
        %v4056 = vld [vmem:[#allocation2 + $0xc8] sm:$0xff]
        %v4057 = vld [vmem:[#allocation2 + $0xd0] sm:$0xff]
        %v4058 = vld [vmem:[#allocation2 + $0xd8] sm:$0xff]
        %v4059 = vld [vmem:[#allocation2 + $0xe0] sm:$0xff]
        %v4060 = vld [vmem:[#allocation2 + $0xe8] sm:$0xff]
        %v4061 = vld [vmem:[#allocation2 + $0xf0] sm:$0xff]
        %v4062 = vld [vmem:[#allocation2 + $0xf8] sm:$0xff]
        %v4063 = vld [vmem:[#allocation2 + $0x100] sm:$0xff]
        %v4064 = vld [vmem:[#allocation2 + $0x108] sm:$0xff]
        %v4065 = vld [vmem:[#allocation2 + $0x110] sm:$0xff]
        %v4066 = vld [vmem:[#allocation2 + $0x118] sm:$0xff]
        %v4067 = vld [vmem:[#allocation2 + $0x120] sm:$0xff]
        %v4068 = vld [vmem:[#allocation2 + $0x128] sm:$0xff]
        %v4069 = vld [vmem:[#allocation2 + $0x130] sm:$0xff]
        %v4070 = vld [vmem:[#allocation2 + $0x138] sm:$0xff]
        %v4071 = vld [vmem:[#allocation2 + $0x140] sm:$0xff]
        %v4072 = vld [vmem:[#allocation2 + $0x148] sm:$0xff]
        %v4073 = vld [vmem:[#allocation2 + $0x150] sm:$0xff]
        %v4074 = vld [vmem:[#allocation2 + $0x158] sm:$0xff]
        %v4075 = vld [vmem:[#allocation2 + $0x160] sm:$0xff]
        %v4076 = vld [vmem:[#allocation2 + $0x168] sm:$0xff]
        %v4077 = vld [vmem:[#allocation2 + $0x170] sm:$0xff]
        %v4078 = vld [vmem:[#allocation2 + $0x178] sm:$0xff]
        %v4079 = vld [vmem:[#allocation2 + $0x180] sm:$0xff]
        %v4080 = vld [vmem:[#allocation2 + $0x188] sm:$0xff]
        %v4081 = vld [vmem:[#allocation2 + $0x190] sm:$0xff]
        %v4082 = vld [vmem:[#allocation2 + $0x198] sm:$0xff]
        %v4083 = vld [vmem:[#allocation2 + $0x1a0] sm:$0xff]
        %v4084 = vld [vmem:[#allocation2 + $0x1a8] sm:$0xff]
        %v4085 = vld [vmem:[#allocation2 + $0x1b0] sm:$0xff]
        %v4086 = vld [vmem:[#allocation2 + $0x1b8] sm:$0xff]
        %v4087 = vld [vmem:[#allocation2 + $0x1c0] sm:$0xff]
        %v4088 = vld [vmem:[#allocation2 + $0x1c8] sm:$0xff]
        %v4089 = vld [vmem:[#allocation2 + $0x1d0] sm:$0xff]
        %v4090 = vld [vmem:[#allocation2 + $0x1d8] sm:$0xff]
        %v4091 = vld [vmem:[#allocation2 + $0x1e0] sm:$0xff]
        %v4092 = vld [vmem:[#allocation2 + $0x1e8] sm:$0xff]
        %v4093 = vld [vmem:[#allocation2 + $0x1f0] sm:$0xff]
        %v4094 = vld [vmem:[#allocation2 + $0x1f8] sm:$0xff]
        %v4095 = vld [vmem:[#allocation2 + $0x200] sm:$0xff]
        %v4096 = vld [vmem:[#allocation2 + $0x208] sm:$0xff]
        %v4097 = vld [vmem:[#allocation2 + $0x210] sm:$0xff]
        %v4098 = vld [vmem:[#allocation2 + $0x218] sm:$0xff]
        %v4099 = vld [vmem:[#allocation2 + $0x220] sm:$0xff]
        %v4100 = vld [vmem:[#allocation2 + $0x228] sm:$0xff]
        %v4101 = vld [vmem:[#allocation2 + $0x230] sm:$0xff]
        %v4102 = vld [vmem:[#allocation2 + $0x238] sm:$0xff]
        %v4103 = vld [vmem:[#allocation2 + $0x240] sm:$0xff]
        %v4104 = vld [vmem:[#allocation2 + $0x248] sm:$0xff]
        %v4105 = vld [vmem:[#allocation2 + $0x250] sm:$0xff]
        %v4106 = vld [vmem:[#allocation2 + $0x258] sm:$0xff]
        %v4107 = vld [vmem:[#allocation2 + $0x260] sm:$0xff]
        %v4108 = vld [vmem:[#allocation2 + $0x268] sm:$0xff]
        %v4109 = vld [vmem:[#allocation2 + $0x270] sm:$0xff]
        %v4110 = vld [vmem:[#allocation2 + $0x278] sm:$0xff]
        %v4111 = vld [vmem:[#allocation2 + $0x280] sm:$0xff]
        %v4112 = vld [vmem:[#allocation2 + $0x288] sm:$0xff]
        %v4113 = vld [vmem:[#allocation2 + $0x290] sm:$0xff]
        %v4114 = vld [vmem:[#allocation2 + $0x298] sm:$0xff]
        %v4115 = vld [vmem:[#allocation2 + $0x2a0] sm:$0xff]
        %v4116 = vld [vmem:[#allocation2 + $0x2a8] sm:$0xff]
        %v4117 = vld [vmem:[#allocation2 + $0x2b0] sm:$0xff]
        %v4118 = vld [vmem:[#allocation2 + $0x2b8] sm:$0xff]
        %v4119 = vld [vmem:[#allocation2 + $0x2c0] sm:$0xff]
        %v4120 = vld [vmem:[#allocation2 + $0x2c8] sm:$0xff]
        %v4121 = vld [vmem:[#allocation2 + $0x2d0] sm:$0xff]
        %v4122 = vld [vmem:[#allocation2 + $0x2d8] sm:$0xff]
        %v4123 = vld [vmem:[#allocation2 + $0x2e0] sm:$0xff]
        %v4124 = vld [vmem:[#allocation2 + $0x2e8] sm:$0xff]
        %v4125 = vld [vmem:[#allocation2 + $0x2f0] sm:$0xff]
        %v4126 = vld [vmem:[#allocation2 + $0x2f8] sm:$0xff]
        %v4127 = vld [vmem:[#allocation2 + $0x300] sm:$0xff]
        %v4128 = vld [vmem:[#allocation2 + $0x308] sm:$0xff]
        %v4129 = vld [vmem:[#allocation2 + $0x310] sm:$0xff]
        %v4130 = vld [vmem:[#allocation2 + $0x318] sm:$0xff]
        %v4131 = vld [vmem:[#allocation2 + $0x320] sm:$0xff]
        %v4132 = vld [vmem:[#allocation2 + $0x328] sm:$0xff]
        %v4133 = vld [vmem:[#allocation2 + $0x330] sm:$0xff]
        %v4134 = vld [vmem:[#allocation2 + $0x338] sm:$0xff]
        %v4135 = vld [vmem:[#allocation2 + $0x340] sm:$0xff]
        %v4136 = vld [vmem:[#allocation2 + $0x348] sm:$0xff]
        %v4137 = vld [vmem:[#allocation2 + $0x350] sm:$0xff]
        %v4138 = vld [vmem:[#allocation2 + $0x358] sm:$0xff]
        %v4139 = vld [vmem:[#allocation2 + $0x360] sm:$0xff]
        %v4140 = vld [vmem:[#allocation2 + $0x368] sm:$0xff]
        %v4141 = vld [vmem:[#allocation2 + $0x370] sm:$0xff]
        %v4142 = vld [vmem:[#allocation2 + $0x378] sm:$0xff]
        %v4143 = vld [vmem:[#allocation2 + $0x380] sm:$0xff]
        %v4144 = vld [vmem:[#allocation2 + $0x388] sm:$0xff]
        %v4145 = vld [vmem:[#allocation2 + $0x390] sm:$0xff]
        %v4146 = vld [vmem:[#allocation2 + $0x398] sm:$0xff]
        %v4147 = vld [vmem:[#allocation2 + $0x3a0] sm:$0xff]
        %v4148 = vld [vmem:[#allocation2 + $0x3a8] sm:$0xff]
        %v4149 = vld [vmem:[#allocation2 + $0x3b0] sm:$0xff]
        %v4150 = vld [vmem:[#allocation2 + $0x3b8] sm:$0xff]
        %v4151 = vld [vmem:[#allocation2 + $0x3c0] sm:$0xff]
        %v4152 = vld [vmem:[#allocation2 + $0x3c8] sm:$0xff]
        %v4153 = vld [vmem:[#allocation2 + $0x3d0] sm:$0xff]
        %v4154 = vld [vmem:[#allocation2 + $0x3d8] sm:$0xff]
        %v4155 = vld [vmem:[#allocation2 + $0x3e0] sm:$0xff]
        %v4156 = vld [vmem:[#allocation2 + $0x3e8] sm:$0xff]
        %v4157 = vld [vmem:[#allocation2 + $0x3f0] sm:$0xff]
        %v4158 = vld [vmem:[#allocation2 + $0x3f8] sm:$0xff]
        %v4159 = vstv %s4030
        %vm4160 = vcmp.ge.f32.partialorder %v4031, %v4159
        %vm4161 = vcmp.ge.f32.partialorder %v4032, %v4159
        %vm4162 = vcmp.ge.f32.partialorder %v4033, %v4159
        %vm4163 = vcmp.ge.f32.partialorder %v4034, %v4159
        %vm4164 = vcmp.ge.f32.partialorder %v4035, %v4159
        %vm4165 = vcmp.ge.f32.partialorder %v4036, %v4159
        %vm4166 = vcmp.ge.f32.partialorder %v4037, %v4159
        %vm4167 = vcmp.ge.f32.partialorder %v4038, %v4159
        %vm4168 = vcmp.ge.f32.partialorder %v4039, %v4159
        %vm4169 = vcmp.ge.f32.partialorder %v4040, %v4159
        %vm4170 = vcmp.ge.f32.partialorder %v4041, %v4159
        %vm4171 = vcmp.ge.f32.partialorder %v4042, %v4159
        %vm4172 = vcmp.ge.f32.partialorder %v4043, %v4159
        %vm4173 = vcmp.ge.f32.partialorder %v4044, %v4159
        %vm4174 = vcmp.ge.f32.partialorder %v4045, %v4159
        %vm4175 = vcmp.ge.f32.partialorder %v4046, %v4159
        %vm4176 = vcmp.ge.f32.partialorder %v4047, %v4159
        %vm4177 = vcmp.ge.f32.partialorder %v4048, %v4159
        %vm4178 = vcmp.ge.f32.partialorder %v4049, %v4159
        %vm4179 = vcmp.ge.f32.partialorder %v4050, %v4159
        %vm4180 = vcmp.ge.f32.partialorder %v4051, %v4159
        %vm4181 = vcmp.ge.f32.partialorder %v4052, %v4159
        %vm4182 = vcmp.ge.f32.partialorder %v4053, %v4159
        %vm4183 = vcmp.ge.f32.partialorder %v4054, %v4159
        %vm4184 = vcmp.ge.f32.partialorder %v4055, %v4159
        %vm4185 = vcmp.ge.f32.partialorder %v4056, %v4159
        %vm4186 = vcmp.ge.f32.partialorder %v4057, %v4159
        %vm4187 = vcmp.ge.f32.partialorder %v4058, %v4159
        %vm4188 = vcmp.ge.f32.partialorder %v4059, %v4159
        %vm4189 = vcmp.ge.f32.partialorder %v4060, %v4159
        %vm4190 = vcmp.ge.f32.partialorder %v4061, %v4159
        %vm4191 = vcmp.ge.f32.partialorder %v4062, %v4159
        %vm4192 = vcmp.ge.f32.partialorder %v4063, %v4159
        %vm4193 = vcmp.ge.f32.partialorder %v4064, %v4159
        %vm4194 = vcmp.ge.f32.partialorder %v4065, %v4159
        %vm4195 = vcmp.ge.f32.partialorder %v4066, %v4159
        %vm4196 = vcmp.ge.f32.partialorder %v4067, %v4159
        %vm4197 = vcmp.ge.f32.partialorder %v4068, %v4159
        %vm4198 = vcmp.ge.f32.partialorder %v4069, %v4159
        %vm4199 = vcmp.ge.f32.partialorder %v4070, %v4159
        %vm4200 = vcmp.ge.f32.partialorder %v4071, %v4159
        %vm4201 = vcmp.ge.f32.partialorder %v4072, %v4159
        %vm4202 = vcmp.ge.f32.partialorder %v4073, %v4159
        %vm4203 = vcmp.ge.f32.partialorder %v4074, %v4159
        %vm4204 = vcmp.ge.f32.partialorder %v4075, %v4159
        %vm4205 = vcmp.ge.f32.partialorder %v4076, %v4159
        %vm4206 = vcmp.ge.f32.partialorder %v4077, %v4159
        %vm4207 = vcmp.ge.f32.partialorder %v4078, %v4159
        %vm4208 = vcmp.ge.f32.partialorder %v4079, %v4159
        %vm4209 = vcmp.ge.f32.partialorder %v4080, %v4159
        %vm4210 = vcmp.ge.f32.partialorder %v4081, %v4159
        %vm4211 = vcmp.ge.f32.partialorder %v4082, %v4159
        %vm4212 = vcmp.ge.f32.partialorder %v4083, %v4159
        %vm4213 = vcmp.ge.f32.partialorder %v4084, %v4159
        %vm4214 = vcmp.ge.f32.partialorder %v4085, %v4159
        %vm4215 = vcmp.ge.f32.partialorder %v4086, %v4159
        %vm4216 = vcmp.ge.f32.partialorder %v4087, %v4159
        %vm4217 = vcmp.ge.f32.partialorder %v4088, %v4159
        %vm4218 = vcmp.ge.f32.partialorder %v4089, %v4159
        %vm4219 = vcmp.ge.f32.partialorder %v4090, %v4159
        %vm4220 = vcmp.ge.f32.partialorder %v4091, %v4159
        %vm4221 = vcmp.ge.f32.partialorder %v4092, %v4159
        %vm4222 = vcmp.ge.f32.partialorder %v4093, %v4159
        %vm4223 = vcmp.ge.f32.partialorder %v4094, %v4159
        %vm4224 = vcmp.ge.f32.partialorder %v4095, %v4159
        %vm4225 = vcmp.ge.f32.partialorder %v4096, %v4159
        %vm4226 = vcmp.ge.f32.partialorder %v4097, %v4159
        %vm4227 = vcmp.ge.f32.partialorder %v4098, %v4159
        %vm4228 = vcmp.ge.f32.partialorder %v4099, %v4159
        %vm4229 = vcmp.ge.f32.partialorder %v4100, %v4159
        %vm4230 = vcmp.ge.f32.partialorder %v4101, %v4159
        %vm4231 = vcmp.ge.f32.partialorder %v4102, %v4159
        %vm4232 = vcmp.ge.f32.partialorder %v4103, %v4159
        %vm4233 = vcmp.ge.f32.partialorder %v4104, %v4159
        %vm4234 = vcmp.ge.f32.partialorder %v4105, %v4159
        %vm4235 = vcmp.ge.f32.partialorder %v4106, %v4159
        %vm4236 = vcmp.ge.f32.partialorder %v4107, %v4159
        %vm4237 = vcmp.ge.f32.partialorder %v4108, %v4159
        %vm4238 = vcmp.ge.f32.partialorder %v4109, %v4159
        %vm4239 = vcmp.ge.f32.partialorder %v4110, %v4159
        %vm4240 = vcmp.ge.f32.partialorder %v4111, %v4159
        %vm4241 = vcmp.ge.f32.partialorder %v4112, %v4159
        %vm4242 = vcmp.ge.f32.partialorder %v4113, %v4159
        %vm4243 = vcmp.ge.f32.partialorder %v4114, %v4159
        %vm4244 = vcmp.ge.f32.partialorder %v4115, %v4159
        %vm4245 = vcmp.ge.f32.partialorder %v4116, %v4159
        %vm4246 = vcmp.ge.f32.partialorder %v4117, %v4159
        %vm4247 = vcmp.ge.f32.partialorder %v4118, %v4159
        %vm4248 = vcmp.ge.f32.partialorder %v4119, %v4159
        %vm4249 = vcmp.ge.f32.partialorder %v4120, %v4159
        %vm4250 = vcmp.ge.f32.partialorder %v4121, %v4159
        %vm4251 = vcmp.ge.f32.partialorder %v4122, %v4159
        %vm4252 = vcmp.ge.f32.partialorder %v4123, %v4159
        %vm4253 = vcmp.ge.f32.partialorder %v4124, %v4159
        %vm4254 = vcmp.ge.f32.partialorder %v4125, %v4159
        %vm4255 = vcmp.ge.f32.partialorder %v4126, %v4159
        %vm4256 = vcmp.ge.f32.partialorder %v4127, %v4159
        %vm4257 = vcmp.ge.f32.partialorder %v4128, %v4159
        %vm4258 = vcmp.ge.f32.partialorder %v4129, %v4159
        %vm4259 = vcmp.ge.f32.partialorder %v4130, %v4159
        %vm4260 = vcmp.ge.f32.partialorder %v4131, %v4159
        %vm4261 = vcmp.ge.f32.partialorder %v4132, %v4159
        %vm4262 = vcmp.ge.f32.partialorder %v4133, %v4159
        %vm4263 = vcmp.ge.f32.partialorder %v4134, %v4159
        %vm4264 = vcmp.ge.f32.partialorder %v4135, %v4159
        %vm4265 = vcmp.ge.f32.partialorder %v4136, %v4159
        %vm4266 = vcmp.ge.f32.partialorder %v4137, %v4159
        %vm4267 = vcmp.ge.f32.partialorder %v4138, %v4159
        %vm4268 = vcmp.ge.f32.partialorder %v4139, %v4159
        %vm4269 = vcmp.ge.f32.partialorder %v4140, %v4159
        %vm4270 = vcmp.ge.f32.partialorder %v4141, %v4159
        %vm4271 = vcmp.ge.f32.partialorder %v4142, %v4159
        %vm4272 = vcmp.ge.f32.partialorder %v4143, %v4159
        %vm4273 = vcmp.ge.f32.partialorder %v4144, %v4159
        %vm4274 = vcmp.ge.f32.partialorder %v4145, %v4159
        %vm4275 = vcmp.ge.f32.partialorder %v4146, %v4159
        %vm4276 = vcmp.ge.f32.partialorder %v4147, %v4159
        %vm4277 = vcmp.ge.f32.partialorder %v4148, %v4159
        %vm4278 = vcmp.ge.f32.partialorder %v4149, %v4159
        %vm4279 = vcmp.ge.f32.partialorder %v4150, %v4159
        %vm4280 = vcmp.ge.f32.partialorder %v4151, %v4159
        %vm4281 = vcmp.ge.f32.partialorder %v4152, %v4159
        %vm4282 = vcmp.ge.f32.partialorder %v4153, %v4159
        %vm4283 = vcmp.ge.f32.partialorder %v4154, %v4159
        %vm4284 = vcmp.ge.f32.partialorder %v4155, %v4159
        %vm4285 = vcmp.ge.f32.partialorder %v4156, %v4159
        %vm4286 = vcmp.ge.f32.partialorder %v4157, %v4159
        %vm4287 = vcmp.ge.f32.partialorder %v4158, %v4159
        %v4288 = vld [vmem:[#allocation3] sm:$0xff]
        %v4289 = vld [vmem:[#allocation3 + $0x8] sm:$0xff]
        %v4290 = vld [vmem:[#allocation3 + $0x10] sm:$0xff]
        %v4291 = vld [vmem:[#allocation3 + $0x18] sm:$0xff]
        %v4292 = vld [vmem:[#allocation3 + $0x20] sm:$0xff]
        %v4293 = vld [vmem:[#allocation3 + $0x28] sm:$0xff]
        %v4294 = vld [vmem:[#allocation3 + $0x30] sm:$0xff]
        %v4295 = vld [vmem:[#allocation3 + $0x38] sm:$0xff]
        %v4296 = vld [vmem:[#allocation3 + $0x40] sm:$0xff]
        %v4297 = vld [vmem:[#allocation3 + $0x48] sm:$0xff]
        %v4298 = vld [vmem:[#allocation3 + $0x50] sm:$0xff]
        %v4299 = vld [vmem:[#allocation3 + $0x58] sm:$0xff]
        %v4300 = vld [vmem:[#allocation3 + $0x60] sm:$0xff]
        %v4301 = vld [vmem:[#allocation3 + $0x68] sm:$0xff]
        %v4302 = vld [vmem:[#allocation3 + $0x70] sm:$0xff]
        %v4303 = vld [vmem:[#allocation3 + $0x78] sm:$0xff]
        %v4304 = vld [vmem:[#allocation3 + $0x80] sm:$0xff]
        %v4305 = vld [vmem:[#allocation3 + $0x88] sm:$0xff]
        %v4306 = vld [vmem:[#allocation3 + $0x90] sm:$0xff]
        %v4307 = vld [vmem:[#allocation3 + $0x98] sm:$0xff]
        %v4308 = vld [vmem:[#allocation3 + $0xa0] sm:$0xff]
        %v4309 = vld [vmem:[#allocation3 + $0xa8] sm:$0xff]
        %v4310 = vld [vmem:[#allocation3 + $0xb0] sm:$0xff]
        %v4311 = vld [vmem:[#allocation3 + $0xb8] sm:$0xff]
        %v4312 = vld [vmem:[#allocation3 + $0xc0] sm:$0xff]
        %v4313 = vld [vmem:[#allocation3 + $0xc8] sm:$0xff]
        %v4314 = vld [vmem:[#allocation3 + $0xd0] sm:$0xff]
        %v4315 = vld [vmem:[#allocation3 + $0xd8] sm:$0xff]
        %v4316 = vld [vmem:[#allocation3 + $0xe0] sm:$0xff]
        %v4317 = vld [vmem:[#allocation3 + $0xe8] sm:$0xff]
        %v4318 = vld [vmem:[#allocation3 + $0xf0] sm:$0xff]
        %v4319 = vld [vmem:[#allocation3 + $0xf8] sm:$0xff]
        %v4320 = vld [vmem:[#allocation3 + $0x100] sm:$0xff]
        %v4321 = vld [vmem:[#allocation3 + $0x108] sm:$0xff]
        %v4322 = vld [vmem:[#allocation3 + $0x110] sm:$0xff]
        %v4323 = vld [vmem:[#allocation3 + $0x118] sm:$0xff]
        %v4324 = vld [vmem:[#allocation3 + $0x120] sm:$0xff]
        %v4325 = vld [vmem:[#allocation3 + $0x128] sm:$0xff]
        %v4326 = vld [vmem:[#allocation3 + $0x130] sm:$0xff]
        %v4327 = vld [vmem:[#allocation3 + $0x138] sm:$0xff]
        %v4328 = vld [vmem:[#allocation3 + $0x140] sm:$0xff]
        %v4329 = vld [vmem:[#allocation3 + $0x148] sm:$0xff]
        %v4330 = vld [vmem:[#allocation3 + $0x150] sm:$0xff]
        %v4331 = vld [vmem:[#allocation3 + $0x158] sm:$0xff]
        %v4332 = vld [vmem:[#allocation3 + $0x160] sm:$0xff]
        %v4333 = vld [vmem:[#allocation3 + $0x168] sm:$0xff]
        %v4334 = vld [vmem:[#allocation3 + $0x170] sm:$0xff]
        %v4335 = vld [vmem:[#allocation3 + $0x178] sm:$0xff]
        %v4336 = vld [vmem:[#allocation3 + $0x180] sm:$0xff]
        %v4337 = vld [vmem:[#allocation3 + $0x188] sm:$0xff]
        %v4338 = vld [vmem:[#allocation3 + $0x190] sm:$0xff]
        %v4339 = vld [vmem:[#allocation3 + $0x198] sm:$0xff]
        %v4340 = vld [vmem:[#allocation3 + $0x1a0] sm:$0xff]
        %v4341 = vld [vmem:[#allocation3 + $0x1a8] sm:$0xff]
        %v4342 = vld [vmem:[#allocation3 + $0x1b0] sm:$0xff]
        %v4343 = vld [vmem:[#allocation3 + $0x1b8] sm:$0xff]
        %v4344 = vld [vmem:[#allocation3 + $0x1c0] sm:$0xff]
        %v4345 = vld [vmem:[#allocation3 + $0x1c8] sm:$0xff]
        %v4346 = vld [vmem:[#allocation3 + $0x1d0] sm:$0xff]
        %v4347 = vld [vmem:[#allocation3 + $0x1d8] sm:$0xff]
        %v4348 = vld [vmem:[#allocation3 + $0x1e0] sm:$0xff]
        %v4349 = vld [vmem:[#allocation3 + $0x1e8] sm:$0xff]
        %v4350 = vld [vmem:[#allocation3 + $0x1f0] sm:$0xff]
        %v4351 = vld [vmem:[#allocation3 + $0x1f8] sm:$0xff]
        %v4352 = vld [vmem:[#allocation3 + $0x200] sm:$0xff]
        %v4353 = vld [vmem:[#allocation3 + $0x208] sm:$0xff]
        %v4354 = vld [vmem:[#allocation3 + $0x210] sm:$0xff]
        %v4355 = vld [vmem:[#allocation3 + $0x218] sm:$0xff]
        %v4356 = vld [vmem:[#allocation3 + $0x220] sm:$0xff]
        %v4357 = vld [vmem:[#allocation3 + $0x228] sm:$0xff]
        %v4358 = vld [vmem:[#allocation3 + $0x230] sm:$0xff]
        %v4359 = vld [vmem:[#allocation3 + $0x238] sm:$0xff]
        %v4360 = vld [vmem:[#allocation3 + $0x240] sm:$0xff]
        %v4361 = vld [vmem:[#allocation3 + $0x248] sm:$0xff]
        %v4362 = vld [vmem:[#allocation3 + $0x250] sm:$0xff]
        %v4363 = vld [vmem:[#allocation3 + $0x258] sm:$0xff]
        %v4364 = vld [vmem:[#allocation3 + $0x260] sm:$0xff]
        %v4365 = vld [vmem:[#allocation3 + $0x268] sm:$0xff]
        %v4366 = vld [vmem:[#allocation3 + $0x270] sm:$0xff]
        %v4367 = vld [vmem:[#allocation3 + $0x278] sm:$0xff]
        %v4368 = vld [vmem:[#allocation3 + $0x280] sm:$0xff]
        %v4369 = vld [vmem:[#allocation3 + $0x288] sm:$0xff]
        %v4370 = vld [vmem:[#allocation3 + $0x290] sm:$0xff]
        %v4371 = vld [vmem:[#allocation3 + $0x298] sm:$0xff]
        %v4372 = vld [vmem:[#allocation3 + $0x2a0] sm:$0xff]
        %v4373 = vld [vmem:[#allocation3 + $0x2a8] sm:$0xff]
        %v4374 = vld [vmem:[#allocation3 + $0x2b0] sm:$0xff]
        %v4375 = vld [vmem:[#allocation3 + $0x2b8] sm:$0xff]
        %v4376 = vld [vmem:[#allocation3 + $0x2c0] sm:$0xff]
        %v4377 = vld [vmem:[#allocation3 + $0x2c8] sm:$0xff]
        %v4378 = vld [vmem:[#allocation3 + $0x2d0] sm:$0xff]
        %v4379 = vld [vmem:[#allocation3 + $0x2d8] sm:$0xff]
        %v4380 = vld [vmem:[#allocation3 + $0x2e0] sm:$0xff]
        %v4381 = vld [vmem:[#allocation3 + $0x2e8] sm:$0xff]
        %v4382 = vld [vmem:[#allocation3 + $0x2f0] sm:$0xff]
        %v4383 = vld [vmem:[#allocation3 + $0x2f8] sm:$0xff]
        %v4384 = vld [vmem:[#allocation3 + $0x300] sm:$0xff]
        %v4385 = vld [vmem:[#allocation3 + $0x308] sm:$0xff]
        %v4386 = vld [vmem:[#allocation3 + $0x310] sm:$0xff]
        %v4387 = vld [vmem:[#allocation3 + $0x318] sm:$0xff]
        %v4388 = vld [vmem:[#allocation3 + $0x320] sm:$0xff]
        %v4389 = vld [vmem:[#allocation3 + $0x328] sm:$0xff]
        %v4390 = vld [vmem:[#allocation3 + $0x330] sm:$0xff]
        %v4391 = vld [vmem:[#allocation3 + $0x338] sm:$0xff]
        %v4392 = vld [vmem:[#allocation3 + $0x340] sm:$0xff]
        %v4393 = vld [vmem:[#allocation3 + $0x348] sm:$0xff]
        %v4394 = vld [vmem:[#allocation3 + $0x350] sm:$0xff]
        %v4395 = vld [vmem:[#allocation3 + $0x358] sm:$0xff]
        %v4396 = vld [vmem:[#allocation3 + $0x360] sm:$0xff]
        %v4397 = vld [vmem:[#allocation3 + $0x368] sm:$0xff]
        %v4398 = vld [vmem:[#allocation3 + $0x370] sm:$0xff]
        %v4399 = vld [vmem:[#allocation3 + $0x378] sm:$0xff]
        %v4400 = vld [vmem:[#allocation3 + $0x380] sm:$0xff]
        %v4401 = vld [vmem:[#allocation3 + $0x388] sm:$0xff]
        %v4402 = vld [vmem:[#allocation3 + $0x390] sm:$0xff]
        %v4403 = vld [vmem:[#allocation3 + $0x398] sm:$0xff]
        %v4404 = vld [vmem:[#allocation3 + $0x3a0] sm:$0xff]
        %v4405 = vld [vmem:[#allocation3 + $0x3a8] sm:$0xff]
        %v4406 = vld [vmem:[#allocation3 + $0x3b0] sm:$0xff]
        %v4407 = vld [vmem:[#allocation3 + $0x3b8] sm:$0xff]
        %v4408 = vld [vmem:[#allocation3 + $0x3c0] sm:$0xff]
        %v4409 = vld [vmem:[#allocation3 + $0x3c8] sm:$0xff]
        %v4410 = vld [vmem:[#allocation3 + $0x3d0] sm:$0xff]
        %v4411 = vld [vmem:[#allocation3 + $0x3d8] sm:$0xff]
        %v4412 = vld [vmem:[#allocation3 + $0x3e0] sm:$0xff]
        %v4413 = vld [vmem:[#allocation3 + $0x3e8] sm:$0xff]
        %v4414 = vld [vmem:[#allocation3 + $0x3f0] sm:$0xff]
        %v4415 = vld [vmem:[#allocation3 + $0x3f8] sm:$0xff]
        %v4416 = vsel %vm4160, %v4288, 4294967295
        %v4417 = vsel %vm4161, %v4289, 4294967295
        %v4418 = vsel %vm4162, %v4290, 4294967295
        %v4419 = vsel %vm4163, %v4291, 4294967295
        %v4420 = vsel %vm4164, %v4292, 4294967295
        %v4421 = vsel %vm4165, %v4293, 4294967295
        %v4422 = vsel %vm4166, %v4294, 4294967295
        %v4423 = vsel %vm4167, %v4295, 4294967295
        %v4424 = vsel %vm4168, %v4296, 4294967295
        %v4425 = vsel %vm4169, %v4297, 4294967295
        %v4426 = vsel %vm4170, %v4298, 4294967295
        %v4427 = vsel %vm4171, %v4299, 4294967295
        %v4428 = vsel %vm4172, %v4300, 4294967295
        %v4429 = vsel %vm4173, %v4301, 4294967295
        %v4430 = vsel %vm4174, %v4302, 4294967295
        %v4431 = vsel %vm4175, %v4303, 4294967295
        %v4432 = vsel %vm4176, %v4304, 4294967295
        %v4433 = vsel %vm4177, %v4305, 4294967295
        %v4434 = vsel %vm4178, %v4306, 4294967295
        %v4435 = vsel %vm4179, %v4307, 4294967295
        %v4436 = vsel %vm4180, %v4308, 4294967295
        %v4437 = vsel %vm4181, %v4309, 4294967295
        %v4438 = vsel %vm4182, %v4310, 4294967295
        %v4439 = vsel %vm4183, %v4311, 4294967295
        %v4440 = vsel %vm4184, %v4312, 4294967295
        %v4441 = vsel %vm4185, %v4313, 4294967295
        %v4442 = vsel %vm4186, %v4314, 4294967295
        %v4443 = vsel %vm4187, %v4315, 4294967295
        %v4444 = vsel %vm4188, %v4316, 4294967295
        %v4445 = vsel %vm4189, %v4317, 4294967295
        %v4446 = vsel %vm4190, %v4318, 4294967295
        %v4447 = vsel %vm4191, %v4319, 4294967295
        %v4448 = vsel %vm4192, %v4320, 4294967295
        %v4449 = vsel %vm4193, %v4321, 4294967295
        %v4450 = vsel %vm4194, %v4322, 4294967295
        %v4451 = vsel %vm4195, %v4323, 4294967295
        %v4452 = vsel %vm4196, %v4324, 4294967295
        %v4453 = vsel %vm4197, %v4325, 4294967295
        %v4454 = vsel %vm4198, %v4326, 4294967295
        %v4455 = vsel %vm4199, %v4327, 4294967295
        %v4456 = vsel %vm4200, %v4328, 4294967295
        %v4457 = vsel %vm4201, %v4329, 4294967295
        %v4458 = vsel %vm4202, %v4330, 4294967295
        %v4459 = vsel %vm4203, %v4331, 4294967295
        %v4460 = vsel %vm4204, %v4332, 4294967295
        %v4461 = vsel %vm4205, %v4333, 4294967295
        %v4462 = vsel %vm4206, %v4334, 4294967295
        %v4463 = vsel %vm4207, %v4335, 4294967295
        %v4464 = vsel %vm4208, %v4336, 4294967295
        %v4465 = vsel %vm4209, %v4337, 4294967295
        %v4466 = vsel %vm4210, %v4338, 4294967295
        %v4467 = vsel %vm4211, %v4339, 4294967295
        %v4468 = vsel %vm4212, %v4340, 4294967295
        %v4469 = vsel %vm4213, %v4341, 4294967295
        %v4470 = vsel %vm4214, %v4342, 4294967295
        %v4471 = vsel %vm4215, %v4343, 4294967295
        %v4472 = vsel %vm4216, %v4344, 4294967295
        %v4473 = vsel %vm4217, %v4345, 4294967295
        %v4474 = vsel %vm4218, %v4346, 4294967295
        %v4475 = vsel %vm4219, %v4347, 4294967295
        %v4476 = vsel %vm4220, %v4348, 4294967295
        %v4477 = vsel %vm4221, %v4349, 4294967295
        %v4478 = vsel %vm4222, %v4350, 4294967295
        %v4479 = vsel %vm4223, %v4351, 4294967295
        %v4480 = vsel %vm4224, %v4352, 4294967295
        %v4481 = vsel %vm4225, %v4353, 4294967295
        %v4482 = vsel %vm4226, %v4354, 4294967295
        %v4483 = vsel %vm4227, %v4355, 4294967295
        %v4484 = vsel %vm4228, %v4356, 4294967295
        %v4485 = vsel %vm4229, %v4357, 4294967295
        %v4486 = vsel %vm4230, %v4358, 4294967295
        %v4487 = vsel %vm4231, %v4359, 4294967295
        %v4488 = vsel %vm4232, %v4360, 4294967295
        %v4489 = vsel %vm4233, %v4361, 4294967295
        %v4490 = vsel %vm4234, %v4362, 4294967295
        %v4491 = vsel %vm4235, %v4363, 4294967295
        %v4492 = vsel %vm4236, %v4364, 4294967295
        %v4493 = vsel %vm4237, %v4365, 4294967295
        %v4494 = vsel %vm4238, %v4366, 4294967295
        %v4495 = vsel %vm4239, %v4367, 4294967295
        %v4496 = vsel %vm4240, %v4368, 4294967295
        %v4497 = vsel %vm4241, %v4369, 4294967295
        %v4498 = vsel %vm4242, %v4370, 4294967295
        %v4499 = vsel %vm4243, %v4371, 4294967295
        %v4500 = vsel %vm4244, %v4372, 4294967295
        %v4501 = vsel %vm4245, %v4373, 4294967295
        %v4502 = vsel %vm4246, %v4374, 4294967295
        %v4503 = vsel %vm4247, %v4375, 4294967295
        %v4504 = vsel %vm4248, %v4376, 4294967295
        %v4505 = vsel %vm4249, %v4377, 4294967295
        %v4506 = vsel %vm4250, %v4378, 4294967295
        %v4507 = vsel %vm4251, %v4379, 4294967295
        %v4508 = vsel %vm4252, %v4380, 4294967295
        %v4509 = vsel %vm4253, %v4381, 4294967295
        %v4510 = vsel %vm4254, %v4382, 4294967295
        %v4511 = vsel %vm4255, %v4383, 4294967295
        %v4512 = vsel %vm4256, %v4384, 4294967295
        %v4513 = vsel %vm4257, %v4385, 4294967295
        %v4514 = vsel %vm4258, %v4386, 4294967295
        %v4515 = vsel %vm4259, %v4387, 4294967295
        %v4516 = vsel %vm4260, %v4388, 4294967295
        %v4517 = vsel %vm4261, %v4389, 4294967295
        %v4518 = vsel %vm4262, %v4390, 4294967295
        %v4519 = vsel %vm4263, %v4391, 4294967295
        %v4520 = vsel %vm4264, %v4392, 4294967295
        %v4521 = vsel %vm4265, %v4393, 4294967295
        %v4522 = vsel %vm4266, %v4394, 4294967295
        %v4523 = vsel %vm4267, %v4395, 4294967295
        %v4524 = vsel %vm4268, %v4396, 4294967295
        %v4525 = vsel %vm4269, %v4397, 4294967295
        %v4526 = vsel %vm4270, %v4398, 4294967295
        %v4527 = vsel %vm4271, %v4399, 4294967295
        %v4528 = vsel %vm4272, %v4400, 4294967295
        %v4529 = vsel %vm4273, %v4401, 4294967295
        %v4530 = vsel %vm4274, %v4402, 4294967295
        %v4531 = vsel %vm4275, %v4403, 4294967295
        %v4532 = vsel %vm4276, %v4404, 4294967295
        %v4533 = vsel %vm4277, %v4405, 4294967295
        %v4534 = vsel %vm4278, %v4406, 4294967295
        %v4535 = vsel %vm4279, %v4407, 4294967295
        %v4536 = vsel %vm4280, %v4408, 4294967295
        %v4537 = vsel %vm4281, %v4409, 4294967295
        %v4538 = vsel %vm4282, %v4410, 4294967295
        %v4539 = vsel %vm4283, %v4411, 4294967295
        %v4540 = vsel %vm4284, %v4412, 4294967295
        %v4541 = vsel %vm4285, %v4413, 4294967295
        %v4542 = vsel %vm4286, %v4414, 4294967295
        %v4543 = vsel %vm4287, %v4415, 4294967295
        %vm4544 = vcmask 7168
        %4545 = vst.msk [vmem:[%s169] sm:$0xff] %vm4544, %v4416
        %4546 = vst.msk [vmem:[%s169 + $0x8] sm:$0xff] %vm4544, %v4417
        %4547 = vst.msk [vmem:[%s169 + $0x10] sm:$0xff] %vm4544, %v4418
        %4548 = vst.msk [vmem:[%s169 + $0x18] sm:$0xff] %vm4544, %v4419
        %4549 = vst.msk [vmem:[%s169 + $0x20] sm:$0xff] %vm4544, %v4420
        %4550 = vst.msk [vmem:[%s169 + $0x28] sm:$0xff] %vm4544, %v4421
        %4551 = vst.msk [vmem:[%s169 + $0x30] sm:$0xff] %vm4544, %v4422
        %4552 = vst.msk [vmem:[%s169 + $0x38] sm:$0xff] %vm4544, %v4423
        %4553 = vst.msk [vmem:[%s169 + $0x40] sm:$0xff] %vm4544, %v4424
        %4554 = vst.msk [vmem:[%s169 + $0x48] sm:$0xff] %vm4544, %v4425
        %4555 = vst.msk [vmem:[%s169 + $0x50] sm:$0xff] %vm4544, %v4426
        %4556 = vst.msk [vmem:[%s169 + $0x58] sm:$0xff] %vm4544, %v4427
        %4557 = vst.msk [vmem:[%s169 + $0x60] sm:$0xff] %vm4544, %v4428
        %4558 = vst.msk [vmem:[%s169 + $0x68] sm:$0xff] %vm4544, %v4429
        %4559 = vst.msk [vmem:[%s169 + $0x70] sm:$0xff] %vm4544, %v4430
        %4560 = vst.msk [vmem:[%s169 + $0x78] sm:$0xff] %vm4544, %v4431
        %4561 = vst.msk [vmem:[%s169 + $0x80] sm:$0xff] %vm4544, %v4432
        %4562 = vst.msk [vmem:[%s169 + $0x88] sm:$0xff] %vm4544, %v4433
        %4563 = vst.msk [vmem:[%s169 + $0x90] sm:$0xff] %vm4544, %v4434
        %4564 = vst.msk [vmem:[%s169 + $0x98] sm:$0xff] %vm4544, %v4435
        %4565 = vst.msk [vmem:[%s169 + $0xa0] sm:$0xff] %vm4544, %v4436
        %4566 = vst.msk [vmem:[%s169 + $0xa8] sm:$0xff] %vm4544, %v4437
        %4567 = vst.msk [vmem:[%s169 + $0xb0] sm:$0xff] %vm4544, %v4438
        %4568 = vst.msk [vmem:[%s169 + $0xb8] sm:$0xff] %vm4544, %v4439
        %4569 = vst.msk [vmem:[%s169 + $0xc0] sm:$0xff] %vm4544, %v4440
        %4570 = vst.msk [vmem:[%s169 + $0xc8] sm:$0xff] %vm4544, %v4441
        %4571 = vst.msk [vmem:[%s169 + $0xd0] sm:$0xff] %vm4544, %v4442
        %4572 = vst.msk [vmem:[%s169 + $0xd8] sm:$0xff] %vm4544, %v4443
        %4573 = vst.msk [vmem:[%s169 + $0xe0] sm:$0xff] %vm4544, %v4444
        %4574 = vst.msk [vmem:[%s169 + $0xe8] sm:$0xff] %vm4544, %v4445
        %4575 = vst.msk [vmem:[%s169 + $0xf0] sm:$0xff] %vm4544, %v4446
        %4576 = vst.msk [vmem:[%s169 + $0xf8] sm:$0xff] %vm4544, %v4447
        %4577 = vst.msk [vmem:[%s169 + $0x100] sm:$0xff] %vm4544, %v4448
        %4578 = vst.msk [vmem:[%s169 + $0x108] sm:$0xff] %vm4544, %v4449
        %4579 = vst.msk [vmem:[%s169 + $0x110] sm:$0xff] %vm4544, %v4450
        %4580 = vst.msk [vmem:[%s169 + $0x118] sm:$0xff] %vm4544, %v4451
        %4581 = vst.msk [vmem:[%s169 + $0x120] sm:$0xff] %vm4544, %v4452
        %4582 = vst.msk [vmem:[%s169 + $0x128] sm:$0xff] %vm4544, %v4453
        %4583 = vst.msk [vmem:[%s169 + $0x130] sm:$0xff] %vm4544, %v4454
        %4584 = vst.msk [vmem:[%s169 + $0x138] sm:$0xff] %vm4544, %v4455
        %4585 = vst.msk [vmem:[%s169 + $0x140] sm:$0xff] %vm4544, %v4456
        %4586 = vst.msk [vmem:[%s169 + $0x148] sm:$0xff] %vm4544, %v4457
        %4587 = vst.msk [vmem:[%s169 + $0x150] sm:$0xff] %vm4544, %v4458
        %4588 = vst.msk [vmem:[%s169 + $0x158] sm:$0xff] %vm4544, %v4459
        %4589 = vst.msk [vmem:[%s169 + $0x160] sm:$0xff] %vm4544, %v4460
        %4590 = vst.msk [vmem:[%s169 + $0x168] sm:$0xff] %vm4544, %v4461
        %4591 = vst.msk [vmem:[%s169 + $0x170] sm:$0xff] %vm4544, %v4462
        %4592 = vst.msk [vmem:[%s169 + $0x178] sm:$0xff] %vm4544, %v4463
        %4593 = vst.msk [vmem:[%s169 + $0x180] sm:$0xff] %vm4544, %v4464
        %4594 = vst.msk [vmem:[%s169 + $0x188] sm:$0xff] %vm4544, %v4465
        %4595 = vst.msk [vmem:[%s169 + $0x190] sm:$0xff] %vm4544, %v4466
        %4596 = vst.msk [vmem:[%s169 + $0x198] sm:$0xff] %vm4544, %v4467
        %4597 = vst.msk [vmem:[%s169 + $0x1a0] sm:$0xff] %vm4544, %v4468
        %4598 = vst.msk [vmem:[%s169 + $0x1a8] sm:$0xff] %vm4544, %v4469
        %4599 = vst.msk [vmem:[%s169 + $0x1b0] sm:$0xff] %vm4544, %v4470
        %4600 = vst.msk [vmem:[%s169 + $0x1b8] sm:$0xff] %vm4544, %v4471
        %4601 = vst.msk [vmem:[%s169 + $0x1c0] sm:$0xff] %vm4544, %v4472
        %4602 = vst.msk [vmem:[%s169 + $0x1c8] sm:$0xff] %vm4544, %v4473
        %4603 = vst.msk [vmem:[%s169 + $0x1d0] sm:$0xff] %vm4544, %v4474
        %4604 = vst.msk [vmem:[%s169 + $0x1d8] sm:$0xff] %vm4544, %v4475
        %4605 = vst.msk [vmem:[%s169 + $0x1e0] sm:$0xff] %vm4544, %v4476
        %4606 = vst.msk [vmem:[%s169 + $0x1e8] sm:$0xff] %vm4544, %v4477
        %4607 = vst.msk [vmem:[%s169 + $0x1f0] sm:$0xff] %vm4544, %v4478
        %4608 = vst.msk [vmem:[%s169 + $0x1f8] sm:$0xff] %vm4544, %v4479
        %4609 = vst.msk [vmem:[%s169 + $0x200] sm:$0xff] %vm4544, %v4480
        %4610 = vst.msk [vmem:[%s169 + $0x208] sm:$0xff] %vm4544, %v4481
        %4611 = vst.msk [vmem:[%s169 + $0x210] sm:$0xff] %vm4544, %v4482
        %4612 = vst.msk [vmem:[%s169 + $0x218] sm:$0xff] %vm4544, %v4483
        %4613 = vst.msk [vmem:[%s169 + $0x220] sm:$0xff] %vm4544, %v4484
        %4614 = vst.msk [vmem:[%s169 + $0x228] sm:$0xff] %vm4544, %v4485
        %4615 = vst.msk [vmem:[%s169 + $0x230] sm:$0xff] %vm4544, %v4486
        %4616 = vst.msk [vmem:[%s169 + $0x238] sm:$0xff] %vm4544, %v4487
        %4617 = vst.msk [vmem:[%s169 + $0x240] sm:$0xff] %vm4544, %v4488
        %4618 = vst.msk [vmem:[%s169 + $0x248] sm:$0xff] %vm4544, %v4489
        %4619 = vst.msk [vmem:[%s169 + $0x250] sm:$0xff] %vm4544, %v4490
        %4620 = vst.msk [vmem:[%s169 + $0x258] sm:$0xff] %vm4544, %v4491
        %4621 = vst.msk [vmem:[%s169 + $0x260] sm:$0xff] %vm4544, %v4492
        %4622 = vst.msk [vmem:[%s169 + $0x268] sm:$0xff] %vm4544, %v4493
        %4623 = vst.msk [vmem:[%s169 + $0x270] sm:$0xff] %vm4544, %v4494
        %4624 = vst.msk [vmem:[%s169 + $0x278] sm:$0xff] %vm4544, %v4495
        %4625 = vst.msk [vmem:[%s169 + $0x280] sm:$0xff] %vm4544, %v4496
        %4626 = vst.msk [vmem:[%s169 + $0x288] sm:$0xff] %vm4544, %v4497
        %4627 = vst.msk [vmem:[%s169 + $0x290] sm:$0xff] %vm4544, %v4498
        %4628 = vst.msk [vmem:[%s169 + $0x298] sm:$0xff] %vm4544, %v4499
        %4629 = vst.msk [vmem:[%s169 + $0x2a0] sm:$0xff] %vm4544, %v4500
        %4630 = vst.msk [vmem:[%s169 + $0x2a8] sm:$0xff] %vm4544, %v4501
        %4631 = vst.msk [vmem:[%s169 + $0x2b0] sm:$0xff] %vm4544, %v4502
        %4632 = vst.msk [vmem:[%s169 + $0x2b8] sm:$0xff] %vm4544, %v4503
        %4633 = vst.msk [vmem:[%s169 + $0x2c0] sm:$0xff] %vm4544, %v4504
        %4634 = vst.msk [vmem:[%s169 + $0x2c8] sm:$0xff] %vm4544, %v4505
        %4635 = vst.msk [vmem:[%s169 + $0x2d0] sm:$0xff] %vm4544, %v4506
        %4636 = vst.msk [vmem:[%s169 + $0x2d8] sm:$0xff] %vm4544, %v4507
        %4637 = vst.msk [vmem:[%s169 + $0x2e0] sm:$0xff] %vm4544, %v4508
        %4638 = vst.msk [vmem:[%s169 + $0x2e8] sm:$0xff] %vm4544, %v4509
        %4639 = vst.msk [vmem:[%s169 + $0x2f0] sm:$0xff] %vm4544, %v4510
        %4640 = vst.msk [vmem:[%s169 + $0x2f8] sm:$0xff] %vm4544, %v4511
        %4641 = vst.msk [vmem:[%s169 + $0x300] sm:$0xff] %vm4544, %v4512
        %4642 = vst.msk [vmem:[%s169 + $0x308] sm:$0xff] %vm4544, %v4513
        %4643 = vst.msk [vmem:[%s169 + $0x310] sm:$0xff] %vm4544, %v4514
        %4644 = vst.msk [vmem:[%s169 + $0x318] sm:$0xff] %vm4544, %v4515
        %4645 = vst.msk [vmem:[%s169 + $0x320] sm:$0xff] %vm4544, %v4516
        %4646 = vst.msk [vmem:[%s169 + $0x328] sm:$0xff] %vm4544, %v4517
        %4647 = vst.msk [vmem:[%s169 + $0x330] sm:$0xff] %vm4544, %v4518
        %4648 = vst.msk [vmem:[%s169 + $0x338] sm:$0xff] %vm4544, %v4519
        %4649 = vst.msk [vmem:[%s169 + $0x340] sm:$0xff] %vm4544, %v4520
        %4650 = vst.msk [vmem:[%s169 + $0x348] sm:$0xff] %vm4544, %v4521
        %4651 = vst.msk [vmem:[%s169 + $0x350] sm:$0xff] %vm4544, %v4522
        %4652 = vst.msk [vmem:[%s169 + $0x358] sm:$0xff] %vm4544, %v4523
        %4653 = vst.msk [vmem:[%s169 + $0x360] sm:$0xff] %vm4544, %v4524
        %4654 = vst.msk [vmem:[%s169 + $0x368] sm:$0xff] %vm4544, %v4525
        %4655 = vst.msk [vmem:[%s169 + $0x370] sm:$0xff] %vm4544, %v4526
        %4656 = vst.msk [vmem:[%s169 + $0x378] sm:$0xff] %vm4544, %v4527
        %4657 = vst.msk [vmem:[%s169 + $0x380] sm:$0xff] %vm4544, %v4528
        %4658 = vst.msk [vmem:[%s169 + $0x388] sm:$0xff] %vm4544, %v4529
        %4659 = vst.msk [vmem:[%s169 + $0x390] sm:$0xff] %vm4544, %v4530
        %4660 = vst.msk [vmem:[%s169 + $0x398] sm:$0xff] %vm4544, %v4531
        %4661 = vst.msk [vmem:[%s169 + $0x3a0] sm:$0xff] %vm4544, %v4532
        %4662 = vst.msk [vmem:[%s169 + $0x3a8] sm:$0xff] %vm4544, %v4533
        %4663 = vst.msk [vmem:[%s169 + $0x3b0] sm:$0xff] %vm4544, %v4534
        %4664 = vst.msk [vmem:[%s169 + $0x3b8] sm:$0xff] %vm4544, %v4535
        %4665 = vst.msk [vmem:[%s169 + $0x3c0] sm:$0xff] %vm4544, %v4536
        %4666 = vst.msk [vmem:[%s169 + $0x3c8] sm:$0xff] %vm4544, %v4537
        %4667 = vst.msk [vmem:[%s169 + $0x3d0] sm:$0xff] %vm4544, %v4538
        %4668 = vst.msk [vmem:[%s169 + $0x3d8] sm:$0xff] %vm4544, %v4539
        %4669 = vst.msk [vmem:[%s169 + $0x3e0] sm:$0xff] %vm4544, %v4540
        %4670 = vst.msk [vmem:[%s169 + $0x3e8] sm:$0xff] %vm4544, %v4541
        %4671 = vst.msk [vmem:[%s169 + $0x3f0] sm:$0xff] %vm4544, %v4542
        %4672 = vst.msk [vmem:[%s169 + $0x3f8] sm:$0xff] %vm4544, %v4543
      $region40: #{tpu_custom_call.1} parent=27 // pred_fallthru
        _
      %s4673 = smul.u32 128, %s18
      %p4674 = scmp.lt.s32.totalorder %s4673, 255
      %s4675 = scalar_select %p4674, %s4673, 255
      %s4676 = smul.addr %s4675, 8
      %s4677 = scalar_lea.vmem %s2, %s4676
      // Predicated region
      $region41: #{tpu_custom_call.1} parent=27 // pred_check
        %p4678 = pneg %p93
      $region42: #{tpu_custom_call.1} parent=27 // pred_check_branch
        %4680 = sbr.rel (%p4678) target = $region44
      $region43: #{tpu_custom_call.1} parent=27 // pred_region
        %s4681 = smul.u32 128, %s18
      $region44: #{tpu_custom_call.1} parent=27 // pred_fallthru
        _
    $region28: #{tpu_custom_call.1} parent=5 // pred_fallthru
      _
    %p4682 = scmp.le.s32.totalorder 2, %s9
    // Predicated region
    $region45: #{tpu_custom_call.1} parent=5 // pred_check
      %p4683 = pneg %p4682
    $region46: #{tpu_custom_call.1} parent=5 // pred_check_branch
      %4685 = sbr.rel (%p4683) target = $region48
    $region47: #{tpu_custom_call.1} parent=5 // pred_region
      %s4686 = ssub.s32 %s9, 2
      // Predicated region
      $region49: #{tpu_custom_call.1} parent=47 // pred_check
        %p4687 = pneg %p99
      $region50: #{tpu_custom_call.1} parent=47 // pred_check_branch
        %4689 = sbr.rel (%p4687) target = $region52
      $region51: #{tpu_custom_call.1} parent=47 // pred_region
        %s4690 = smul.u32 128, %s20
        %p4691 = scmp.lt.s32.totalorder %s4690, 255
        %s4692 = scalar_select %p4691, %s4690, 255
        %s4693 = smul.addr %s4692, 8
        %s4694 = scalar_lea.vmem %s2, %s4693
      $region52: #{tpu_custom_call.1} parent=47 // pred_fallthru
        _
    $region48: #{tpu_custom_call.1} parent=5 // pred_fallthru
      _
  $region6: #{tpu_custom_call.1} parent=0 // loop_footer
    %s13 = sadd.s32 1, %s9
  $region7: #{tpu_custom_call.1} parent=0 // loop_footer_branch
    %8 = sbr.rel target = $region3
  $region8: #{tpu_custom_call.1} parent=0 // loop_exit
    _

</llo_original>
